<compile_context>
chip_gen: v5e
topology: v5e:2x2
jax: 0.10.0
libtpu: 0.0.40
codegen_flags: <defaults>
</compile_context>

<pallas_src>
import functools

import numpy as np
import jax
import jax.numpy as jnp
from jax.experimental import pallas as pl
from jax.experimental.pallas import tpu as pltpu


def _sigmoid(z):
    return 1.0 / (1.0 + jnp.exp(-z))


def _pick_tile(n, align, cap):
    """Largest tile <= cap that divides n and is a multiple of `align`; else full n."""
    if n <= cap:
        return n
    t = (cap // align) * align
    while t >= align:
        if n % t == 0:
            return t
        t -= align
    return n


# ---------------------------------------------------------------------------
# Fused kernel: DotMatrix + CatMixRepsScalar + MaskLevel for one (b, i-tile, j-tile).
# ---------------------------------------------------------------------------
def _edge_level_kernel(*refs, n_in, n_out, nout,
                       hard_cut_rad, soft_cut_rad, soft_cut_width):
    it = iter(refs)
    atom = [tuple(next(it) for _ in range(4)) for _ in range(n_in)]    # (xr_i, xi_i, xr_j, xi_j)
    edges = [tuple(next(it) for _ in range(2)) for _ in range(n_out)]  # (er, ei) = [edge|rad] planes
    mask_ref = next(it)
    norms_ref = next(it)
    wdot = [tuple(next(it) for _ in range(2)) for _ in range(n_in)]    # (WDr, WDi)
    wedge = [tuple(next(it) for _ in range(2)) for _ in range(n_out)]  # (Wer, Wei)
    out_refs = [next(it) for _ in range(n_out)]

    # ---- MaskLevel (hard '<' cutoff + sigmoid soft cutoff) ----
    nrm = norms_ref[0]                                            # [ti, tj]
    msk = mask_ref[0] * (nrm < hard_cut_rad).astype(jnp.float32)
    msk = msk * _sigmoid((soft_cut_rad - nrm) / soft_cut_width)
    mb = msk[:, :, None]                                          # [ti, tj, 1]

    ti, tj = nrm.shape
    rows = ti * tj

    # ---- DotMatrix fused with the dot-slice of the complex mix ----
    # dot_contrib[:, l*2*nout:(l+1)*2*nout] is the dot-channel contribution to output
    # ell l, already in packed (channel, re/im) layout.
    dot_contrib = jnp.zeros((rows, n_out * 2 * nout), jnp.float32)
    for lp in range(n_in):
        xr_i_ref, xi_i_ref, xr_j_ref, xi_j_ref = atom[lp]
        xr_i = xr_i_ref[0]        # [ti, 2l+1, tau]
        xi_i = xi_i_ref[0]
        xr_j = xr_j_ref[0]        # [tj, 2l+1, tau]
        xi_j = xi_j_ref[0]
        nm = xr_i.shape[1]
        ell = (nm - 1) // 2
        tau = xr_i.shape[2]

        dr = jnp.zeros((ti, tj, tau), jnp.float32)
        di = jnp.zeros((ti, tj, tau), jnp.float32)
        for mi in range(nm):      # static short loop: accumulate over m (no [ti,tj,tau,m] temp)
            sgn = 1.0 if (mi - ell) % 2 == 0 else -1.0
            a_r = xr_i[:, mi, :]                     # [ti, tau]
            a_i = xi_i[:, mi, :]
            b_r = xr_j[:, nm - 1 - mi, :] * sgn      # m-flip + (-1)^m sign done in-kernel
            b_i = xi_j[:, nm - 1 - mi, :] * sgn
            dr = dr + (a_r[:, None, :] * b_r[None, :, :] - a_i[:, None, :] * b_i[None, :, :])
            di = di + (a_r[:, None, :] * b_i[None, :, :] + a_i[:, None, :] * b_r[None, :, :])

        wdr_ref, wdi_ref = wdot[lp]
        dot_contrib = dot_contrib + jnp.dot(dr.reshape(rows, tau), wdr_ref[...],
                                            preferred_element_type=jnp.float32)
        dot_contrib = dot_contrib + jnp.dot(di.reshape(rows, tau), wdi_ref[...],
                                            preferred_element_type=jnp.float32)

    # ---- per output ell: [edge|rad] mix + dot slice, mask, store (packed re/im lanes) ----
    for l in range(n_out):
        er_ref, ei_ref = edges[l]
        xr = er_ref[0].reshape(rows, -1)
        xi = ei_ref[0].reshape(rows, -1)
        wer_ref, wei_ref = wedge[l]
        out = (jnp.dot(xr, wer_ref[...], preferred_element_type=jnp.float32)
               + jnp.dot(xi, wei_ref[...], preferred_element_type=jnp.float32)
               + dot_contrib[:, l * 2 * nout:(l + 1) * 2 * nout])
        out_refs[l][0] = out.reshape(ti, tj, 2 * nout) * mb


# ---------------------------------------------------------------------------
# CormorantEdgeLevel.forward
# ---------------------------------------------------------------------------
def cormorant_edge_level_forward(edge_in, atom_reps, rad_funcs, base_mask, mask, norms,
                                 spherical_harmonics, weights,
                                 hard_cut_rad, soft_cut_rad, soft_cut_width):
    # `mask` and `spherical_harmonics` are accepted but unused — same as the reference forward.
    del mask, spherical_harmonics

    B, N = int(norms.shape[0]), int(norms.shape[1])
    n_in = len(atom_reps)
    n_out = len(edge_in)
    taus_in = [int(a.shape[2]) for a in atom_reps]
    td = int(sum(taus_in))
    nout = int(weights[0].shape[0])
    te = [int(e.shape[3]) for e in edge_in]
    tr = [int(r.shape[3]) for r in rad_funcs]
    f32 = jnp.float32

    # Planar atom reps laid out [B, N, 2l+1, tau] (tau lane-minor); tiny arrays, cheap glue.
    ar_r = [jnp.transpose(a[..., 0], (0, 1, 3, 2)).astype(f32) for a in atom_reps]
    ar_i = [jnp.transpose(a[..., 1], (0, 1, 3, 2)).astype(f32) for a in atom_reps]
    ms = [int(a.shape[2]) for a in ar_r]

    # [edge | rad] channel planes per output ell: [B, N, N, te+tr]
    er = [jnp.concatenate([edge_in[l][..., 0], rad_funcs[l][..., 0]], axis=-1).astype(f32)
          for l in range(n_out)]
    ei = [jnp.concatenate([edge_in[l][..., 1], rad_funcs[l][..., 1]], axis=-1).astype(f32)
          for l in range(n_out)]

    # Interleaved-output complex weights: out_packed = x_r @ W1 + x_i @ W2, with packed
    # columns p = 2*o + {0: real, 1: imag}:
    #   W1[c,2o]=wr[o,c], W1[c,2o+1]=wi[o,c];   W2[c,2o]=-wi[o,c], W2[c,2o+1]=wr[o,c]
    W1, W2 = [], []
    for l in range(n_out):
        wr = jnp.transpose(weights[l][..., 0]).astype(f32)   # [C_l, nout]
        wi = jnp.transpose(weights[l][..., 1]).astype(f32)
        c = wr.shape[0]
        W1.append(jnp.stack([wr, wi], axis=-1).reshape(c, 2 * nout))
        W2.append(jnp.stack([-wi, wr], axis=-1).reshape(c, 2 * nout))

    # channel order inside weights[l] is [edge(te_l) | dot(td) | rad(tr_l)]
    Wer = [jnp.concatenate([W1[l][:te[l]], W1[l][te[l] + td:]], axis=0) for l in range(n_out)]
    Wei = [jnp.concatenate([W2[l][:te[l]], W2[l][te[l] + td:]], axis=0) for l in range(n_out)]
    off = [0] + [int(x) for x in np.cumsum(taus_in)]
    WDr, WDi = [], []
    for lp in range(n_in):
        WDr.append(jnp.concatenate(
            [W1[l][te[l] + off[lp]: te[l] + off[lp + 1]] for l in range(n_out)], axis=1))
        WDi.append(jnp.concatenate(
            [W2[l][te[l] + off[lp]: te[l] + off[lp + 1]] for l in range(n_out)], axis=1))

    # Tile the atom-pair dims: full N for small N, (8,128)-aligned tiles for large N
    # (keeps blocks within the 64 MiB/TC budget on v7x and exposes parallel tile axes).
    ti = _pick_tile(N, 8, 256)
    tj = _pick_tile(N, 128, 256)
    grid = (B, N // ti, N // tj)

    row_spec = lambda m_, t_: pl.BlockSpec((1, ti, m_, t_), lambda b, gi, gj: (b, gi, 0, 0))
    col_spec = lambda m_, t_: pl.BlockSpec((1, tj, m_, t_), lambda b, gi, gj: (b, gj, 0, 0))
    edge_spec = lambda c: pl.BlockSpec((1, ti, tj, c), lambda b, gi, gj: (b, gi, gj, 0))
    mn_spec = pl.BlockSpec((1, ti, tj), lambda b, gi, gj: (b, gi, gj))
    w_spec = lambda r, c: pl.BlockSpec((r, c), lambda b, gi, gj: (0, 0))

    inputs, in_specs = [], []
    for lp in range(n_in):
        inputs += [ar_r[lp], ar_i[lp], ar_r[lp], ar_i[lp]]
        in_specs += [row_spec(ms[lp], taus_in[lp]), row_spec(ms[lp], taus_in[lp]),
                     col_spec(ms[lp], taus_in[lp]), col_spec(ms[lp], taus_in[lp])]
    for l in range(n_out):
        inputs += [er[l], ei[l]]
        in_specs += [edge_spec(te[l] + tr[l])] * 2
    inputs += [base_mask.astype(f32), norms.astype(f32)]
    in_specs += [mn_spec, mn_spec]
    for lp in range(n_in):
        inputs += [WDr[lp], WDi[lp]]
        in_specs += [w_spec(taus_in[lp], n_out * 2 * nout)] * 2
    for l in range(n_out):
        inputs += [Wer[l], Wei[l]]
        in_specs += [w_spec(te[l] + tr[l], 2 * nout)] * 2

    out_specs = [pl.BlockSpec((1, ti, tj, 2 * nout), lambda b, gi, gj: (b, gi, gj, 0))
                 for _ in range(n_out)]
    out_shape = [jax.ShapeDtypeStruct((B, N, N, 2 * nout), f32) for _ in range(n_out)]

    outs = pl.pallas_call(
        functools.partial(_edge_level_kernel, n_in=n_in, n_out=n_out, nout=nout,
                          hard_cut_rad=float(hard_cut_rad),
                          soft_cut_rad=float(soft_cut_rad),
                          soft_cut_width=float(soft_cut_width)),
        grid=grid,
        in_specs=in_specs,
        out_specs=out_specs,
        out_shape=out_shape,
        compiler_params=pltpu.CompilerParams(
            dimension_semantics=("parallel", "parallel", "parallel"),
            vmem_limit_bytes=48 * 1024 * 1024),
    )(*inputs)

    # Packed trailing axis (channel, re/im) -> [..., nout, 2]: trailing-contiguous reshape
    # only (no transpose / no stack pass over the output).
    return [o.reshape(B, N, N, nout, 2) for o in outs]


# ---------------------------------------------------------------------------
# Pure-JAX reference (verification only)
# ---------------------------------------------------------------------------
def reference_forward(edge_in, atom_reps, rad_funcs, base_mask, norms, weights,
                      hard_cut_rad, soft_cut_rad, soft_cut_width):
    dots = []
    for l, x in enumerate(atom_reps):
        mvals = np.arange(-l, l + 1)
        signs = jnp.asarray(np.where(mvals % 2 == 0, 1.0, -1.0), jnp.float32)
        y = x[:, :, :, ::-1, :] * signs[:, None]
        xr, xi, yr, yi = x[..., 0], x[..., 1], y[..., 0], y[..., 1]
        dr = jnp.einsum('bitm,bjtm->bijt', xr, yr) - jnp.einsum('bitm,bjtm->bijt', xi, yi)
        di = jnp.einsum('bitm,bjtm->bijt', xr, yi) + jnp.einsum('bitm,bjtm->bijt', xi, yr)
        dots.append(jnp.stack([dr, di], axis=-1))
    dot = jnp.concatenate(dots, axis=-2)

    m = base_mask * (norms < hard_cut_rad).astype(jnp.float32)
    m = m * _sigmoid((soft_cut_rad - norms) / soft_cut_width)

    outs = []
    for l in range(len(edge_in)):
        xcat = jnp.concatenate([edge_in[l], dot, rad_funcs[l]], axis=-2)
        xr, xi = xcat[..., 0], xcat[..., 1]
        wr, wi = weights[l][..., 0], weights[l][..., 1]
        o_r = jnp.einsum('bijc,oc->bijo', xr, wr) - jnp.einsum('bijc,oc->bijo', xi, wi)
        o_i = jnp.einsum('bijc,oc->bijo', xr, wi) + jnp.einsum('bijc,oc->bijo', xi, wr)
        outs.append(jnp.stack([o_r, o_i], axis=-1) * m[:, :, :, None, None])
    return outs


if __name__ == "__main__":
    key = jax.random.PRNGKey(0)
    B, N, nout = 2, 8, 8
    maxl = 1                                  # ells 0 and 1
    tau_edge = [3, 3]
    tau_in = [4, 4]
    tau_rad = [5, 5]
    hard_cut_rad, soft_cut_rad, soft_cut_width = 1.2, 1.2, 0.2

    keys = jax.random.split(key, 16)
    atom_reps = [jax.random.normal(keys[l], (B, N, tau_in[l], 2 * l + 1, 2), jnp.float32)
                 for l in range(maxl + 1)]
    edge_in = [jax.random.normal(keys[4 + l], (B, N, N, tau_edge[l], 2), jnp.float32)
               for l in range(maxl + 1)]
    rad_funcs = [jax.random.normal(keys[8 + l], (B, N, N, tau_rad[l], 2), jnp.float32)
                 for l in range(maxl + 1)]
    pos = jax.random.uniform(keys[12], (B, N, 3), jnp.float32)
    norms = jnp.sqrt(jnp.sum((pos[:, :, None, :] - pos[:, None, :, :]) ** 2, axis=-1))
    base_mask = jnp.tile(1.0 - jnp.eye(N, dtype=jnp.float32), (B, 1, 1))
    atom_mask = jnp.ones((B, N), jnp.float32)     # `mask` arg — unused by forward
    sph = None                                    # `spherical_harmonics` — unused by forward

    # Complex mixing weights of CatMixRepsScalar: [nout, tau_cat_l, 2] per output ell
    tau_dot = sum(tau_in)
    weights = []
    for l in range(maxl + 1):
        c = tau_edge[l] + tau_dot + tau_rad[l]
        w = jax.random.normal(keys[13 + l], (nout, c, 2), jnp.float32) / np.sqrt(2.0 * c)
        weights.append(w)

    out = cormorant_edge_level_forward(edge_in, atom_reps, rad_funcs, base_mask,
                                       atom_mask, norms, sph, weights,
                                       hard_cut_rad, soft_cut_rad, soft_cut_width)
    out = [jax.block_until_ready(o) for o in out]

    ref = reference_forward(edge_in, atom_reps, rad_funcs, base_mask, norms, weights,
                            hard_cut_rad, soft_cut_rad, soft_cut_width)
    for o, r in zip(out, ref):
        assert o.shape == r.shape and o.dtype == jnp.float32
        np.testing.assert_allclose(np.asarray(o), np.asarray(r), rtol=2e-4, atol=2e-4)

    print("KERNEL_OK")
</pallas_src>

<mosaic_0001>
module attributes {stable_mosaic.version = 11 : i64} {
  func.func @_edge_level_kernel(%arg0: i32, %arg1: i32, %arg2: i32, %arg3: memref<1x8x1x4xf32, #tpu.memory_space<vmem>>, %arg4: memref<1x8x1x4xf32, #tpu.memory_space<vmem>>, %arg5: memref<1x8x1x4xf32, #tpu.memory_space<vmem>>, %arg6: memref<1x8x1x4xf32, #tpu.memory_space<vmem>>, %arg7: memref<1x8x3x4xf32, #tpu.memory_space<vmem>>, %arg8: memref<1x8x3x4xf32, #tpu.memory_space<vmem>>, %arg9: memref<1x8x3x4xf32, #tpu.memory_space<vmem>>, %arg10: memref<1x8x3x4xf32, #tpu.memory_space<vmem>>, %arg11: memref<1x8x8x8xf32, #tpu.memory_space<vmem>>, %arg12: memref<1x8x8x8xf32, #tpu.memory_space<vmem>>, %arg13: memref<1x8x8x8xf32, #tpu.memory_space<vmem>>, %arg14: memref<1x8x8x8xf32, #tpu.memory_space<vmem>>, %arg15: memref<1x8x8xf32, #tpu.memory_space<vmem>>, %arg16: memref<1x8x8xf32, #tpu.memory_space<vmem>>, %arg17: memref<4x32xf32, #tpu.memory_space<vmem>>, %arg18: memref<4x32xf32, #tpu.memory_space<vmem>>, %arg19: memref<4x32xf32, #tpu.memory_space<vmem>>, %arg20: memref<4x32xf32, #tpu.memory_space<vmem>>, %arg21: memref<8x16xf32, #tpu.memory_space<vmem>>, %arg22: memref<8x16xf32, #tpu.memory_space<vmem>>, %arg23: memref<8x16xf32, #tpu.memory_space<vmem>>, %arg24: memref<8x16xf32, #tpu.memory_space<vmem>>, %arg25: memref<1x8x8x16xf32, #tpu.memory_space<vmem>>, %arg26: memref<1x8x8x16xf32, #tpu.memory_space<vmem>>) attributes {dimension_semantics = [#tpu.dimension_semantics<parallel>, #tpu.dimension_semantics<parallel>, #tpu.dimension_semantics<parallel>], iteration_bounds = array<i64: 2, 1, 1>, scalar_prefetch = 0 : i64, scratch_operands = 0 : i64, tpu.core_type = #tpu.core_type<tc>, window_params = [{transform_indices = @transform_0, window_bounds = array<i64: 1, 8, 1, 4>}, {transform_indices = @transform_1, window_bounds = array<i64: 1, 8, 1, 4>}, {transform_indices = @transform_2, window_bounds = array<i64: 1, 8, 1, 4>}, {transform_indices = @transform_3, window_bounds = array<i64: 1, 8, 1, 4>}, {transform_indices = @transform_4, window_bounds = array<i64: 1, 8, 3, 4>}, {transform_indices = @transform_5, window_bounds = array<i64: 1, 8, 3, 4>}, {transform_indices = @transform_6, window_bounds = array<i64: 1, 8, 3, 4>}, {transform_indices = @transform_7, window_bounds = array<i64: 1, 8, 3, 4>}, {transform_indices = @transform_8, window_bounds = array<i64: 1, 8, 8, 8>}, {transform_indices = @transform_9, window_bounds = array<i64: 1, 8, 8, 8>}, {transform_indices = @transform_10, window_bounds = array<i64: 1, 8, 8, 8>}, {transform_indices = @transform_11, window_bounds = array<i64: 1, 8, 8, 8>}, {transform_indices = @transform_12, window_bounds = array<i64: 1, 8, 8>}, {transform_indices = @transform_13, window_bounds = array<i64: 1, 8, 8>}, {pipeline_mode = #tpu.pipeline_mode<synchronous>, transform_indices = @transform_14, window_bounds = array<i64: 4, 32>}, {pipeline_mode = #tpu.pipeline_mode<synchronous>, transform_indices = @transform_15, window_bounds = array<i64: 4, 32>}, {pipeline_mode = #tpu.pipeline_mode<synchronous>, transform_indices = @transform_16, window_bounds = array<i64: 4, 32>}, {pipeline_mode = #tpu.pipeline_mode<synchronous>, transform_indices = @transform_17, window_bounds = array<i64: 4, 32>}, {pipeline_mode = #tpu.pipeline_mode<synchronous>, transform_indices = @transform_18, window_bounds = array<i64: 8, 16>}, {pipeline_mode = #tpu.pipeline_mode<synchronous>, transform_indices = @transform_19, window_bounds = array<i64: 8, 16>}, {pipeline_mode = #tpu.pipeline_mode<synchronous>, transform_indices = @transform_20, window_bounds = array<i64: 8, 16>}, {pipeline_mode = #tpu.pipeline_mode<synchronous>, transform_indices = @transform_21, window_bounds = array<i64: 8, 16>}, {transform_indices = @transform_22, window_bounds = array<i64: 1, 8, 8, 16>}, {transform_indices = @transform_23, window_bounds = array<i64: 1, 8, 8, 16>}]} {
    %c0 = arith.constant 0 : index
    %c0_0 = arith.constant 0 : index
    %c0_1 = arith.constant 0 : index
    %0 = vector.load %arg16[%c0, %c0_0, %c0_1] : memref<1x8x8xf32, #tpu.memory_space<vmem>>, vector<1x8x8xf32>
    %1 = vector.shape_cast %0 : vector<1x8x8xf32> to vector<8x8xf32>
    %c0_2 = arith.constant 0 : index
    %c0_3 = arith.constant 0 : index
    %c0_4 = arith.constant 0 : index
    %2 = vector.load %arg15[%c0_2, %c0_3, %c0_4] : memref<1x8x8xf32, #tpu.memory_space<vmem>>, vector<1x8x8xf32>
    %3 = vector.shape_cast %2 : vector<1x8x8xf32> to vector<8x8xf32>
    %cst = arith.constant 1.200000e+00 : f32
    %4 = vector.broadcast %cst : f32 to vector<8x8xf32>
    %5 = arith.cmpf olt, %1, %4 : vector<8x8xf32>
    %6 = arith.extui %5 : vector<8x8xi1> to vector<8x8xi32>
    %7 = arith.sitofp %6 : vector<8x8xi32> to vector<8x8xf32>
    %8 = arith.mulf %3, %7 : vector<8x8xf32>
    %cst_5 = arith.constant 1.200000e+00 : f32
    %9 = vector.broadcast %cst_5 : f32 to vector<8x8xf32>
    %10 = arith.subf %9, %1 : vector<8x8xf32>
    %cst_6 = arith.constant 2.000000e-01 : f32
    %11 = vector.broadcast %cst_6 : f32 to vector<8x8xf32>
    %12 = arith.divf %10, %11 : vector<8x8xf32>
    %cst_7 = arith.constant 0.000000e+00 : f32
    %13 = vector.broadcast %cst_7 : f32 to vector<8x8xf32>
    %14 = arith.subf %13, %12 : vector<8x8xf32>
    %15 = math.exp %14 : vector<8x8xf32>
    %cst_8 = arith.constant 1.000000e+00 : f32
    %16 = vector.broadcast %cst_8 : f32 to vector<8x8xf32>
    %17 = arith.addf %16, %15 : vector<8x8xf32>
    %cst_9 = arith.constant 1.000000e+00 : f32
    %18 = vector.broadcast %cst_9 : f32 to vector<8x8xf32>
    %19 = arith.divf %18, %17 : vector<8x8xf32>
    %20 = arith.mulf %8, %19 : vector<8x8xf32>
    %21 = vector.shape_cast %20 : vector<8x8xf32> to vector<8x8x1xf32>
    %cst_10 = arith.constant 0.000000e+00 : f32
    %22 = vector.broadcast %cst_10 : f32 to vector<64x32xf32>
    %c0_11 = arith.constant 0 : index
    %c0_12 = arith.constant 0 : index
    %c0_13 = arith.constant 0 : index
    %c0_14 = arith.constant 0 : index
    %23 = vector.load %arg3[%c0_11, %c0_12, %c0_13, %c0_14] : memref<1x8x1x4xf32, #tpu.memory_space<vmem>>, vector<1x8x1x4xf32>
    %24 = vector.shape_cast %23 : vector<1x8x1x4xf32> to vector<8x1x4xf32>
    %c0_15 = arith.constant 0 : index
    %c0_16 = arith.constant 0 : index
    %c0_17 = arith.constant 0 : index
    %c0_18 = arith.constant 0 : index
    %25 = vector.load %arg4[%c0_15, %c0_16, %c0_17, %c0_18] : memref<1x8x1x4xf32, #tpu.memory_space<vmem>>, vector<1x8x1x4xf32>
    %26 = vector.shape_cast %25 : vector<1x8x1x4xf32> to vector<8x1x4xf32>
    %c0_19 = arith.constant 0 : index
    %c0_20 = arith.constant 0 : index
    %c0_21 = arith.constant 0 : index
    %c0_22 = arith.constant 0 : index
    %27 = vector.load %arg5[%c0_19, %c0_20, %c0_21, %c0_22] : memref<1x8x1x4xf32, #tpu.memory_space<vmem>>, vector<1x8x1x4xf32>
    %28 = vector.shape_cast %27 : vector<1x8x1x4xf32> to vector<8x1x4xf32>
    %c0_23 = arith.constant 0 : index
    %c0_24 = arith.constant 0 : index
    %c0_25 = arith.constant 0 : index
    %c0_26 = arith.constant 0 : index
    %29 = vector.load %arg6[%c0_23, %c0_24, %c0_25, %c0_26] : memref<1x8x1x4xf32, #tpu.memory_space<vmem>>, vector<1x8x1x4xf32>
    %30 = vector.shape_cast %29 : vector<1x8x1x4xf32> to vector<8x1x4xf32>
    %cst_27 = arith.constant 0.000000e+00 : f32
    %31 = vector.broadcast %cst_27 : f32 to vector<8x8x4xf32>
    %cst_28 = arith.constant 0.000000e+00 : f32
    %32 = vector.broadcast %cst_28 : f32 to vector<8x8x4xf32>
    %33 = vector.shape_cast %24 : vector<8x1x4xf32> to vector<8x4xf32>
    %34 = vector.shape_cast %26 : vector<8x1x4xf32> to vector<8x4xf32>
    %35 = vector.shape_cast %28 : vector<8x1x4xf32> to vector<8x4xf32>
    %cst_29 = arith.constant 1.000000e+00 : f32
    %36 = vector.broadcast %cst_29 : f32 to vector<8x4xf32>
    %37 = arith.mulf %35, %36 : vector<8x4xf32>
    %38 = vector.shape_cast %30 : vector<8x1x4xf32> to vector<8x4xf32>
    %cst_30 = arith.constant 1.000000e+00 : f32
    %39 = vector.broadcast %cst_30 : f32 to vector<8x4xf32>
    %40 = arith.mulf %38, %39 : vector<8x4xf32>
    %41 = vector.shape_cast %33 : vector<8x4xf32> to vector<8x1x4xf32>
    %42 = vector.shape_cast %37 : vector<8x4xf32> to vector<1x8x4xf32>
    %43 = vector.broadcast %41 : vector<8x1x4xf32> to vector<8x8x4xf32>
    %44 = vector.broadcast %42 : vector<1x8x4xf32> to vector<8x8x4xf32>
    %45 = arith.mulf %43, %44 : vector<8x8x4xf32>
    %46 = vector.shape_cast %34 : vector<8x4xf32> to vector<8x1x4xf32>
    %47 = vector.shape_cast %40 : vector<8x4xf32> to vector<1x8x4xf32>
    %48 = vector.broadcast %46 : vector<8x1x4xf32> to vector<8x8x4xf32>
    %49 = vector.broadcast %47 : vector<1x8x4xf32> to vector<8x8x4xf32>
    %50 = arith.mulf %48, %49 : vector<8x8x4xf32>
    %51 = arith.subf %45, %50 : vector<8x8x4xf32>
    %52 = arith.addf %31, %51 : vector<8x8x4xf32>
    %53 = vector.shape_cast %33 : vector<8x4xf32> to vector<8x1x4xf32>
    %54 = vector.shape_cast %40 : vector<8x4xf32> to vector<1x8x4xf32>
    %55 = vector.broadcast %53 : vector<8x1x4xf32> to vector<8x8x4xf32>
    %56 = vector.broadcast %54 : vector<1x8x4xf32> to vector<8x8x4xf32>
    %57 = arith.mulf %55, %56 : vector<8x8x4xf32>
    %58 = vector.shape_cast %34 : vector<8x4xf32> to vector<8x1x4xf32>
    %59 = vector.shape_cast %37 : vector<8x4xf32> to vector<1x8x4xf32>
    %60 = vector.broadcast %58 : vector<8x1x4xf32> to vector<8x8x4xf32>
    %61 = vector.broadcast %59 : vector<1x8x4xf32> to vector<8x8x4xf32>
    %62 = arith.mulf %60, %61 : vector<8x8x4xf32>
    %63 = arith.addf %57, %62 : vector<8x8x4xf32>
    %64 = arith.addf %32, %63 : vector<8x8x4xf32>
    %65 = vector.shape_cast %52 : vector<8x8x4xf32> to vector<64x4xf32>
    %c0_31 = arith.constant 0 : index
    %c0_32 = arith.constant 0 : index
    %66 = vector.load %arg17[%c0_31, %c0_32] : memref<4x32xf32, #tpu.memory_space<vmem>>, vector<4x32xf32>
    %cst_33 = arith.constant dense<0.000000e+00> : vector<64x32xf32>
    %67 = tpu.matmul %65, %66, %cst_33 {dimension_numbers = #tpu.dot_dimension_numbers<[1], [0], [0], [1], [0, 0, 1, 1], [], []>} : vector<64x4xf32>, vector<4x32xf32>, vector<64x32xf32> -> vector<64x32xf32>
    %68 = arith.addf %22, %67 : vector<64x32xf32>
    %69 = vector.shape_cast %64 : vector<8x8x4xf32> to vector<64x4xf32>
    %c0_34 = arith.constant 0 : index
    %c0_35 = arith.constant 0 : index
    %70 = vector.load %arg18[%c0_34, %c0_35] : memref<4x32xf32, #tpu.memory_space<vmem>>, vector<4x32xf32>
    %cst_36 = arith.constant dense<0.000000e+00> : vector<64x32xf32>
    %71 = tpu.matmul %69, %70, %cst_36 {dimension_numbers = #tpu.dot_dimension_numbers<[1], [0], [0], [1], [0, 0, 1, 1], [], []>} : vector<64x4xf32>, vector<4x32xf32>, vector<64x32xf32> -> vector<64x32xf32>
    %72 = arith.addf %68, %71 : vector<64x32xf32>
    %c0_37 = arith.constant 0 : index
    %c0_38 = arith.constant 0 : index
    %c0_39 = arith.constant 0 : index
    %c0_40 = arith.constant 0 : index
    %73 = vector.load %arg7[%c0_37, %c0_38, %c0_39, %c0_40] : memref<1x8x3x4xf32, #tpu.memory_space<vmem>>, vector<1x8x3x4xf32>
    %74 = vector.shape_cast %73 : vector<1x8x3x4xf32> to vector<8x3x4xf32>
    %c0_41 = arith.constant 0 : index
    %c0_42 = arith.constant 0 : index
    %c0_43 = arith.constant 0 : index
    %c0_44 = arith.constant 0 : index
    %75 = vector.load %arg8[%c0_41, %c0_42, %c0_43, %c0_44] : memref<1x8x3x4xf32, #tpu.memory_space<vmem>>, vector<1x8x3x4xf32>
    %76 = vector.shape_cast %75 : vector<1x8x3x4xf32> to vector<8x3x4xf32>
    %c0_45 = arith.constant 0 : index
    %c0_46 = arith.constant 0 : index
    %c0_47 = arith.constant 0 : index
    %c0_48 = arith.constant 0 : index
    %77 = vector.load %arg9[%c0_45, %c0_46, %c0_47, %c0_48] : memref<1x8x3x4xf32, #tpu.memory_space<vmem>>, vector<1x8x3x4xf32>
    %78 = vector.shape_cast %77 : vector<1x8x3x4xf32> to vector<8x3x4xf32>
    %c0_49 = arith.constant 0 : index
    %c0_50 = arith.constant 0 : index
    %c0_51 = arith.constant 0 : index
    %c0_52 = arith.constant 0 : index
    %79 = vector.load %arg10[%c0_49, %c0_50, %c0_51, %c0_52] : memref<1x8x3x4xf32, #tpu.memory_space<vmem>>, vector<1x8x3x4xf32>
    %80 = vector.shape_cast %79 : vector<1x8x3x4xf32> to vector<8x3x4xf32>
    %cst_53 = arith.constant 0.000000e+00 : f32
    %81 = vector.broadcast %cst_53 : f32 to vector<8x8x4xf32>
    %cst_54 = arith.constant 0.000000e+00 : f32
    %82 = vector.broadcast %cst_54 : f32 to vector<8x8x4xf32>
    %83 = vector.extract_strided_slice %74 {offsets = [0, 0, 0], sizes = [8, 1, 4], strides = [1, 1, 1]} : vector<8x3x4xf32> to vector<8x1x4xf32>
    %84 = vector.shape_cast %83 : vector<8x1x4xf32> to vector<8x4xf32>
    %85 = vector.extract_strided_slice %76 {offsets = [0, 0, 0], sizes = [8, 1, 4], strides = [1, 1, 1]} : vector<8x3x4xf32> to vector<8x1x4xf32>
    %86 = vector.shape_cast %85 : vector<8x1x4xf32> to vector<8x4xf32>
    %87 = vector.extract_strided_slice %78 {offsets = [0, 2, 0], sizes = [8, 1, 4], strides = [1, 1, 1]} : vector<8x3x4xf32> to vector<8x1x4xf32>
    %88 = vector.shape_cast %87 : vector<8x1x4xf32> to vector<8x4xf32>
    %cst_55 = arith.constant -1.000000e+00 : f32
    %89 = vector.broadcast %cst_55 : f32 to vector<8x4xf32>
    %90 = arith.mulf %88, %89 : vector<8x4xf32>
    %91 = vector.extract_strided_slice %80 {offsets = [0, 2, 0], sizes = [8, 1, 4], strides = [1, 1, 1]} : vector<8x3x4xf32> to vector<8x1x4xf32>
    %92 = vector.shape_cast %91 : vector<8x1x4xf32> to vector<8x4xf32>
    %cst_56 = arith.constant -1.000000e+00 : f32
    %93 = vector.broadcast %cst_56 : f32 to vector<8x4xf32>
    %94 = arith.mulf %92, %93 : vector<8x4xf32>
    %95 = vector.shape_cast %84 : vector<8x4xf32> to vector<8x1x4xf32>
    %96 = vector.shape_cast %90 : vector<8x4xf32> to vector<1x8x4xf32>
    %97 = vector.broadcast %95 : vector<8x1x4xf32> to vector<8x8x4xf32>
    %98 = vector.broadcast %96 : vector<1x8x4xf32> to vector<8x8x4xf32>
    %99 = arith.mulf %97, %98 : vector<8x8x4xf32>
    %100 = vector.shape_cast %86 : vector<8x4xf32> to vector<8x1x4xf32>
    %101 = vector.shape_cast %94 : vector<8x4xf32> to vector<1x8x4xf32>
    %102 = vector.broadcast %100 : vector<8x1x4xf32> to vector<8x8x4xf32>
    %103 = vector.broadcast %101 : vector<1x8x4xf32> to vector<8x8x4xf32>
    %104 = arith.mulf %102, %103 : vector<8x8x4xf32>
    %105 = arith.subf %99, %104 : vector<8x8x4xf32>
    %106 = arith.addf %81, %105 : vector<8x8x4xf32>
    %107 = vector.shape_cast %84 : vector<8x4xf32> to vector<8x1x4xf32>
    %108 = vector.shape_cast %94 : vector<8x4xf32> to vector<1x8x4xf32>
    %109 = vector.broadcast %107 : vector<8x1x4xf32> to vector<8x8x4xf32>
    %110 = vector.broadcast %108 : vector<1x8x4xf32> to vector<8x8x4xf32>
    %111 = arith.mulf %109, %110 : vector<8x8x4xf32>
    %112 = vector.shape_cast %86 : vector<8x4xf32> to vector<8x1x4xf32>
    %113 = vector.shape_cast %90 : vector<8x4xf32> to vector<1x8x4xf32>
    %114 = vector.broadcast %112 : vector<8x1x4xf32> to vector<8x8x4xf32>
    %115 = vector.broadcast %113 : vector<1x8x4xf32> to vector<8x8x4xf32>
    %116 = arith.mulf %114, %115 : vector<8x8x4xf32>
    %117 = arith.addf %111, %116 : vector<8x8x4xf32>
    %118 = arith.addf %82, %117 : vector<8x8x4xf32>
    %119 = vector.extract_strided_slice %74 {offsets = [0, 1, 0], sizes = [8, 1, 4], strides = [1, 1, 1]} : vector<8x3x4xf32> to vector<8x1x4xf32>
    %120 = vector.shape_cast %119 : vector<8x1x4xf32> to vector<8x4xf32>
    %121 = vector.extract_strided_slice %76 {offsets = [0, 1, 0], sizes = [8, 1, 4], strides = [1, 1, 1]} : vector<8x3x4xf32> to vector<8x1x4xf32>
    %122 = vector.shape_cast %121 : vector<8x1x4xf32> to vector<8x4xf32>
    %123 = vector.extract_strided_slice %78 {offsets = [0, 1, 0], sizes = [8, 1, 4], strides = [1, 1, 1]} : vector<8x3x4xf32> to vector<8x1x4xf32>
    %124 = vector.shape_cast %123 : vector<8x1x4xf32> to vector<8x4xf32>
    %cst_57 = arith.constant 1.000000e+00 : f32
    %125 = vector.broadcast %cst_57 : f32 to vector<8x4xf32>
    %126 = arith.mulf %124, %125 : vector<8x4xf32>
    %127 = vector.extract_strided_slice %80 {offsets = [0, 1, 0], sizes = [8, 1, 4], strides = [1, 1, 1]} : vector<8x3x4xf32> to vector<8x1x4xf32>
    %128 = vector.shape_cast %127 : vector<8x1x4xf32> to vector<8x4xf32>
    %cst_58 = arith.constant 1.000000e+00 : f32
    %129 = vector.broadcast %cst_58 : f32 to vector<8x4xf32>
    %130 = arith.mulf %128, %129 : vector<8x4xf32>
    %131 = vector.shape_cast %120 : vector<8x4xf32> to vector<8x1x4xf32>
    %132 = vector.shape_cast %126 : vector<8x4xf32> to vector<1x8x4xf32>
    %133 = vector.broadcast %131 : vector<8x1x4xf32> to vector<8x8x4xf32>
    %134 = vector.broadcast %132 : vector<1x8x4xf32> to vector<8x8x4xf32>
    %135 = arith.mulf %133, %134 : vector<8x8x4xf32>
    %136 = vector.shape_cast %122 : vector<8x4xf32> to vector<8x1x4xf32>
    %137 = vector.shape_cast %130 : vector<8x4xf32> to vector<1x8x4xf32>
    %138 = vector.broadcast %136 : vector<8x1x4xf32> to vector<8x8x4xf32>
    %139 = vector.broadcast %137 : vector<1x8x4xf32> to vector<8x8x4xf32>
    %140 = arith.mulf %138, %139 : vector<8x8x4xf32>
    %141 = arith.subf %135, %140 : vector<8x8x4xf32>
    %142 = arith.addf %106, %141 : vector<8x8x4xf32>
    %143 = vector.shape_cast %120 : vector<8x4xf32> to vector<8x1x4xf32>
    %144 = vector.shape_cast %130 : vector<8x4xf32> to vector<1x8x4xf32>
    %145 = vector.broadcast %143 : vector<8x1x4xf32> to vector<8x8x4xf32>
    %146 = vector.broadcast %144 : vector<1x8x4xf32> to vector<8x8x4xf32>
    %147 = arith.mulf %145, %146 : vector<8x8x4xf32>
    %148 = vector.shape_cast %122 : vector<8x4xf32> to vector<8x1x4xf32>
    %149 = vector.shape_cast %126 : vector<8x4xf32> to vector<1x8x4xf32>
    %150 = vector.broadcast %148 : vector<8x1x4xf32> to vector<8x8x4xf32>
    %151 = vector.broadcast %149 : vector<1x8x4xf32> to vector<8x8x4xf32>
    %152 = arith.mulf %150, %151 : vector<8x8x4xf32>
    %153 = arith.addf %147, %152 : vector<8x8x4xf32>
    %154 = arith.addf %118, %153 : vector<8x8x4xf32>
    %155 = vector.extract_strided_slice %74 {offsets = [0, 2, 0], sizes = [8, 1, 4], strides = [1, 1, 1]} : vector<8x3x4xf32> to vector<8x1x4xf32>
    %156 = vector.shape_cast %155 : vector<8x1x4xf32> to vector<8x4xf32>
    %157 = vector.extract_strided_slice %76 {offsets = [0, 2, 0], sizes = [8, 1, 4], strides = [1, 1, 1]} : vector<8x3x4xf32> to vector<8x1x4xf32>
    %158 = vector.shape_cast %157 : vector<8x1x4xf32> to vector<8x4xf32>
    %159 = vector.extract_strided_slice %78 {offsets = [0, 0, 0], sizes = [8, 1, 4], strides = [1, 1, 1]} : vector<8x3x4xf32> to vector<8x1x4xf32>
    %160 = vector.shape_cast %159 : vector<8x1x4xf32> to vector<8x4xf32>
    %cst_59 = arith.constant -1.000000e+00 : f32
    %161 = vector.broadcast %cst_59 : f32 to vector<8x4xf32>
    %162 = arith.mulf %160, %161 : vector<8x4xf32>
    %163 = vector.extract_strided_slice %80 {offsets = [0, 0, 0], sizes = [8, 1, 4], strides = [1, 1, 1]} : vector<8x3x4xf32> to vector<8x1x4xf32>
    %164 = vector.shape_cast %163 : vector<8x1x4xf32> to vector<8x4xf32>
    %cst_60 = arith.constant -1.000000e+00 : f32
    %165 = vector.broadcast %cst_60 : f32 to vector<8x4xf32>
    %166 = arith.mulf %164, %165 : vector<8x4xf32>
    %167 = vector.shape_cast %156 : vector<8x4xf32> to vector<8x1x4xf32>
    %168 = vector.shape_cast %162 : vector<8x4xf32> to vector<1x8x4xf32>
    %169 = vector.broadcast %167 : vector<8x1x4xf32> to vector<8x8x4xf32>
    %170 = vector.broadcast %168 : vector<1x8x4xf32> to vector<8x8x4xf32>
    %171 = arith.mulf %169, %170 : vector<8x8x4xf32>
    %172 = vector.shape_cast %158 : vector<8x4xf32> to vector<8x1x4xf32>
    %173 = vector.shape_cast %166 : vector<8x4xf32> to vector<1x8x4xf32>
    %174 = vector.broadcast %172 : vector<8x1x4xf32> to vector<8x8x4xf32>
    %175 = vector.broadcast %173 : vector<1x8x4xf32> to vector<8x8x4xf32>
    %176 = arith.mulf %174, %175 : vector<8x8x4xf32>
    %177 = arith.subf %171, %176 : vector<8x8x4xf32>
    %178 = arith.addf %142, %177 : vector<8x8x4xf32>
    %179 = vector.shape_cast %156 : vector<8x4xf32> to vector<8x1x4xf32>
    %180 = vector.shape_cast %166 : vector<8x4xf32> to vector<1x8x4xf32>
    %181 = vector.broadcast %179 : vector<8x1x4xf32> to vector<8x8x4xf32>
    %182 = vector.broadcast %180 : vector<1x8x4xf32> to vector<8x8x4xf32>
    %183 = arith.mulf %181, %182 : vector<8x8x4xf32>
    %184 = vector.shape_cast %158 : vector<8x4xf32> to vector<8x1x4xf32>
    %185 = vector.shape_cast %162 : vector<8x4xf32> to vector<1x8x4xf32>
    %186 = vector.broadcast %184 : vector<8x1x4xf32> to vector<8x8x4xf32>
    %187 = vector.broadcast %185 : vector<1x8x4xf32> to vector<8x8x4xf32>
    %188 = arith.mulf %186, %187 : vector<8x8x4xf32>
    %189 = arith.addf %183, %188 : vector<8x8x4xf32>
    %190 = arith.addf %154, %189 : vector<8x8x4xf32>
    %191 = vector.shape_cast %178 : vector<8x8x4xf32> to vector<64x4xf32>
    %c0_61 = arith.constant 0 : index
    %c0_62 = arith.constant 0 : index
    %192 = vector.load %arg19[%c0_61, %c0_62] : memref<4x32xf32, #tpu.memory_space<vmem>>, vector<4x32xf32>
    %cst_63 = arith.constant dense<0.000000e+00> : vector<64x32xf32>
    %193 = tpu.matmul %191, %192, %cst_63 {dimension_numbers = #tpu.dot_dimension_numbers<[1], [0], [0], [1], [0, 0, 1, 1], [], []>} : vector<64x4xf32>, vector<4x32xf32>, vector<64x32xf32> -> vector<64x32xf32>
    %194 = arith.addf %72, %193 : vector<64x32xf32>
    %195 = vector.shape_cast %190 : vector<8x8x4xf32> to vector<64x4xf32>
    %c0_64 = arith.constant 0 : index
    %c0_65 = arith.constant 0 : index
    %196 = vector.load %arg20[%c0_64, %c0_65] : memref<4x32xf32, #tpu.memory_space<vmem>>, vector<4x32xf32>
    %cst_66 = arith.constant dense<0.000000e+00> : vector<64x32xf32>
    %197 = tpu.matmul %195, %196, %cst_66 {dimension_numbers = #tpu.dot_dimension_numbers<[1], [0], [0], [1], [0, 0, 1, 1], [], []>} : vector<64x4xf32>, vector<4x32xf32>, vector<64x32xf32> -> vector<64x32xf32>
    %198 = arith.addf %194, %197 : vector<64x32xf32>
    %c0_67 = arith.constant 0 : index
    %c0_68 = arith.constant 0 : index
    %c0_69 = arith.constant 0 : index
    %c0_70 = arith.constant 0 : index
    %199 = vector.load %arg11[%c0_67, %c0_68, %c0_69, %c0_70] : memref<1x8x8x8xf32, #tpu.memory_space<vmem>>, vector<1x8x8x8xf32>
    %200 = vector.shape_cast %199 : vector<1x8x8x8xf32> to vector<8x8x8xf32>
    %201 = vector.shape_cast %200 : vector<8x8x8xf32> to vector<64x8xf32>
    %c0_71 = arith.constant 0 : index
    %c0_72 = arith.constant 0 : index
    %c0_73 = arith.constant 0 : index
    %c0_74 = arith.constant 0 : index
    %202 = vector.load %arg12[%c0_71, %c0_72, %c0_73, %c0_74] : memref<1x8x8x8xf32, #tpu.memory_space<vmem>>, vector<1x8x8x8xf32>
    %203 = vector.shape_cast %202 : vector<1x8x8x8xf32> to vector<8x8x8xf32>
    %204 = vector.shape_cast %203 : vector<8x8x8xf32> to vector<64x8xf32>
    %c0_75 = arith.constant 0 : index
    %c0_76 = arith.constant 0 : index
    %205 = vector.load %arg21[%c0_75, %c0_76] : memref<8x16xf32, #tpu.memory_space<vmem>>, vector<8x16xf32>
    %cst_77 = arith.constant dense<0.000000e+00> : vector<64x16xf32>
    %206 = tpu.matmul %201, %205, %cst_77 {dimension_numbers = #tpu.dot_dimension_numbers<[1], [0], [0], [1], [0, 0, 1, 1], [], []>} : vector<64x8xf32>, vector<8x16xf32>, vector<64x16xf32> -> vector<64x16xf32>
    %c0_78 = arith.constant 0 : index
    %c0_79 = arith.constant 0 : index
    %207 = vector.load %arg22[%c0_78, %c0_79] : memref<8x16xf32, #tpu.memory_space<vmem>>, vector<8x16xf32>
    %cst_80 = arith.constant dense<0.000000e+00> : vector<64x16xf32>
    %208 = tpu.matmul %204, %207, %cst_80 {dimension_numbers = #tpu.dot_dimension_numbers<[1], [0], [0], [1], [0, 0, 1, 1], [], []>} : vector<64x8xf32>, vector<8x16xf32>, vector<64x16xf32> -> vector<64x16xf32>
    %209 = arith.addf %206, %208 : vector<64x16xf32>
    %210 = vector.extract_strided_slice %198 {offsets = [0, 0], sizes = [64, 16], strides = [1, 1]} : vector<64x32xf32> to vector<64x16xf32>
    %211 = arith.addf %209, %210 : vector<64x16xf32>
    %212 = vector.shape_cast %211 : vector<64x16xf32> to vector<8x8x16xf32>
    %213 = vector.broadcast %21 : vector<8x8x1xf32> to vector<8x8x16xf32>
    %214 = arith.mulf %212, %213 : vector<8x8x16xf32>
    %c0_81 = arith.constant 0 : index
    %c0_82 = arith.constant 0 : index
    %c0_83 = arith.constant 0 : index
    %c0_84 = arith.constant 0 : index
    %215 = vector.load %arg25[%c0_81, %c0_82, %c0_83, %c0_84] : memref<1x8x8x16xf32, #tpu.memory_space<vmem>>, vector<1x8x8x16xf32>
    %216 = vector.shape_cast %215 : vector<1x8x8x16xf32> to vector<8x8x16xf32>
    %217 = vector.shape_cast %214 : vector<8x8x16xf32> to vector<1x8x8x16xf32>
    tpu.vector_store %arg25[%c0_81, %c0_82, %c0_83, %c0_84], %217 {strides = array<i32>} : memref<1x8x8x16xf32, #tpu.memory_space<vmem>>, vector<1x8x8x16xf32>,
    %c0_85 = arith.constant 0 : index
    %c0_86 = arith.constant 0 : index
    %c0_87 = arith.constant 0 : index
    %c0_88 = arith.constant 0 : index
    %218 = vector.load %arg13[%c0_85, %c0_86, %c0_87, %c0_88] : memref<1x8x8x8xf32, #tpu.memory_space<vmem>>, vector<1x8x8x8xf32>
    %219 = vector.shape_cast %218 : vector<1x8x8x8xf32> to vector<8x8x8xf32>
    %220 = vector.shape_cast %219 : vector<8x8x8xf32> to vector<64x8xf32>
    %c0_89 = arith.constant 0 : index
    %c0_90 = arith.constant 0 : index
    %c0_91 = arith.constant 0 : index
    %c0_92 = arith.constant 0 : index
    %221 = vector.load %arg14[%c0_89, %c0_90, %c0_91, %c0_92] : memref<1x8x8x8xf32, #tpu.memory_space<vmem>>, vector<1x8x8x8xf32>
    %222 = vector.shape_cast %221 : vector<1x8x8x8xf32> to vector<8x8x8xf32>
    %223 = vector.shape_cast %222 : vector<8x8x8xf32> to vector<64x8xf32>
    %c0_93 = arith.constant 0 : index
    %c0_94 = arith.constant 0 : index
    %224 = vector.load %arg23[%c0_93, %c0_94] : memref<8x16xf32, #tpu.memory_space<vmem>>, vector<8x16xf32>
    %cst_95 = arith.constant dense<0.000000e+00> : vector<64x16xf32>
    %225 = tpu.matmul %220, %224, %cst_95 {dimension_numbers = #tpu.dot_dimension_numbers<[1], [0], [0], [1], [0, 0, 1, 1], [], []>} : vector<64x8xf32>, vector<8x16xf32>, vector<64x16xf32> -> vector<64x16xf32>
    %c0_96 = arith.constant 0 : index
    %c0_97 = arith.constant 0 : index
    %226 = vector.load %arg24[%c0_96, %c0_97] : memref<8x16xf32, #tpu.memory_space<vmem>>, vector<8x16xf32>
    %cst_98 = arith.constant dense<0.000000e+00> : vector<64x16xf32>
    %227 = tpu.matmul %223, %226, %cst_98 {dimension_numbers = #tpu.dot_dimension_numbers<[1], [0], [0], [1], [0, 0, 1, 1], [], []>} : vector<64x8xf32>, vector<8x16xf32>, vector<64x16xf32> -> vector<64x16xf32>
    %228 = arith.addf %225, %227 : vector<64x16xf32>
    %229 = vector.extract_strided_slice %198 {offsets = [0, 16], sizes = [64, 16], strides = [1, 1]} : vector<64x32xf32> to vector<64x16xf32>
    %230 = arith.addf %228, %229 : vector<64x16xf32>
    %231 = vector.shape_cast %230 : vector<64x16xf32> to vector<8x8x16xf32>
    %232 = vector.broadcast %21 : vector<8x8x1xf32> to vector<8x8x16xf32>
    %233 = arith.mulf %231, %232 : vector<8x8x16xf32>
    %c0_99 = arith.constant 0 : index
    %c0_100 = arith.constant 0 : index
    %c0_101 = arith.constant 0 : index
    %c0_102 = arith.constant 0 : index
    %234 = vector.load %arg26[%c0_99, %c0_100, %c0_101, %c0_102] : memref<1x8x8x16xf32, #tpu.memory_space<vmem>>, vector<1x8x8x16xf32>
    %235 = vector.shape_cast %234 : vector<1x8x8x16xf32> to vector<8x8x16xf32>
    %236 = vector.shape_cast %233 : vector<8x8x16xf32> to vector<1x8x8x16xf32>
    tpu.vector_store %arg26[%c0_99, %c0_100, %c0_101, %c0_102], %236 {strides = array<i32>} : memref<1x8x8x16xf32, #tpu.memory_space<vmem>>, vector<1x8x8x16xf32>,
    return
  }
  func.func @transform_0(%arg0: i32, %arg1: i32, %arg2: i32) -> (i32, i32, i32, i32) {
    %c0_i32 = arith.constant 0 : i32
    %c0_i32_0 = arith.constant 0 : i32
    %c0_i32_1 = arith.constant 0 : i32
    return %arg0, %arg1, %c0_i32, %c0_i32_0 : i32, i32, i32, i32
  }
  func.func @transform_1(%arg0: i32, %arg1: i32, %arg2: i32) -> (i32, i32, i32, i32) {
    %c0_i32 = arith.constant 0 : i32
    %c0_i32_0 = arith.constant 0 : i32
    %c0_i32_1 = arith.constant 0 : i32
    return %arg0, %arg1, %c0_i32, %c0_i32_0 : i32, i32, i32, i32
  }
  func.func @transform_2(%arg0: i32, %arg1: i32, %arg2: i32) -> (i32, i32, i32, i32) {
    %c0_i32 = arith.constant 0 : i32
    %c0_i32_0 = arith.constant 0 : i32
    %c0_i32_1 = arith.constant 0 : i32
    return %arg0, %arg2, %c0_i32, %c0_i32_0 : i32, i32, i32, i32
  }
  func.func @transform_3(%arg0: i32, %arg1: i32, %arg2: i32) -> (i32, i32, i32, i32) {
    %c0_i32 = arith.constant 0 : i32
    %c0_i32_0 = arith.constant 0 : i32
    %c0_i32_1 = arith.constant 0 : i32
    return %arg0, %arg2, %c0_i32, %c0_i32_0 : i32, i32, i32, i32
  }
  func.func @transform_4(%arg0: i32, %arg1: i32, %arg2: i32) -> (i32, i32, i32, i32) {
    %c0_i32 = arith.constant 0 : i32
    %c0_i32_0 = arith.constant 0 : i32
    %c0_i32_1 = arith.constant 0 : i32
    return %arg0, %arg1, %c0_i32, %c0_i32_0 : i32, i32, i32, i32
  }
  func.func @transform_5(%arg0: i32, %arg1: i32, %arg2: i32) -> (i32, i32, i32, i32) {
    %c0_i32 = arith.constant 0 : i32
    %c0_i32_0 = arith.constant 0 : i32
    %c0_i32_1 = arith.constant 0 : i32
    return %arg0, %arg1, %c0_i32, %c0_i32_0 : i32, i32, i32, i32
  }
  func.func @transform_6(%arg0: i32, %arg1: i32, %arg2: i32) -> (i32, i32, i32, i32) {
    %c0_i32 = arith.constant 0 : i32
    %c0_i32_0 = arith.constant 0 : i32
    %c0_i32_1 = arith.constant 0 : i32
    return %arg0, %arg2, %c0_i32, %c0_i32_0 : i32, i32, i32, i32
  }
  func.func @transform_7(%arg0: i32, %arg1: i32, %arg2: i32) -> (i32, i32, i32, i32) {
    %c0_i32 = arith.constant 0 : i32
    %c0_i32_0 = arith.constant 0 : i32
    %c0_i32_1 = arith.constant 0 : i32
    return %arg0, %arg2, %c0_i32, %c0_i32_0 : i32, i32, i32, i32
  }
  func.func @transform_8(%arg0: i32, %arg1: i32, %arg2: i32) -> (i32, i32, i32, i32) {
    %c0_i32 = arith.constant 0 : i32
    %c0_i32_0 = arith.constant 0 : i32
    return %arg0, %arg1, %arg2, %c0_i32 : i32, i32, i32, i32
  }
  func.func @transform_9(%arg0: i32, %arg1: i32, %arg2: i32) -> (i32, i32, i32, i32) {
    %c0_i32 = arith.constant 0 : i32
    %c0_i32_0 = arith.constant 0 : i32
    return %arg0, %arg1, %arg2, %c0_i32 : i32, i32, i32, i32
  }
  func.func @transform_10(%arg0: i32, %arg1: i32, %arg2: i32) -> (i32, i32, i32, i32) {
    %c0_i32 = arith.constant 0 : i32
    %c0_i32_0 = arith.constant 0 : i32
    return %arg0, %arg1, %arg2, %c0_i32 : i32, i32, i32, i32
  }
  func.func @transform_11(%arg0: i32, %arg1: i32, %arg2: i32) -> (i32, i32, i32, i32) {
    %c0_i32 = arith.constant 0 : i32
    %c0_i32_0 = arith.constant 0 : i32
    return %arg0, %arg1, %arg2, %c0_i32 : i32, i32, i32, i32
  }
  func.func @transform_12(%arg0: i32, %arg1: i32, %arg2: i32) -> (i32, i32, i32) {
    %c0_i32 = arith.constant 0 : i32
    return %arg0, %arg1, %arg2 : i32, i32, i32
  }
  func.func @transform_13(%arg0: i32, %arg1: i32, %arg2: i32) -> (i32, i32, i32) {
    %c0_i32 = arith.constant 0 : i32
    return %arg0, %arg1, %arg2 : i32, i32, i32
  }
  func.func @transform_14(%arg0: i32, %arg1: i32, %arg2: i32) -> (i32, i32) {
    %c0_i32 = arith.constant 0 : i32
    %c0_i32_0 = arith.constant 0 : i32
    %c0_i32_1 = arith.constant 0 : i32
    return %c0_i32, %c0_i32_0 : i32, i32
  }
  func.func @transform_15(%arg0: i32, %arg1: i32, %arg2: i32) -> (i32, i32) {
    %c0_i32 = arith.constant 0 : i32
    %c0_i32_0 = arith.constant 0 : i32
    %c0_i32_1 = arith.constant 0 : i32
    return %c0_i32, %c0_i32_0 : i32, i32
  }
  func.func @transform_16(%arg0: i32, %arg1: i32, %arg2: i32) -> (i32, i32) {
    %c0_i32 = arith.constant 0 : i32
    %c0_i32_0 = arith.constant 0 : i32
    %c0_i32_1 = arith.constant 0 : i32
    return %c0_i32, %c0_i32_0 : i32, i32
  }
  func.func @transform_17(%arg0: i32, %arg1: i32, %arg2: i32) -> (i32, i32) {
    %c0_i32 = arith.constant 0 : i32
    %c0_i32_0 = arith.constant 0 : i32
    %c0_i32_1 = arith.constant 0 : i32
    return %c0_i32, %c0_i32_0 : i32, i32
  }
  func.func @transform_18(%arg0: i32, %arg1: i32, %arg2: i32) -> (i32, i32) {
    %c0_i32 = arith.constant 0 : i32
    %c0_i32_0 = arith.constant 0 : i32
    %c0_i32_1 = arith.constant 0 : i32
    return %c0_i32, %c0_i32_0 : i32, i32
  }
  func.func @transform_19(%arg0: i32, %arg1: i32, %arg2: i32) -> (i32, i32) {
    %c0_i32 = arith.constant 0 : i32
    %c0_i32_0 = arith.constant 0 : i32
    %c0_i32_1 = arith.constant 0 : i32
    return %c0_i32, %c0_i32_0 : i32, i32
  }
  func.func @transform_20(%arg0: i32, %arg1: i32, %arg2: i32) -> (i32, i32) {
    %c0_i32 = arith.constant 0 : i32
    %c0_i32_0 = arith.constant 0 : i32
    %c0_i32_1 = arith.constant 0 : i32
    return %c0_i32, %c0_i32_0 : i32, i32
  }
  func.func @transform_21(%arg0: i32, %arg1: i32, %arg2: i32) -> (i32, i32) {
    %c0_i32 = arith.constant 0 : i32
    %c0_i32_0 = arith.constant 0 : i32
    %c0_i32_1 = arith.constant 0 : i32
    return %c0_i32, %c0_i32_0 : i32, i32
  }
  func.func @transform_22(%arg0: i32, %arg1: i32, %arg2: i32) -> (i32, i32, i32, i32) {
    %c0_i32 = arith.constant 0 : i32
    %c0_i32_0 = arith.constant 0 : i32
    return %arg0, %arg1, %arg2, %c0_i32 : i32, i32, i32, i32
  }
  func.func @transform_23(%arg0: i32, %arg1: i32, %arg2: i32) -> (i32, i32, i32, i32) {
    %c0_i32 = arith.constant 0 : i32
    %c0_i32_0 = arith.constant 0 : i32
    return %arg0, %arg1, %arg2, %c0_i32 : i32, i32, i32, i32
  }
}

</mosaic_0001>

<llo_original>
// kernel: tpu_custom_call.1
$region0: #{tpu_custom_call.1}
  #allocation0 [shape = 'u32[]', space=smem, size = 0x4, offset = 0x4, fixed_abs, tag = 'smem constant byte address 0x4 - core index']
  #allocation1 [shape = 'u32[72,128]{1,0:T(1,128)}', space=vmem, size = 0x9000, scoped, tag = 'internal scratch']
  %s0 = inlined_call_operand.vmem [shape: f32[2,8,1,4], index: 0, kind: input, shape index: {}]
  %s1 = inlined_call_operand.vmem [shape: f32[2,8,1,4], index: 1, kind: input, shape index: {}]
  %s2 = inlined_call_operand.vmem [shape: f32[2,8,1,4], index: 2, kind: input, shape index: {}]
  %s3 = inlined_call_operand.vmem [shape: f32[2,8,1,4], index: 3, kind: input, shape index: {}]
  %s4 = inlined_call_operand.vmem [shape: f32[2,8,3,4], index: 4, kind: input, shape index: {}]
  %s5 = inlined_call_operand.vmem [shape: f32[2,8,3,4], index: 5, kind: input, shape index: {}]
  %s6 = inlined_call_operand.vmem [shape: f32[2,8,3,4], index: 6, kind: input, shape index: {}]
  %s7 = inlined_call_operand.vmem [shape: f32[2,8,3,4], index: 7, kind: input, shape index: {}]
  %s8 = inlined_call_operand.vmem [shape: f32[2,8,8,8], index: 8, kind: input, shape index: {}]
  %s9 = inlined_call_operand.hbm [shape: f32[2,8,8,8], index: 9, kind: input, shape index: {}]
  %s10 = inlined_call_operand.hbm [shape: f32[2,8,8,8], index: 10, kind: input, shape index: {}]
  %s11 = inlined_call_operand.hbm [shape: f32[2,8,8,8], index: 11, kind: input, shape index: {}]
  %s12 = inlined_call_operand.vmem [shape: f32[2,8,8], index: 12, kind: input, shape index: {}]
  %s13 = inlined_call_operand.vmem [shape: f32[2,8,8], index: 13, kind: input, shape index: {}]
  %s14 = inlined_call_operand.vmem [shape: f32[4,32], index: 14, kind: input, shape index: {}]
  %s15 = inlined_call_operand.vmem [shape: f32[4,32], index: 15, kind: input, shape index: {}]
  %s16 = inlined_call_operand.vmem [shape: f32[4,32], index: 16, kind: input, shape index: {}]
  %s17 = inlined_call_operand.vmem [shape: f32[4,32], index: 17, kind: input, shape index: {}]
  %s18 = inlined_call_operand.vmem [shape: f32[8,16], index: 18, kind: input, shape index: {}]
  %s19 = inlined_call_operand.vmem [shape: f32[8,16], index: 19, kind: input, shape index: {}]
  %s20 = inlined_call_operand.vmem [shape: f32[8,16], index: 20, kind: input, shape index: {}]
  %s21 = inlined_call_operand.vmem [shape: f32[8,16], index: 21, kind: input, shape index: {}]
  %s22 = inlined_call_operand.hbm [shape: f32[2,8,8,16], index: 22, kind: output, shape index: {0}]
  %s23 = inlined_call_operand.hbm [shape: f32[2,8,8,16], index: 23, kind: output, shape index: {1}]
  %24 = xla_tuple %s22, %s23
  %s25 = sld [smem:[#allocation0]]
  $region141: #{tpu_custom_call.1} parent=0
    _
  %s27 = ssub.s32 1, %s25
  %s28 = scalar_select 0, %s27, %s25
  $region1: #{tpu_custom_call.1} parent=0
    #allocation2 [shape = 'u8[65536]{0}', space=vmem, size = 0x10000, scoped, tag = 'input window, operand 9']
    #allocation3 [shape = 's32[2]{0}', space=sflag, size = 0x8, scoped, tag = 'scoped memory for tpu_custom_call.1']
    #allocation4 [shape = 's32[2]{0}', space=sflag, size = 0x8, scoped, tag = 'scoped memory for tpu_custom_call.1']
    #allocation5 [shape = 'u8[65536]{0}', space=vmem, size = 0x10000, scoped, tag = 'input window, operand 10']
    #allocation6 [shape = 's32[2]{0}', space=sflag, size = 0x8, scoped, tag = 'scoped memory for tpu_custom_call.1']
    #allocation7 [shape = 'u8[65536]{0}', space=vmem, size = 0x10000, scoped, tag = 'input window, operand 11']
    #allocation8 [shape = 'u8[65536]{0}', space=vmem, size = 0x10000, scoped, tag = 'output window, operand 0']
    #allocation9 [shape = 'u8[65536]{0}', space=vmem, size = 0x10000, scoped, tag = 'output window, operand 1']
    #allocation10 [shape = 's32[2]{0}', space=sflag, size = 0x8, scoped, tag = 'scoped memory for tpu_custom_call.1']
    %29 = vsyncpa [#allocation3], 0
    %s30 = scalar_lea.sflag [#allocation3], 1
    %31 = vsyncpa %s30, 0
    %32 = vsyncpa [#allocation6], 0
    %s33 = scalar_lea.sflag [#allocation6], 1
    %34 = vsyncpa %s33, 0
    %35 = vsyncpa [#allocation4], 0
    %s36 = scalar_lea.sflag [#allocation4], 1
    %37 = vsyncpa %s36, 0
    %38 = vsyncpa [#allocation10], 0
    %s39 = scalar_lea.sflag [#allocation10], 1
    %40 = vsyncpa %s39, 0
    loop: start=0, step=1, limit=4
    $region2: #{tpu_custom_call.1} parent=1 // loop_pre_header
      _
    $region3: #{tpu_custom_call.1} parent=1 // loop_header
      %s42 = sphi 0, %s46
      %p43 = scmp.ge.s32.totalorder %s42, 4
      %s49 = sphi 0, %s68
      %s50 = sphi 0, %s64
      %s51 = sphi 0, %s60
      %s52 = sphi 0, %s49
      %s53 = sphi 0, %s50
      %s54 = sphi 0, %s51
      %s55 = sphi 0, %s52
      %s56 = sphi 0, %s53
      %s57 = sphi 0, %s54
      %s73 = sphi 0, %s75
      %s76 = sphi 0, %s73
      %s77 = sphi 0, %s76
      %s93 = sphi 0, %s77
      %s101 = sphi 0, %s103
      %s104 = sphi 0, %s101
      %s105 = sphi 0, %s104
      %s121 = sphi 0, %s105
      %s129 = sphi 0, %s131
      %s132 = sphi 0, %s129
      %s133 = sphi 0, %s132
      %s149 = sphi 0, %s133
      %s157 = sphi 0, %s159
      %s160 = sphi 0, %s157
      %s161 = sphi 0, %s160
      %s177 = sphi 0, %s161
      %s185 = sphi 0, %s187
      %s188 = sphi 0, %s185
      %s189 = sphi 0, %s188
      %s205 = sphi 0, %s189
      %s213 = sphi 0, %s215
      %s216 = sphi 0, %s213
      %s217 = sphi 0, %s216
      %s233 = sphi 0, %s217
      %s241 = sphi 0, %s243
      %s244 = sphi 0, %s241
      %s245 = sphi 0, %s244
      %s261 = sphi 0, %s245
      %s269 = sphi 0, %s271
      %s272 = sphi 0, %s269
      %s273 = sphi 0, %s272
      %s289 = sphi 0, %s273
      %s299 = sphi 0, %s301
      %s302 = sphi 0, %s299
      %s303 = sphi 0, %s302
      %s319 = sphi 0, %s303
      %s329 = sphi 0, %s331
      %s332 = sphi 0, %s329
      %s333 = sphi 0, %s332
      %s349 = sphi 0, %s333
      %s359 = sphi 0, %s361
      %s362 = sphi 0, %s359
      %s363 = sphi 0, %s362
      %s379 = sphi 0, %s363
      %s389 = sphi 0, %s391
      %s392 = sphi 0, %s389
      %s393 = sphi 0, %s392
      %s409 = sphi 0, %s393
      %s419 = sphi 0, %s421
      %s422 = sphi 0, %s419
      %s423 = sphi 0, %s422
      %s439 = sphi 0, %s423
      %s449 = sphi 0, %s451
      %s452 = sphi 0, %s449
      %s453 = sphi 0, %s452
      %s469 = sphi 0, %s453
      %s473 = sphi 0, %s473
      %s475 = sphi 0, %s473
      %s476 = sphi 0, %s475
      %s490 = sphi 0, %s476
      %s494 = sphi 0, %s494
      %s496 = sphi 0, %s494
      %s497 = sphi 0, %s496
      %s511 = sphi 0, %s497
      %s515 = sphi 0, %s515
      %s517 = sphi 0, %s515
      %s518 = sphi 0, %s517
      %s532 = sphi 0, %s518
      %s536 = sphi 0, %s536
      %s538 = sphi 0, %s536
      %s539 = sphi 0, %s538
      %s553 = sphi 0, %s539
      %s557 = sphi 0, %s557
      %s559 = sphi 0, %s557
      %s560 = sphi 0, %s559
      %s574 = sphi 0, %s560
      %s578 = sphi 0, %s578
      %s580 = sphi 0, %s578
      %s581 = sphi 0, %s580
      %s595 = sphi 0, %s581
      %s599 = sphi 0, %s599
      %s601 = sphi 0, %s599
      %s602 = sphi 0, %s601
      %s616 = sphi 0, %s602
      %s620 = sphi 0, %s620
      %s622 = sphi 0, %s620
      %s623 = sphi 0, %s622
      %s637 = sphi 0, %s623
      %s647 = sphi 0, %s649
      %s650 = sphi 0, %s647
      %s651 = sphi 0, %s650
      %s667 = sphi 0, %s651
      %s677 = sphi 0, %s679
      %s680 = sphi 0, %s677
      %s681 = sphi 0, %s680
      %s697 = sphi 0, %s681
    $region4: #{tpu_custom_call.1} parent=1 // loop_header_branch
      %45 = sbr.rel (%p43) target = $region8
    $region5: #{tpu_custom_call.1} parent=1 // loop_body
      %s47 = ssub.s32 %s42, 1
      %s48 = ssub.s32 %s42, 2
      %s58 = sadd.s32 1, %s51
      %p59 = scmp.ge.s32.totalorder %s58, 1
      %s60 = scalar_select %p59, 0, %s58
      %s61 = sadd.s32 1, %s50
      %s62 = scalar_select %p59, %s61, %s50
      %p63 = scmp.ge.s32.totalorder %s62, 1
      %s64 = scalar_select %p63, 0, %s62
      %s65 = sadd.s32 1, %s49
      %s66 = scalar_select %p63, %s65, %s49
      %p67 = scmp.ge.s32.totalorder %s66, 2
      %s68 = scalar_select %p67, 0, %s66
      %s69 = ssub.s32 %s49, %s68
      %s70 = ssub.s32 %s50, %s64
      %s71 = sor.u32 %s69, %s70
      %p72 = scmp.eq.s32.totalorder %s71, 0
      %s74 = sadd.s32 %s73, 1
      %s75 = scalar_select %p72, %s73, %s74
      %p78 = pneg %p72
      %p79 = scmp.eq.s32.totalorder %s42, 1
      %p80 = por %p78, %p79
      %p81 = scmp.ne.s32.totalorder %s73, %s76
      %p82 = scmp.eq.s32.totalorder %s42, 0
      %p83 = por %p81, %p82
      %p84 = scmp.ne.s32.totalorder %s73, %s76
      %p85 = scmp.eq.s32.totalorder %s47, 1
      %p86 = por %p84, %p85
      %p87 = scmp.ne.s32.totalorder %s76, %s77
      %p88 = scmp.eq.s32.totalorder %s47, 0
      %p89 = por %p87, %p88
      %p90 = scmp.ne.s32.totalorder %s76, %s77
      %p91 = scmp.eq.s32.totalorder %s48, 1
      %p92 = por %p90, %p91
      %p94 = scmp.ne.s32.totalorder %s77, %s93
      %p95 = scmp.eq.s32.totalorder %s48, 0
      %p96 = por %p94, %p95
      %s97 = ssub.s32 %s49, %s68
      %s98 = ssub.s32 %s50, %s64
      %s99 = sor.u32 %s97, %s98
      %p100 = scmp.eq.s32.totalorder %s99, 0
      %s102 = sadd.s32 %s101, 1
      %s103 = scalar_select %p100, %s101, %s102
      %p106 = pneg %p100
      %p107 = scmp.eq.s32.totalorder %s42, 1
      %p108 = por %p106, %p107
      %p109 = scmp.ne.s32.totalorder %s101, %s104
      %p110 = scmp.eq.s32.totalorder %s42, 0
      %p111 = por %p109, %p110
      %p112 = scmp.ne.s32.totalorder %s101, %s104
      %p113 = scmp.eq.s32.totalorder %s47, 1
      %p114 = por %p112, %p113
      %p115 = scmp.ne.s32.totalorder %s104, %s105
      %p116 = scmp.eq.s32.totalorder %s47, 0
      %p117 = por %p115, %p116
      %p118 = scmp.ne.s32.totalorder %s104, %s105
      %p119 = scmp.eq.s32.totalorder %s48, 1
      %p120 = por %p118, %p119
      %p122 = scmp.ne.s32.totalorder %s105, %s121
      %p123 = scmp.eq.s32.totalorder %s48, 0
      %p124 = por %p122, %p123
      %s125 = ssub.s32 %s49, %s68
      %s126 = ssub.s32 %s51, %s60
      %s127 = sor.u32 %s125, %s126
      %p128 = scmp.eq.s32.totalorder %s127, 0
      %s130 = sadd.s32 %s129, 1
      %s131 = scalar_select %p128, %s129, %s130
      %p134 = pneg %p128
      %p135 = scmp.eq.s32.totalorder %s42, 1
      %p136 = por %p134, %p135
      %p137 = scmp.ne.s32.totalorder %s129, %s132
      %p138 = scmp.eq.s32.totalorder %s42, 0
      %p139 = por %p137, %p138
      %p140 = scmp.ne.s32.totalorder %s129, %s132
      %p141 = scmp.eq.s32.totalorder %s47, 1
      %p142 = por %p140, %p141
      %p143 = scmp.ne.s32.totalorder %s132, %s133
      %p144 = scmp.eq.s32.totalorder %s47, 0
      %p145 = por %p143, %p144
      %p146 = scmp.ne.s32.totalorder %s132, %s133
      %p147 = scmp.eq.s32.totalorder %s48, 1
      %p148 = por %p146, %p147
      %p150 = scmp.ne.s32.totalorder %s133, %s149
      %p151 = scmp.eq.s32.totalorder %s48, 0
      %p152 = por %p150, %p151
      %s153 = ssub.s32 %s49, %s68
      %s154 = ssub.s32 %s51, %s60
      %s155 = sor.u32 %s153, %s154
      %p156 = scmp.eq.s32.totalorder %s155, 0
      %s158 = sadd.s32 %s157, 1
      %s159 = scalar_select %p156, %s157, %s158
      %p162 = pneg %p156
      %p163 = scmp.eq.s32.totalorder %s42, 1
      %p164 = por %p162, %p163
      %p165 = scmp.ne.s32.totalorder %s157, %s160
      %p166 = scmp.eq.s32.totalorder %s42, 0
      %p167 = por %p165, %p166
      %p168 = scmp.ne.s32.totalorder %s157, %s160
      %p169 = scmp.eq.s32.totalorder %s47, 1
      %p170 = por %p168, %p169
      %p171 = scmp.ne.s32.totalorder %s160, %s161
      %p172 = scmp.eq.s32.totalorder %s47, 0
      %p173 = por %p171, %p172
      %p174 = scmp.ne.s32.totalorder %s160, %s161
      %p175 = scmp.eq.s32.totalorder %s48, 1
      %p176 = por %p174, %p175
      %p178 = scmp.ne.s32.totalorder %s161, %s177
      %p179 = scmp.eq.s32.totalorder %s48, 0
      %p180 = por %p178, %p179
      %s181 = ssub.s32 %s49, %s68
      %s182 = ssub.s32 %s50, %s64
      %s183 = sor.u32 %s181, %s182
      %p184 = scmp.eq.s32.totalorder %s183, 0
      %s186 = sadd.s32 %s185, 1
      %s187 = scalar_select %p184, %s185, %s186
      %p190 = pneg %p184
      %p191 = scmp.eq.s32.totalorder %s42, 1
      %p192 = por %p190, %p191
      %p193 = scmp.ne.s32.totalorder %s185, %s188
      %p194 = scmp.eq.s32.totalorder %s42, 0
      %p195 = por %p193, %p194
      %p196 = scmp.ne.s32.totalorder %s185, %s188
      %p197 = scmp.eq.s32.totalorder %s47, 1
      %p198 = por %p196, %p197
      %p199 = scmp.ne.s32.totalorder %s188, %s189
      %p200 = scmp.eq.s32.totalorder %s47, 0
      %p201 = por %p199, %p200
      %p202 = scmp.ne.s32.totalorder %s188, %s189
      %p203 = scmp.eq.s32.totalorder %s48, 1
      %p204 = por %p202, %p203
      %p206 = scmp.ne.s32.totalorder %s189, %s205
      %p207 = scmp.eq.s32.totalorder %s48, 0
      %p208 = por %p206, %p207
      %s209 = ssub.s32 %s49, %s68
      %s210 = ssub.s32 %s50, %s64
      %s211 = sor.u32 %s209, %s210
      %p212 = scmp.eq.s32.totalorder %s211, 0
      %s214 = sadd.s32 %s213, 1
      %s215 = scalar_select %p212, %s213, %s214
      %p218 = pneg %p212
      %p219 = scmp.eq.s32.totalorder %s42, 1
      %p220 = por %p218, %p219
      %p221 = scmp.ne.s32.totalorder %s213, %s216
      %p222 = scmp.eq.s32.totalorder %s42, 0
      %p223 = por %p221, %p222
      %p224 = scmp.ne.s32.totalorder %s213, %s216
      %p225 = scmp.eq.s32.totalorder %s47, 1
      %p226 = por %p224, %p225
      %p227 = scmp.ne.s32.totalorder %s216, %s217
      %p228 = scmp.eq.s32.totalorder %s47, 0
      %p229 = por %p227, %p228
      %p230 = scmp.ne.s32.totalorder %s216, %s217
      %p231 = scmp.eq.s32.totalorder %s48, 1
      %p232 = por %p230, %p231
      %p234 = scmp.ne.s32.totalorder %s217, %s233
      %p235 = scmp.eq.s32.totalorder %s48, 0
      %p236 = por %p234, %p235
      %s237 = ssub.s32 %s49, %s68
      %s238 = ssub.s32 %s51, %s60
      %s239 = sor.u32 %s237, %s238
      %p240 = scmp.eq.s32.totalorder %s239, 0
      %s242 = sadd.s32 %s241, 1
      %s243 = scalar_select %p240, %s241, %s242
      %p246 = pneg %p240
      %p247 = scmp.eq.s32.totalorder %s42, 1
      %p248 = por %p246, %p247
      %p249 = scmp.ne.s32.totalorder %s241, %s244
      %p250 = scmp.eq.s32.totalorder %s42, 0
      %p251 = por %p249, %p250
      %p252 = scmp.ne.s32.totalorder %s241, %s244
      %p253 = scmp.eq.s32.totalorder %s47, 1
      %p254 = por %p252, %p253
      %p255 = scmp.ne.s32.totalorder %s244, %s245
      %p256 = scmp.eq.s32.totalorder %s47, 0
      %p257 = por %p255, %p256
      %p258 = scmp.ne.s32.totalorder %s244, %s245
      %p259 = scmp.eq.s32.totalorder %s48, 1
      %p260 = por %p258, %p259
      %p262 = scmp.ne.s32.totalorder %s245, %s261
      %p263 = scmp.eq.s32.totalorder %s48, 0
      %p264 = por %p262, %p263
      %s265 = ssub.s32 %s49, %s68
      %s266 = ssub.s32 %s51, %s60
      %s267 = sor.u32 %s265, %s266
      %p268 = scmp.eq.s32.totalorder %s267, 0
      %s270 = sadd.s32 %s269, 1
      %s271 = scalar_select %p268, %s269, %s270
      %p274 = pneg %p268
      %p275 = scmp.eq.s32.totalorder %s42, 1
      %p276 = por %p274, %p275
      %p277 = scmp.ne.s32.totalorder %s269, %s272
      %p278 = scmp.eq.s32.totalorder %s42, 0
      %p279 = por %p277, %p278
      %p280 = scmp.ne.s32.totalorder %s269, %s272
      %p281 = scmp.eq.s32.totalorder %s47, 1
      %p282 = por %p280, %p281
      %p283 = scmp.ne.s32.totalorder %s272, %s273
      %p284 = scmp.eq.s32.totalorder %s47, 0
      %p285 = por %p283, %p284
      %p286 = scmp.ne.s32.totalorder %s272, %s273
      %p287 = scmp.eq.s32.totalorder %s48, 1
      %p288 = por %p286, %p287
      %p290 = scmp.ne.s32.totalorder %s273, %s289
      %p291 = scmp.eq.s32.totalorder %s48, 0
      %p292 = por %p290, %p291
      %s293 = ssub.s32 %s49, %s68
      %s294 = ssub.s32 %s50, %s64
      %s295 = sor.u32 %s293, %s294
      %s296 = ssub.s32 %s51, %s60
      %s297 = sor.u32 %s295, %s296
      %p298 = scmp.eq.s32.totalorder %s297, 0
      %s300 = sadd.s32 %s299, 1
      %s301 = scalar_select %p298, %s299, %s300
      %p304 = pneg %p298
      %p305 = scmp.eq.s32.totalorder %s42, 1
      %p306 = por %p304, %p305
      %p307 = scmp.ne.s32.totalorder %s299, %s302
      %p308 = scmp.eq.s32.totalorder %s42, 0
      %p309 = por %p307, %p308
      %p310 = scmp.ne.s32.totalorder %s299, %s302
      %p311 = scmp.eq.s32.totalorder %s47, 1
      %p312 = por %p310, %p311
      %p313 = scmp.ne.s32.totalorder %s302, %s303
      %p314 = scmp.eq.s32.totalorder %s47, 0
      %p315 = por %p313, %p314
      %p316 = scmp.ne.s32.totalorder %s302, %s303
      %p317 = scmp.eq.s32.totalorder %s48, 1
      %p318 = por %p316, %p317
      %p320 = scmp.ne.s32.totalorder %s303, %s319
      %p321 = scmp.eq.s32.totalorder %s48, 0
      %p322 = por %p320, %p321
      %s323 = ssub.s32 %s49, %s68
      %s324 = ssub.s32 %s50, %s64
      %s325 = sor.u32 %s323, %s324
      %s326 = ssub.s32 %s51, %s60
      %s327 = sor.u32 %s325, %s326
      %p328 = scmp.eq.s32.totalorder %s327, 0
      %s330 = sadd.s32 %s329, 1
      %s331 = scalar_select %p328, %s329, %s330
      %p334 = pneg %p328
      %p335 = scmp.eq.s32.totalorder %s42, 1
      %p336 = por %p334, %p335
      %p337 = scmp.ne.s32.totalorder %s329, %s332
      %p338 = scmp.eq.s32.totalorder %s42, 0
      %p339 = por %p337, %p338
      %p340 = scmp.ne.s32.totalorder %s329, %s332
      %p341 = scmp.eq.s32.totalorder %s47, 1
      %p342 = por %p340, %p341
      %p343 = scmp.ne.s32.totalorder %s332, %s333
      %p344 = scmp.eq.s32.totalorder %s47, 0
      %p345 = por %p343, %p344
      %p346 = scmp.ne.s32.totalorder %s332, %s333
      %p347 = scmp.eq.s32.totalorder %s48, 1
      %p348 = por %p346, %p347
      %p350 = scmp.ne.s32.totalorder %s333, %s349
      %p351 = scmp.eq.s32.totalorder %s48, 0
      %p352 = por %p350, %p351
      %s353 = ssub.s32 %s49, %s68
      %s354 = ssub.s32 %s50, %s64
      %s355 = sor.u32 %s353, %s354
      %s356 = ssub.s32 %s51, %s60
      %s357 = sor.u32 %s355, %s356
      %p358 = scmp.eq.s32.totalorder %s357, 0
      %s360 = sadd.s32 %s359, 1
      %s361 = scalar_select %p358, %s359, %s360
      %p364 = pneg %p358
      %p365 = scmp.eq.s32.totalorder %s42, 1
      %p366 = por %p364, %p365
      %p367 = scmp.ne.s32.totalorder %s359, %s362
      %p368 = scmp.eq.s32.totalorder %s42, 0
      %p369 = por %p367, %p368
      %p370 = scmp.ne.s32.totalorder %s359, %s362
      %p371 = scmp.eq.s32.totalorder %s47, 1
      %p372 = por %p370, %p371
      %p373 = scmp.ne.s32.totalorder %s362, %s363
      %p374 = scmp.eq.s32.totalorder %s47, 0
      %p375 = por %p373, %p374
      %p376 = scmp.ne.s32.totalorder %s362, %s363
      %p377 = scmp.eq.s32.totalorder %s48, 1
      %p378 = por %p376, %p377
      %p380 = scmp.ne.s32.totalorder %s363, %s379
      %p381 = scmp.eq.s32.totalorder %s48, 0
      %p382 = por %p380, %p381
      %s383 = ssub.s32 %s49, %s68
      %s384 = ssub.s32 %s50, %s64
      %s385 = sor.u32 %s383, %s384
      %s386 = ssub.s32 %s51, %s60
      %s387 = sor.u32 %s385, %s386
      %p388 = scmp.eq.s32.totalorder %s387, 0
      %s390 = sadd.s32 %s389, 1
      %s391 = scalar_select %p388, %s389, %s390
      %p394 = pneg %p388
      %p395 = scmp.eq.s32.totalorder %s42, 1
      %p396 = por %p394, %p395
      %p397 = scmp.ne.s32.totalorder %s389, %s392
      %p398 = scmp.eq.s32.totalorder %s42, 0
      %p399 = por %p397, %p398
      %p400 = scmp.ne.s32.totalorder %s389, %s392
      %p401 = scmp.eq.s32.totalorder %s47, 1
      %p402 = por %p400, %p401
      %p403 = scmp.ne.s32.totalorder %s392, %s393
      %p404 = scmp.eq.s32.totalorder %s47, 0
      %p405 = por %p403, %p404
      %p406 = scmp.ne.s32.totalorder %s392, %s393
      %p407 = scmp.eq.s32.totalorder %s48, 1
      %p408 = por %p406, %p407
      %p410 = scmp.ne.s32.totalorder %s393, %s409
      %p411 = scmp.eq.s32.totalorder %s48, 0
      %p412 = por %p410, %p411
      %s413 = ssub.s32 %s49, %s68
      %s414 = ssub.s32 %s50, %s64
      %s415 = sor.u32 %s413, %s414
      %s416 = ssub.s32 %s51, %s60
      %s417 = sor.u32 %s415, %s416
      %p418 = scmp.eq.s32.totalorder %s417, 0
      %s420 = sadd.s32 %s419, 1
      %s421 = scalar_select %p418, %s419, %s420
      %p424 = pneg %p418
      %p425 = scmp.eq.s32.totalorder %s42, 1
      %p426 = por %p424, %p425
      %p427 = scmp.ne.s32.totalorder %s419, %s422
      %p428 = scmp.eq.s32.totalorder %s42, 0
      %p429 = por %p427, %p428
      %p430 = scmp.ne.s32.totalorder %s419, %s422
      %p431 = scmp.eq.s32.totalorder %s47, 1
      %p432 = por %p430, %p431
      %p433 = scmp.ne.s32.totalorder %s422, %s423
      %p434 = scmp.eq.s32.totalorder %s47, 0
      %p435 = por %p433, %p434
      %p436 = scmp.ne.s32.totalorder %s422, %s423
      %p437 = scmp.eq.s32.totalorder %s48, 1
      %p438 = por %p436, %p437
      %p440 = scmp.ne.s32.totalorder %s423, %s439
      %p441 = scmp.eq.s32.totalorder %s48, 0
      %p442 = por %p440, %p441
      %s443 = ssub.s32 %s49, %s68
      %s444 = ssub.s32 %s50, %s64
      %s445 = sor.u32 %s443, %s444
      %s446 = ssub.s32 %s51, %s60
      %s447 = sor.u32 %s445, %s446
      %p448 = scmp.eq.s32.totalorder %s447, 0
      %s450 = sadd.s32 %s449, 1
      %s451 = scalar_select %p448, %s449, %s450
      %p454 = pneg %p448
      %p455 = scmp.eq.s32.totalorder %s42, 1
      %p456 = por %p454, %p455
      %p457 = scmp.ne.s32.totalorder %s449, %s452
      %p458 = scmp.eq.s32.totalorder %s42, 0
      %p459 = por %p457, %p458
      %p460 = scmp.ne.s32.totalorder %s449, %s452
      %p461 = scmp.eq.s32.totalorder %s47, 1
      %p462 = por %p460, %p461
      %p463 = scmp.ne.s32.totalorder %s452, %s453
      %p464 = scmp.eq.s32.totalorder %s47, 0
      %p465 = por %p463, %p464
      %p466 = scmp.ne.s32.totalorder %s452, %s453
      %p467 = scmp.eq.s32.totalorder %s48, 1
      %p468 = por %p466, %p467
      %p470 = scmp.ne.s32.totalorder %s453, %s469
      %p471 = scmp.eq.s32.totalorder %s48, 0
      %p472 = por %p470, %p471
      %s474 = sadd.s32 %s473, 1
      %p477 = scmp.eq.s32.totalorder %s42, 1
      %p478 = scmp.ne.s32.totalorder %s473, %s475
      %p479 = scmp.eq.s32.totalorder %s42, 0
      %p480 = por %p478, %p479
      %p481 = scmp.ne.s32.totalorder %s473, %s475
      %p482 = scmp.eq.s32.totalorder %s47, 1
      %p483 = por %p481, %p482
      %p484 = scmp.ne.s32.totalorder %s475, %s476
      %p485 = scmp.eq.s32.totalorder %s47, 0
      %p486 = por %p484, %p485
      %p487 = scmp.ne.s32.totalorder %s475, %s476
      %p488 = scmp.eq.s32.totalorder %s48, 1
      %p489 = por %p487, %p488
      %p491 = scmp.ne.s32.totalorder %s476, %s490
      %p492 = scmp.eq.s32.totalorder %s48, 0
      %p493 = por %p491, %p492
      %s495 = sadd.s32 %s494, 1
      %p498 = scmp.eq.s32.totalorder %s42, 1
      %p499 = scmp.ne.s32.totalorder %s494, %s496
      %p500 = scmp.eq.s32.totalorder %s42, 0
      %p501 = por %p499, %p500
      %p502 = scmp.ne.s32.totalorder %s494, %s496
      %p503 = scmp.eq.s32.totalorder %s47, 1
      %p504 = por %p502, %p503
      %p505 = scmp.ne.s32.totalorder %s496, %s497
      %p506 = scmp.eq.s32.totalorder %s47, 0
      %p507 = por %p505, %p506
      %p508 = scmp.ne.s32.totalorder %s496, %s497
      %p509 = scmp.eq.s32.totalorder %s48, 1
      %p510 = por %p508, %p509
      %p512 = scmp.ne.s32.totalorder %s497, %s511
      %p513 = scmp.eq.s32.totalorder %s48, 0
      %p514 = por %p512, %p513
      %s516 = sadd.s32 %s515, 1
      %p519 = scmp.eq.s32.totalorder %s42, 1
      %p520 = scmp.ne.s32.totalorder %s515, %s517
      %p521 = scmp.eq.s32.totalorder %s42, 0
      %p522 = por %p520, %p521
      %p523 = scmp.ne.s32.totalorder %s515, %s517
      %p524 = scmp.eq.s32.totalorder %s47, 1
      %p525 = por %p523, %p524
      %p526 = scmp.ne.s32.totalorder %s517, %s518
      %p527 = scmp.eq.s32.totalorder %s47, 0
      %p528 = por %p526, %p527
      %p529 = scmp.ne.s32.totalorder %s517, %s518
      %p530 = scmp.eq.s32.totalorder %s48, 1
      %p531 = por %p529, %p530
      %p533 = scmp.ne.s32.totalorder %s518, %s532
      %p534 = scmp.eq.s32.totalorder %s48, 0
      %p535 = por %p533, %p534
      %s537 = sadd.s32 %s536, 1
      %p540 = scmp.eq.s32.totalorder %s42, 1
      %p541 = scmp.ne.s32.totalorder %s536, %s538
      %p542 = scmp.eq.s32.totalorder %s42, 0
      %p543 = por %p541, %p542
      %p544 = scmp.ne.s32.totalorder %s536, %s538
      %p545 = scmp.eq.s32.totalorder %s47, 1
      %p546 = por %p544, %p545
      %p547 = scmp.ne.s32.totalorder %s538, %s539
      %p548 = scmp.eq.s32.totalorder %s47, 0
      %p549 = por %p547, %p548
      %p550 = scmp.ne.s32.totalorder %s538, %s539
      %p551 = scmp.eq.s32.totalorder %s48, 1
      %p552 = por %p550, %p551
      %p554 = scmp.ne.s32.totalorder %s539, %s553
      %p555 = scmp.eq.s32.totalorder %s48, 0
      %p556 = por %p554, %p555
      %s558 = sadd.s32 %s557, 1
      %p561 = scmp.eq.s32.totalorder %s42, 1
      %p562 = scmp.ne.s32.totalorder %s557, %s559
      %p563 = scmp.eq.s32.totalorder %s42, 0
      %p564 = por %p562, %p563
      %p565 = scmp.ne.s32.totalorder %s557, %s559
      %p566 = scmp.eq.s32.totalorder %s47, 1
      %p567 = por %p565, %p566
      %p568 = scmp.ne.s32.totalorder %s559, %s560
      %p569 = scmp.eq.s32.totalorder %s47, 0
      %p570 = por %p568, %p569
      %p571 = scmp.ne.s32.totalorder %s559, %s560
      %p572 = scmp.eq.s32.totalorder %s48, 1
      %p573 = por %p571, %p572
      %p575 = scmp.ne.s32.totalorder %s560, %s574
      %p576 = scmp.eq.s32.totalorder %s48, 0
      %p577 = por %p575, %p576
      %s579 = sadd.s32 %s578, 1
      %p582 = scmp.eq.s32.totalorder %s42, 1
      %p583 = scmp.ne.s32.totalorder %s578, %s580
      %p584 = scmp.eq.s32.totalorder %s42, 0
      %p585 = por %p583, %p584
      %p586 = scmp.ne.s32.totalorder %s578, %s580
      %p587 = scmp.eq.s32.totalorder %s47, 1
      %p588 = por %p586, %p587
      %p589 = scmp.ne.s32.totalorder %s580, %s581
      %p590 = scmp.eq.s32.totalorder %s47, 0
      %p591 = por %p589, %p590
      %p592 = scmp.ne.s32.totalorder %s580, %s581
      %p593 = scmp.eq.s32.totalorder %s48, 1
      %p594 = por %p592, %p593
      %p596 = scmp.ne.s32.totalorder %s581, %s595
      %p597 = scmp.eq.s32.totalorder %s48, 0
      %p598 = por %p596, %p597
      %s600 = sadd.s32 %s599, 1
      %p603 = scmp.eq.s32.totalorder %s42, 1
      %p604 = scmp.ne.s32.totalorder %s599, %s601
      %p605 = scmp.eq.s32.totalorder %s42, 0
      %p606 = por %p604, %p605
      %p607 = scmp.ne.s32.totalorder %s599, %s601
      %p608 = scmp.eq.s32.totalorder %s47, 1
      %p609 = por %p607, %p608
      %p610 = scmp.ne.s32.totalorder %s601, %s602
      %p611 = scmp.eq.s32.totalorder %s47, 0
      %p612 = por %p610, %p611
      %p613 = scmp.ne.s32.totalorder %s601, %s602
      %p614 = scmp.eq.s32.totalorder %s48, 1
      %p615 = por %p613, %p614
      %p617 = scmp.ne.s32.totalorder %s602, %s616
      %p618 = scmp.eq.s32.totalorder %s48, 0
      %p619 = por %p617, %p618
      %s621 = sadd.s32 %s620, 1
      %p624 = scmp.eq.s32.totalorder %s42, 1
      %p625 = scmp.ne.s32.totalorder %s620, %s622
      %p626 = scmp.eq.s32.totalorder %s42, 0
      %p627 = por %p625, %p626
      %p628 = scmp.ne.s32.totalorder %s620, %s622
      %p629 = scmp.eq.s32.totalorder %s47, 1
      %p630 = por %p628, %p629
      %p631 = scmp.ne.s32.totalorder %s622, %s623
      %p632 = scmp.eq.s32.totalorder %s47, 0
      %p633 = por %p631, %p632
      %p634 = scmp.ne.s32.totalorder %s622, %s623
      %p635 = scmp.eq.s32.totalorder %s48, 1
      %p636 = por %p634, %p635
      %p638 = scmp.ne.s32.totalorder %s623, %s637
      %p639 = scmp.eq.s32.totalorder %s48, 0
      %p640 = por %p638, %p639
      %s641 = ssub.s32 %s49, %s68
      %s642 = ssub.s32 %s50, %s64
      %s643 = sor.u32 %s641, %s642
      %s644 = ssub.s32 %s51, %s60
      %s645 = sor.u32 %s643, %s644
      %p646 = scmp.eq.s32.totalorder %s645, 0
      %s648 = sadd.s32 %s647, 1
      %s649 = scalar_select %p646, %s647, %s648
      %p652 = pneg %p646
      %p653 = scmp.eq.s32.totalorder %s42, 1
      %p654 = por %p652, %p653
      %p655 = scmp.ne.s32.totalorder %s647, %s650
      %p656 = scmp.eq.s32.totalorder %s42, 0
      %p657 = por %p655, %p656
      %p658 = scmp.ne.s32.totalorder %s647, %s650
      %p659 = scmp.eq.s32.totalorder %s47, 1
      %p660 = por %p658, %p659
      %p661 = scmp.ne.s32.totalorder %s650, %s651
      %p662 = scmp.eq.s32.totalorder %s47, 0
      %p663 = por %p661, %p662
      %p664 = scmp.ne.s32.totalorder %s650, %s651
      %p665 = scmp.eq.s32.totalorder %s48, 1
      %p666 = por %p664, %p665
      %p668 = scmp.ne.s32.totalorder %s651, %s667
      %p669 = scmp.eq.s32.totalorder %s48, 0
      %p670 = por %p668, %p669
      %s671 = ssub.s32 %s49, %s68
      %s672 = ssub.s32 %s50, %s64
      %s673 = sor.u32 %s671, %s672
      %s674 = ssub.s32 %s51, %s60
      %s675 = sor.u32 %s673, %s674
      %p676 = scmp.eq.s32.totalorder %s675, 0
      %s678 = sadd.s32 %s677, 1
      %s679 = scalar_select %p676, %s677, %s678
      %p682 = pneg %p676
      %p683 = scmp.eq.s32.totalorder %s42, 1
      %p684 = por %p682, %p683
      %p685 = scmp.ne.s32.totalorder %s677, %s680
      %p686 = scmp.eq.s32.totalorder %s42, 0
      %p687 = por %p685, %p686
      %p688 = scmp.ne.s32.totalorder %s677, %s680
      %p689 = scmp.eq.s32.totalorder %s47, 1
      %p690 = por %p688, %p689
      %p691 = scmp.ne.s32.totalorder %s680, %s681
      %p692 = scmp.eq.s32.totalorder %s47, 0
      %p693 = por %p691, %p692
      %p694 = scmp.ne.s32.totalorder %s680, %s681
      %p695 = scmp.eq.s32.totalorder %s48, 1
      %p696 = por %p694, %p695
      %p698 = scmp.ne.s32.totalorder %s681, %s697
      %p699 = scmp.eq.s32.totalorder %s48, 0
      %p700 = por %p698, %p699
      %p701 = scmp.le.s32.totalorder 1, %s42
      %p702 = scmp.lt.s32.totalorder %s42, 3
      %p703 = pnand %p701, %p702
      %p704 = pneg %p703
      // Predicated region
      $region9: #{tpu_custom_call.1} parent=5 // pred_check
        _
      $region10: #{tpu_custom_call.1} parent=5 // pred_check_branch
        %706 = sbr.rel (%p703) target = $region12
      $region11: #{tpu_custom_call.1} parent=5 // pred_region
        %s707 = ssub.s32 %s42, 1
        // Predicated region
        $region13: #{tpu_custom_call.1} parent=11 // pred_check
          %p708 = pneg %p486
        $region14: #{tpu_custom_call.1} parent=11 // pred_check_branch
          %710 = sbr.rel (%p708) target = $region16
        $region15: #{tpu_custom_call.1} parent=11 // pred_region
          _
        $region16: #{tpu_custom_call.1} parent=11 // pred_fallthru
          _
        // Predicated region
        $region17: #{tpu_custom_call.1} parent=11 // pred_check
          %p711 = pneg %p507
        $region18: #{tpu_custom_call.1} parent=11 // pred_check_branch
          %713 = sbr.rel (%p711) target = $region20
        $region19: #{tpu_custom_call.1} parent=11 // pred_region
          _
        $region20: #{tpu_custom_call.1} parent=11 // pred_fallthru
          _
        // Predicated region
        $region21: #{tpu_custom_call.1} parent=11 // pred_check
          %p714 = pneg %p528
        $region22: #{tpu_custom_call.1} parent=11 // pred_check_branch
          %716 = sbr.rel (%p714) target = $region24
        $region23: #{tpu_custom_call.1} parent=11 // pred_region
          _
        $region24: #{tpu_custom_call.1} parent=11 // pred_fallthru
          _
        // Predicated region
        $region25: #{tpu_custom_call.1} parent=11 // pred_check
          %p717 = pneg %p549
        $region26: #{tpu_custom_call.1} parent=11 // pred_check_branch
          %719 = sbr.rel (%p717) target = $region28
        $region27: #{tpu_custom_call.1} parent=11 // pred_region
          _
        $region28: #{tpu_custom_call.1} parent=11 // pred_fallthru
          _
        // Predicated region
        $region29: #{tpu_custom_call.1} parent=11 // pred_check
          %p720 = pneg %p570
        $region30: #{tpu_custom_call.1} parent=11 // pred_check_branch
          %722 = sbr.rel (%p720) target = $region32
        $region31: #{tpu_custom_call.1} parent=11 // pred_region
          _
        $region32: #{tpu_custom_call.1} parent=11 // pred_fallthru
          _
        // Predicated region
        $region33: #{tpu_custom_call.1} parent=11 // pred_check
          %p723 = pneg %p591
        $region34: #{tpu_custom_call.1} parent=11 // pred_check_branch
          %725 = sbr.rel (%p723) target = $region36
        $region35: #{tpu_custom_call.1} parent=11 // pred_region
          _
        $region36: #{tpu_custom_call.1} parent=11 // pred_fallthru
          _
        // Predicated region
        $region37: #{tpu_custom_call.1} parent=11 // pred_check
          %p726 = pneg %p612
        $region38: #{tpu_custom_call.1} parent=11 // pred_check_branch
          %728 = sbr.rel (%p726) target = $region40
        $region39: #{tpu_custom_call.1} parent=11 // pred_region
          _
        $region40: #{tpu_custom_call.1} parent=11 // pred_fallthru
          _
        // Predicated region
        $region41: #{tpu_custom_call.1} parent=11 // pred_check
          %p729 = pneg %p633
        $region42: #{tpu_custom_call.1} parent=11 // pred_check_branch
          %731 = sbr.rel (%p729) target = $region44
        $region43: #{tpu_custom_call.1} parent=11 // pred_region
          _
        $region44: #{tpu_custom_call.1} parent=11 // pred_fallthru
          _
      $region12: #{tpu_custom_call.1} parent=5 // pred_fallthru
        _
      %p732 = scmp.lt.s32.totalorder %s42, 2
      // Predicated region
      $region45: #{tpu_custom_call.1} parent=5 // pred_check
        %p733 = pneg %p732
      $region46: #{tpu_custom_call.1} parent=5 // pred_check_branch
        %735 = sbr.rel (%p733) target = $region48
      $region47: #{tpu_custom_call.1} parent=5 // pred_region
        // Predicated region
        $region49: #{tpu_custom_call.1} parent=47 // pred_check
          %p736 = pneg %p83
        $region50: #{tpu_custom_call.1} parent=47 // pred_check_branch
          %738 = sbr.rel (%p736) target = $region52
        $region51: #{tpu_custom_call.1} parent=47 // pred_region
          %s739 = smul.u32 8, %s50
          %p740 = scmp.lt.s32.totalorder %s49, 1
          %s741 = scalar_select %p740, %s49, 1
          %p742 = scmp.lt.s32.totalorder %s739, 7
          %s743 = scalar_select %p742, %s739, 7
          %s744 = smul.addr %s741, 8
          %s745 = sadd.s32 %s743, %s744
          %s746 = scalar_lea.vmem %s0, %s745
          %s747 = smul.u32 8, %s50
        $region52: #{tpu_custom_call.1} parent=47 // pred_fallthru
          _
        // Predicated region
        $region53: #{tpu_custom_call.1} parent=47 // pred_check
          %p748 = pneg %p111
        $region54: #{tpu_custom_call.1} parent=47 // pred_check_branch
          %750 = sbr.rel (%p748) target = $region56
        $region55: #{tpu_custom_call.1} parent=47 // pred_region
          %s751 = smul.u32 8, %s50
          %p752 = scmp.lt.s32.totalorder %s49, 1
          %s753 = scalar_select %p752, %s49, 1
          %p754 = scmp.lt.s32.totalorder %s751, 7
          %s755 = scalar_select %p754, %s751, 7
          %s756 = smul.addr %s753, 8
          %s757 = sadd.s32 %s755, %s756
          %s758 = scalar_lea.vmem %s1, %s757
          %s759 = smul.u32 8, %s50
        $region56: #{tpu_custom_call.1} parent=47 // pred_fallthru
          _
        // Predicated region
        $region57: #{tpu_custom_call.1} parent=47 // pred_check
          %p760 = pneg %p139
        $region58: #{tpu_custom_call.1} parent=47 // pred_check_branch
          %762 = sbr.rel (%p760) target = $region60
        $region59: #{tpu_custom_call.1} parent=47 // pred_region
          %s763 = smul.u32 8, %s51
          %p764 = scmp.lt.s32.totalorder %s49, 1
          %s765 = scalar_select %p764, %s49, 1
          %p766 = scmp.lt.s32.totalorder %s763, 7
          %s767 = scalar_select %p766, %s763, 7
          %s768 = smul.addr %s765, 8
          %s769 = sadd.s32 %s767, %s768
          %s770 = scalar_lea.vmem %s2, %s769
          %s771 = smul.u32 8, %s51
        $region60: #{tpu_custom_call.1} parent=47 // pred_fallthru
          _
        // Predicated region
        $region61: #{tpu_custom_call.1} parent=47 // pred_check
          %p772 = pneg %p167
        $region62: #{tpu_custom_call.1} parent=47 // pred_check_branch
          %774 = sbr.rel (%p772) target = $region64
        $region63: #{tpu_custom_call.1} parent=47 // pred_region
          %s775 = smul.u32 8, %s51
          %p776 = scmp.lt.s32.totalorder %s49, 1
          %s777 = scalar_select %p776, %s49, 1
          %p778 = scmp.lt.s32.totalorder %s775, 7
          %s779 = scalar_select %p778, %s775, 7
          %s780 = smul.addr %s777, 8
          %s781 = sadd.s32 %s779, %s780
          %s782 = scalar_lea.vmem %s3, %s781
          %s783 = smul.u32 8, %s51
        $region64: #{tpu_custom_call.1} parent=47 // pred_fallthru
          _
        // Predicated region
        $region65: #{tpu_custom_call.1} parent=47 // pred_check
          %p784 = pneg %p195
        $region66: #{tpu_custom_call.1} parent=47 // pred_check_branch
          %786 = sbr.rel (%p784) target = $region68
        $region67: #{tpu_custom_call.1} parent=47 // pred_region
          %s787 = smul.u32 8, %s50
          %p788 = scmp.lt.s32.totalorder %s49, 1
          %s789 = scalar_select %p788, %s49, 1
          %p790 = scmp.lt.s32.totalorder %s787, 7
          %s791 = scalar_select %p790, %s787, 7
          %s792 = smul.addr %s789, 8
          %s793 = sadd.s32 %s791, %s792
          %s794 = smul.addr %s793, 4
          %s795 = scalar_lea.vmem %s4, %s794
          %s796 = smul.u32 8, %s50
        $region68: #{tpu_custom_call.1} parent=47 // pred_fallthru
          _
        // Predicated region
        $region69: #{tpu_custom_call.1} parent=47 // pred_check
          %p797 = pneg %p223
        $region70: #{tpu_custom_call.1} parent=47 // pred_check_branch
          %799 = sbr.rel (%p797) target = $region72
        $region71: #{tpu_custom_call.1} parent=47 // pred_region
          %s800 = smul.u32 8, %s50
          %p801 = scmp.lt.s32.totalorder %s49, 1
          %s802 = scalar_select %p801, %s49, 1
          %p803 = scmp.lt.s32.totalorder %s800, 7
          %s804 = scalar_select %p803, %s800, 7
          %s805 = smul.addr %s802, 8
          %s806 = sadd.s32 %s804, %s805
          %s807 = smul.addr %s806, 4
          %s808 = scalar_lea.vmem %s5, %s807
          %s809 = smul.u32 8, %s50
        $region72: #{tpu_custom_call.1} parent=47 // pred_fallthru
          _
        // Predicated region
        $region73: #{tpu_custom_call.1} parent=47 // pred_check
          %p810 = pneg %p251
        $region74: #{tpu_custom_call.1} parent=47 // pred_check_branch
          %812 = sbr.rel (%p810) target = $region76
        $region75: #{tpu_custom_call.1} parent=47 // pred_region
          %s813 = smul.u32 8, %s51
          %p814 = scmp.lt.s32.totalorder %s49, 1
          %s815 = scalar_select %p814, %s49, 1
          %p816 = scmp.lt.s32.totalorder %s813, 7
          %s817 = scalar_select %p816, %s813, 7
          %s818 = smul.addr %s815, 8
          %s819 = sadd.s32 %s817, %s818
          %s820 = smul.addr %s819, 4
          %s821 = scalar_lea.vmem %s6, %s820
          %s822 = smul.u32 8, %s51
        $region76: #{tpu_custom_call.1} parent=47 // pred_fallthru
          _
        // Predicated region
        $region77: #{tpu_custom_call.1} parent=47 // pred_check
          %p823 = pneg %p279
        $region78: #{tpu_custom_call.1} parent=47 // pred_check_branch
          %825 = sbr.rel (%p823) target = $region80
        $region79: #{tpu_custom_call.1} parent=47 // pred_region
          %s826 = smul.u32 8, %s51
          %p827 = scmp.lt.s32.totalorder %s49, 1
          %s828 = scalar_select %p827, %s49, 1
          %p829 = scmp.lt.s32.totalorder %s826, 7
          %s830 = scalar_select %p829, %s826, 7
          %s831 = smul.addr %s828, 8
          %s832 = sadd.s32 %s830, %s831
          %s833 = smul.addr %s832, 4
          %s834 = scalar_lea.vmem %s7, %s833
          %s835 = smul.u32 8, %s51
        $region80: #{tpu_custom_call.1} parent=47 // pred_fallthru
          _
        // Predicated region
        $region81: #{tpu_custom_call.1} parent=47 // pred_check
          %p836 = pneg %p309
        $region82: #{tpu_custom_call.1} parent=47 // pred_check_branch
          %838 = sbr.rel (%p836) target = $region84
        $region83: #{tpu_custom_call.1} parent=47 // pred_region
          %s839 = smul.u32 8, %s50
          %p840 = scmp.lt.s32.totalorder %s49, 1
          %s841 = scalar_select %p840, %s49, 1
          %p842 = scmp.lt.s32.totalorder %s839, 7
          %s843 = scalar_select %p842, %s839, 7
          %p844 = scmp.lt.s32.totalorder %s51, 0
          %s845 = scalar_select %p844, %s51, 0
          %s846 = sadd.s32 %s845, %s843
          %s847 = smul.addr %s841, 8
          %s848 = sadd.s32 %s846, %s847
          %s849 = smul.addr %s848, 8
          %s850 = scalar_lea.vmem %s8, %s849
          %s851 = smul.u32 8, %s50
        $region84: #{tpu_custom_call.1} parent=47 // pred_fallthru
          _
        // Predicated region
        $region85: #{tpu_custom_call.1} parent=47 // pred_check
          %p852 = pneg %p339
        $region86: #{tpu_custom_call.1} parent=47 // pred_check_branch
          %854 = sbr.rel (%p852) target = $region88
        $region87: #{tpu_custom_call.1} parent=47 // pred_region
          %s855 = sand.u32 %s329, 1
          %s856 = scalar_lea.sflag [#allocation3], %s855
          %s857 = sand.u32 %s329, 1
          %s858 = smul.addr %s857, 64
          %s859 = scalar_lea.vmem [#allocation2], %s858
          %s860 = smul.u32 8, %s50
          %862 = vsyncadd %s856, 0
          %s863 = sadd.s32 %s51, %s860
          %s864 = smul.addr %s49, 8
          %s865 = sadd.s32 %s863, %s864
          %s866 = smul.addr %s865, 8
          %s867 = scalar_lea.hbm %s9, %s866
          %s868 = sshll.u32 %s867, 4
          %s869 = int_to_ptr.hbm [resolvable:$true] %s868
          %s870 = sshll.u32 %s859, 4
          %s871 = int_to_ptr.vmem [resolvable:$true] %s870
          %876 = dma.hbm_to_vmem [thread:$0]  %s869, 1024, %s871, %s856, 128, 128, 8
        $region88: #{tpu_custom_call.1} parent=47 // pred_fallthru
          _
        // Predicated region
        $region89: #{tpu_custom_call.1} parent=47 // pred_check
          %p877 = pneg %p369
        $region90: #{tpu_custom_call.1} parent=47 // pred_check_branch
          %879 = sbr.rel (%p877) target = $region92
        $region91: #{tpu_custom_call.1} parent=47 // pred_region
          %s880 = sand.u32 %s42, 1
          %s881 = scalar_lea.sflag [#allocation6], %s880
          %s882 = sand.u32 %s359, 1
          %s883 = smul.addr %s882, 64
          %s884 = scalar_lea.vmem [#allocation5], %s883
          %s885 = smul.u32 8, %s50
          %887 = vsyncadd %s881, 0
          %s888 = sadd.s32 %s51, %s885
          %s889 = smul.addr %s49, 8
          %s890 = sadd.s32 %s888, %s889
          %s891 = smul.addr %s890, 8
          %s892 = scalar_lea.hbm %s10, %s891
          %s893 = sshll.u32 %s892, 4
          %s894 = int_to_ptr.hbm [resolvable:$true] %s893
          %s895 = sshll.u32 %s884, 4
          %s896 = int_to_ptr.vmem [resolvable:$true] %s895
          %901 = dma.hbm_to_vmem [thread:$0]  %s894, 1024, %s896, %s881, 128, 128, 8
        $region92: #{tpu_custom_call.1} parent=47 // pred_fallthru
          _
        // Predicated region
        $region93: #{tpu_custom_call.1} parent=47 // pred_check
          %p902 = pneg %p399
        $region94: #{tpu_custom_call.1} parent=47 // pred_check_branch
          %904 = sbr.rel (%p902) target = $region96
        $region95: #{tpu_custom_call.1} parent=47 // pred_region
          %s905 = sand.u32 %s42, 1
          %s906 = scalar_lea.sflag [#allocation6], %s905
          %s907 = sand.u32 %s389, 1
          %s908 = smul.addr %s907, 64
          %s909 = scalar_lea.vmem [#allocation7], %s908
          %s910 = smul.u32 8, %s50
          %912 = vsyncadd %s906, 0
          %s913 = sadd.s32 %s51, %s910
          %s914 = smul.addr %s49, 8
          %s915 = sadd.s32 %s913, %s914
          %s916 = smul.addr %s915, 8
          %s917 = scalar_lea.hbm %s11, %s916
          %s918 = sshll.u32 %s917, 4
          %s919 = int_to_ptr.hbm [resolvable:$true] %s918
          %s920 = sshll.u32 %s909, 4
          %s921 = int_to_ptr.vmem [resolvable:$true] %s920
          %926 = dma.hbm_to_vmem [thread:$0]  %s919, 1024, %s921, %s906, 128, 128, 8
        $region96: #{tpu_custom_call.1} parent=47 // pred_fallthru
          _
        // Predicated region
        $region97: #{tpu_custom_call.1} parent=47 // pred_check
          %p927 = pneg %p429
        $region98: #{tpu_custom_call.1} parent=47 // pred_check_branch
          %929 = sbr.rel (%p927) target = $region100
        $region99: #{tpu_custom_call.1} parent=47 // pred_region
          %p930 = scmp.lt.s32.totalorder %s49, 1
          %s931 = scalar_select %p930, %s49, 1
          %p932 = scmp.lt.s32.totalorder %s50, 0
          %s933 = scalar_select %p932, %s50, 0
          %p934 = scmp.lt.s32.totalorder %s51, 0
          %s935 = scalar_select %p934, %s51, 0
          %s936 = sadd.s32 %s935, %s933
          %s937 = sadd.s32 %s936, %s931
          %s938 = smul.addr %s937, 8
          %s939 = scalar_lea.vmem %s12, %s938
        $region100: #{tpu_custom_call.1} parent=47 // pred_fallthru
          _
        // Predicated region
        $region101: #{tpu_custom_call.1} parent=47 // pred_check
          %p940 = pneg %p459
        $region102: #{tpu_custom_call.1} parent=47 // pred_check_branch
          %942 = sbr.rel (%p940) target = $region104
        $region103: #{tpu_custom_call.1} parent=47 // pred_region
          %p943 = scmp.lt.s32.totalorder %s49, 1
          %s944 = scalar_select %p943, %s49, 1
          %p945 = scmp.lt.s32.totalorder %s50, 0
          %s946 = scalar_select %p945, %s50, 0
          %p947 = scmp.lt.s32.totalorder %s51, 0
          %s948 = scalar_select %p947, %s51, 0
          %s949 = sadd.s32 %s948, %s946
          %s950 = sadd.s32 %s949, %s944
          %s951 = smul.addr %s950, 8
          %s952 = scalar_lea.vmem %s13, %s951
        $region104: #{tpu_custom_call.1} parent=47 // pred_fallthru
          _
      $region48: #{tpu_custom_call.1} parent=5 // pred_fallthru
        _
      %p953 = scmp.le.s32.totalorder 1, %s42
      %p954 = scmp.lt.s32.totalorder %s42, 3
      %p955 = pnand %p953, %p954
      %p956 = pneg %p955
      // Predicated region
      $region105: #{tpu_custom_call.1} parent=5 // pred_check
        _
      $region106: #{tpu_custom_call.1} parent=5 // pred_check_branch
        %958 = sbr.rel (%p955) target = $region108
      $region107: #{tpu_custom_call.1} parent=5 // pred_region
        %s959 = ssub.s32 %s42, 1
        %s960 = sand.u32 %s332, 1
        %s961 = scalar_lea.sflag [#allocation3], %s960
        %s962 = sand.u32 %s332, 1
        %s963 = smul.addr %s962, 64
        %s964 = scalar_lea.vmem [#allocation2], %s963
        // Predicated region
        $region109: #{tpu_custom_call.1} parent=107 // pred_check
          %p965 = pneg %p345
        $region110: #{tpu_custom_call.1} parent=107 // pred_check_branch
          %967 = sbr.rel (%p965) target = $region112
        $region111: #{tpu_custom_call.1} parent=107 // pred_region
          %969 = dma.done %s961, 1024
        $region112: #{tpu_custom_call.1} parent=107 // pred_fallthru
          _
        %s970 = sand.u32 %s47, 1
        %s971 = scalar_lea.sflag [#allocation6], %s970
        %s972 = sand.u32 %s362, 1
        %s973 = smul.addr %s972, 64
        %s974 = scalar_lea.vmem [#allocation5], %s973
        // Predicated region
        $region113: #{tpu_custom_call.1} parent=107 // pred_check
          %p975 = pneg %p375
        $region114: #{tpu_custom_call.1} parent=107 // pred_check_branch
          %977 = sbr.rel (%p975) target = $region116
        $region115: #{tpu_custom_call.1} parent=107 // pred_region
          %979 = dma.done %s971, 1024
        $region116: #{tpu_custom_call.1} parent=107 // pred_fallthru
          _
        %s980 = sand.u32 %s47, 1
        %s981 = scalar_lea.sflag [#allocation6], %s980
        %s982 = sand.u32 %s392, 1
        %s983 = smul.addr %s982, 64
        %s984 = scalar_lea.vmem [#allocation7], %s983
        // Predicated region
        $region117: #{tpu_custom_call.1} parent=107 // pred_check
          %p985 = pneg %p405
        $region118: #{tpu_custom_call.1} parent=107 // pred_check_branch
          %987 = sbr.rel (%p985) target = $region120
        $region119: #{tpu_custom_call.1} parent=107 // pred_region
          %989 = dma.done %s981, 1024
        $region120: #{tpu_custom_call.1} parent=107 // pred_fallthru
          _
        %s990 = smul.u32 8, %s53
        %p991 = scmp.lt.s32.totalorder %s52, 1
        %s992 = scalar_select %p991, %s52, 1
        %p993 = scmp.lt.s32.totalorder %s990, 7
        %s994 = scalar_select %p993, %s990, 7
        %s995 = smul.addr %s992, 8
        %s996 = sadd.s32 %s994, %s995
        %s997 = scalar_lea.vmem %s0, %s996
        %p998 = pneg %p89
        %p999 = pneg %p86
        %s1000 = smul.u32 8, %s53
        %p1001 = scmp.lt.s32.totalorder %s52, 1
        %s1002 = scalar_select %p1001, %s52, 1
        %p1003 = scmp.lt.s32.totalorder %s1000, 7
        %s1004 = scalar_select %p1003, %s1000, 7
        %s1005 = smul.addr %s1002, 8
        %s1006 = sadd.s32 %s1004, %s1005
        %s1007 = scalar_lea.vmem %s1, %s1006
        %p1008 = pneg %p117
        %p1009 = pneg %p114
        %s1010 = smul.u32 8, %s54
        %p1011 = scmp.lt.s32.totalorder %s52, 1
        %s1012 = scalar_select %p1011, %s52, 1
        %p1013 = scmp.lt.s32.totalorder %s1010, 7
        %s1014 = scalar_select %p1013, %s1010, 7
        %s1015 = smul.addr %s1012, 8
        %s1016 = sadd.s32 %s1014, %s1015
        %s1017 = scalar_lea.vmem %s2, %s1016
        %p1018 = pneg %p145
        %p1019 = pneg %p142
        %s1020 = smul.u32 8, %s54
        %p1021 = scmp.lt.s32.totalorder %s52, 1
        %s1022 = scalar_select %p1021, %s52, 1
        %p1023 = scmp.lt.s32.totalorder %s1020, 7
        %s1024 = scalar_select %p1023, %s1020, 7
        %s1025 = smul.addr %s1022, 8
        %s1026 = sadd.s32 %s1024, %s1025
        %s1027 = scalar_lea.vmem %s3, %s1026
        %p1028 = pneg %p173
        %p1029 = pneg %p170
        %s1030 = smul.u32 8, %s53
        %p1031 = scmp.lt.s32.totalorder %s52, 1
        %s1032 = scalar_select %p1031, %s52, 1
        %p1033 = scmp.lt.s32.totalorder %s1030, 7
        %s1034 = scalar_select %p1033, %s1030, 7
        %s1035 = smul.addr %s1032, 8
        %s1036 = sadd.s32 %s1034, %s1035
        %s1037 = smul.addr %s1036, 4
        %s1038 = scalar_lea.vmem %s4, %s1037
        %p1039 = pneg %p201
        %p1040 = pneg %p198
        %s1041 = smul.u32 8, %s53
        %p1042 = scmp.lt.s32.totalorder %s52, 1
        %s1043 = scalar_select %p1042, %s52, 1
        %p1044 = scmp.lt.s32.totalorder %s1041, 7
        %s1045 = scalar_select %p1044, %s1041, 7
        %s1046 = smul.addr %s1043, 8
        %s1047 = sadd.s32 %s1045, %s1046
        %s1048 = smul.addr %s1047, 4
        %s1049 = scalar_lea.vmem %s5, %s1048
        %p1050 = pneg %p229
        %p1051 = pneg %p226
        %s1052 = smul.u32 8, %s54
        %p1053 = scmp.lt.s32.totalorder %s52, 1
        %s1054 = scalar_select %p1053, %s52, 1
        %p1055 = scmp.lt.s32.totalorder %s1052, 7
        %s1056 = scalar_select %p1055, %s1052, 7
        %s1057 = smul.addr %s1054, 8
        %s1058 = sadd.s32 %s1056, %s1057
        %s1059 = smul.addr %s1058, 4
        %s1060 = scalar_lea.vmem %s6, %s1059
        %p1061 = pneg %p257
        %p1062 = pneg %p254
        %s1063 = smul.u32 8, %s54
        %p1064 = scmp.lt.s32.totalorder %s52, 1
        %s1065 = scalar_select %p1064, %s52, 1
        %p1066 = scmp.lt.s32.totalorder %s1063, 7
        %s1067 = scalar_select %p1066, %s1063, 7
        %s1068 = smul.addr %s1065, 8
        %s1069 = sadd.s32 %s1067, %s1068
        %s1070 = smul.addr %s1069, 4
        %s1071 = scalar_lea.vmem %s7, %s1070
        %p1072 = pneg %p285
        %p1073 = pneg %p282
        %s1074 = smul.u32 8, %s53
        %p1075 = scmp.lt.s32.totalorder %s52, 1
        %s1076 = scalar_select %p1075, %s52, 1
        %p1077 = scmp.lt.s32.totalorder %s1074, 7
        %s1078 = scalar_select %p1077, %s1074, 7
        %p1079 = scmp.lt.s32.totalorder %s54, 0
        %s1080 = scalar_select %p1079, %s54, 0
        %s1081 = sadd.s32 %s1080, %s1078
        %s1082 = smul.addr %s1076, 8
        %s1083 = sadd.s32 %s1081, %s1082
        %s1084 = smul.addr %s1083, 8
        %s1085 = scalar_lea.vmem %s8, %s1084
        %p1086 = pneg %p315
        %p1087 = pneg %p312
        %s1088 = sand.u32 %s332, 1
        %s1089 = scalar_lea.sflag [#allocation3], %s1088
        %s1090 = sand.u32 %s332, 1
        %s1091 = smul.addr %s1090, 64
        %s1092 = scalar_lea.vmem [#allocation2], %s1091
        %p1093 = pneg %p345
        %p1094 = pneg %p342
        %s1095 = sand.u32 %s47, 1
        %s1096 = scalar_lea.sflag [#allocation6], %s1095
        %s1097 = sand.u32 %s362, 1
        %s1098 = smul.addr %s1097, 64
        %s1099 = scalar_lea.vmem [#allocation5], %s1098
        %p1100 = pneg %p375
        %p1101 = pneg %p372
        %s1102 = sand.u32 %s47, 1
        %s1103 = scalar_lea.sflag [#allocation6], %s1102
        %s1104 = sand.u32 %s392, 1
        %s1105 = smul.addr %s1104, 64
        %s1106 = scalar_lea.vmem [#allocation7], %s1105
        %p1107 = pneg %p405
        %p1108 = pneg %p402
        %p1109 = scmp.lt.s32.totalorder %s52, 1
        %s1110 = scalar_select %p1109, %s52, 1
        %p1111 = scmp.lt.s32.totalorder %s53, 0
        %s1112 = scalar_select %p1111, %s53, 0
        %p1113 = scmp.lt.s32.totalorder %s54, 0
        %s1114 = scalar_select %p1113, %s54, 0
        %s1115 = sadd.s32 %s1114, %s1112
        %s1116 = sadd.s32 %s1115, %s1110
        %s1117 = smul.addr %s1116, 8
        %s1118 = scalar_lea.vmem %s12, %s1117
        %p1119 = pneg %p435
        %p1120 = pneg %p432
        %p1121 = scmp.lt.s32.totalorder %s52, 1
        %s1122 = scalar_select %p1121, %s52, 1
        %p1123 = scmp.lt.s32.totalorder %s53, 0
        %s1124 = scalar_select %p1123, %s53, 0
        %p1125 = scmp.lt.s32.totalorder %s54, 0
        %s1126 = scalar_select %p1125, %s54, 0
        %s1127 = sadd.s32 %s1126, %s1124
        %s1128 = sadd.s32 %s1127, %s1122
        %s1129 = smul.addr %s1128, 8
        %s1130 = scalar_lea.vmem %s13, %s1129
        %p1131 = pneg %p465
        %p1132 = pneg %p462
        %p1133 = pneg %p486
        %p1134 = pneg %p483
        %p1135 = pneg %p507
        %p1136 = pneg %p504
        %p1137 = pneg %p528
        %p1138 = pneg %p525
        %p1139 = pneg %p549
        %p1140 = pneg %p546
        %p1141 = pneg %p570
        %p1142 = pneg %p567
        %p1143 = pneg %p591
        %p1144 = pneg %p588
        %p1145 = pneg %p612
        %p1146 = pneg %p609
        %p1147 = pneg %p633
        %p1148 = pneg %p630
        %p1149 = pneg %p663
        %p1150 = pneg %p660
        %s1151 = sand.u32 %s650, 1
        %s1152 = scalar_lea.sflag [#allocation4], %s1151
        %s1153 = sand.u32 %s650, 1
        %s1154 = smul.addr %s1153, 64
        %s1155 = scalar_lea.vmem [#allocation8], %s1154
        %p1156 = pneg %p693
        %p1157 = pneg %p690
        %s1158 = sand.u32 %s680, 1
        %s1159 = scalar_lea.sflag [#allocation10], %s1158
        %s1160 = sand.u32 %s680, 1
        %s1161 = smul.addr %s1160, 64
        %s1162 = scalar_lea.vmem [#allocation9], %s1161
        %s1163 = smul.u32 8, %s53
        %p1164 = scmp.lt.s32.totalorder %s52, 1
        %s1165 = scalar_select %p1164, %s52, 1
        %p1166 = scmp.lt.s32.totalorder %s1163, 7
        %s1167 = scalar_select %p1166, %s1163, 7
        %s1168 = smul.addr %s1165, 8
        %s1169 = sadd.s32 %s1167, %s1168
        %s1170 = scalar_lea.vmem %s0, %s1169
        %s1171 = smul.u32 8, %s53
        %s1172 = smul.u32 8, %s53
        %p1173 = scmp.lt.s32.totalorder %s52, 1
        %s1174 = scalar_select %p1173, %s52, 1
        %p1175 = scmp.lt.s32.totalorder %s1172, 7
        %s1176 = scalar_select %p1175, %s1172, 7
        %s1177 = smul.addr %s1174, 8
        %s1178 = sadd.s32 %s1176, %s1177
        %s1179 = scalar_lea.vmem %s1, %s1178
        %s1180 = smul.u32 8, %s53
        %s1181 = smul.u32 8, %s54
        %p1182 = scmp.lt.s32.totalorder %s52, 1
        %s1183 = scalar_select %p1182, %s52, 1
        %p1184 = scmp.lt.s32.totalorder %s1181, 7
        %s1185 = scalar_select %p1184, %s1181, 7
        %s1186 = smul.addr %s1183, 8
        %s1187 = sadd.s32 %s1185, %s1186
        %s1188 = scalar_lea.vmem %s2, %s1187
        %s1189 = smul.u32 8, %s54
        %s1190 = smul.u32 8, %s54
        %p1191 = scmp.lt.s32.totalorder %s52, 1
        %s1192 = scalar_select %p1191, %s52, 1
        %p1193 = scmp.lt.s32.totalorder %s1190, 7
        %s1194 = scalar_select %p1193, %s1190, 7
        %s1195 = smul.addr %s1192, 8
        %s1196 = sadd.s32 %s1194, %s1195
        %s1197 = scalar_lea.vmem %s3, %s1196
        %s1198 = smul.u32 8, %s54
        %s1199 = smul.u32 8, %s53
        %p1200 = scmp.lt.s32.totalorder %s52, 1
        %s1201 = scalar_select %p1200, %s52, 1
        %p1202 = scmp.lt.s32.totalorder %s1199, 7
        %s1203 = scalar_select %p1202, %s1199, 7
        %s1204 = smul.addr %s1201, 8
        %s1205 = sadd.s32 %s1203, %s1204
        %s1206 = smul.addr %s1205, 4
        %s1207 = scalar_lea.vmem %s4, %s1206
        %s1208 = smul.u32 8, %s53
        %s1209 = smul.u32 8, %s53
        %p1210 = scmp.lt.s32.totalorder %s52, 1
        %s1211 = scalar_select %p1210, %s52, 1
        %p1212 = scmp.lt.s32.totalorder %s1209, 7
        %s1213 = scalar_select %p1212, %s1209, 7
        %s1214 = smul.addr %s1211, 8
        %s1215 = sadd.s32 %s1213, %s1214
        %s1216 = smul.addr %s1215, 4
        %s1217 = scalar_lea.vmem %s5, %s1216
        %s1218 = smul.u32 8, %s53
        %s1219 = smul.u32 8, %s54
        %p1220 = scmp.lt.s32.totalorder %s52, 1
        %s1221 = scalar_select %p1220, %s52, 1
        %p1222 = scmp.lt.s32.totalorder %s1219, 7
        %s1223 = scalar_select %p1222, %s1219, 7
        %s1224 = smul.addr %s1221, 8
        %s1225 = sadd.s32 %s1223, %s1224
        %s1226 = smul.addr %s1225, 4
        %s1227 = scalar_lea.vmem %s6, %s1226
        %s1228 = smul.u32 8, %s54
        %s1229 = smul.u32 8, %s54
        %p1230 = scmp.lt.s32.totalorder %s52, 1
        %s1231 = scalar_select %p1230, %s52, 1
        %p1232 = scmp.lt.s32.totalorder %s1229, 7
        %s1233 = scalar_select %p1232, %s1229, 7
        %s1234 = smul.addr %s1231, 8
        %s1235 = sadd.s32 %s1233, %s1234
        %s1236 = smul.addr %s1235, 4
        %s1237 = scalar_lea.vmem %s7, %s1236
        %s1238 = smul.u32 8, %s54
        %s1239 = smul.u32 8, %s53
        %p1240 = scmp.lt.s32.totalorder %s52, 1
        %s1241 = scalar_select %p1240, %s52, 1
        %p1242 = scmp.lt.s32.totalorder %s1239, 7
        %s1243 = scalar_select %p1242, %s1239, 7
        %p1244 = scmp.lt.s32.totalorder %s54, 0
        %s1245 = scalar_select %p1244, %s54, 0
        %s1246 = sadd.s32 %s1245, %s1243
        %s1247 = smul.addr %s1241, 8
        %s1248 = sadd.s32 %s1246, %s1247
        %s1249 = smul.addr %s1248, 8
        %s1250 = scalar_lea.vmem %s8, %s1249
        %s1251 = smul.u32 8, %s53
        %s1252 = smul.u32 8, %s53
        %s1253 = smul.u32 8, %s53
        %s1254 = smul.u32 8, %s53
        %p1255 = scmp.lt.s32.totalorder %s52, 1
        %s1256 = scalar_select %p1255, %s52, 1
        %p1257 = scmp.lt.s32.totalorder %s53, 0
        %s1258 = scalar_select %p1257, %s53, 0
        %p1259 = scmp.lt.s32.totalorder %s54, 0
        %s1260 = scalar_select %p1259, %s54, 0
        %s1261 = sadd.s32 %s1260, %s1258
        %s1262 = sadd.s32 %s1261, %s1256
        %s1263 = smul.addr %s1262, 8
        %s1264 = scalar_lea.vmem %s12, %s1263
        %p1265 = scmp.lt.s32.totalorder %s52, 1
        %s1266 = scalar_select %p1265, %s52, 1
        %p1267 = scmp.lt.s32.totalorder %s53, 0
        %s1268 = scalar_select %p1267, %s53, 0
        %p1269 = scmp.lt.s32.totalorder %s54, 0
        %s1270 = scalar_select %p1269, %s54, 0
        %s1271 = sadd.s32 %s1270, %s1268
        %s1272 = sadd.s32 %s1271, %s1266
        %s1273 = smul.addr %s1272, 8
        %s1274 = scalar_lea.vmem %s13, %s1273
        %s1275 = smul.u32 8, %s53
        %s1276 = smul.u32 8, %s53
        %v1277 = vld [vmem:[%s1274] sm:$0xff]
        %v1278 = vld [vmem:[%s1264] sm:$0xff]
        %vm1279 = vcmp.lt.f32.partialorder %v1277, 1.2
        %v1280 = vsel %vm1279, 1, 0
        %v1281 = vcvt.s32.f32 %v1280
        %v1282 = vmul.f32 %v1278, %v1281
        %v1283 = vsub.f32 1.2, %v1277
        %v1284 = vrcp.pop 0.2
        %v1285 = vmul.f32 0.2, %v1284
        %v1286 = vsub.f32 1.0, %v1285
        %v1287 = vmul.f32 %v1284, %v1286
        %v1288 = vadd.f32 %v1284, %v1287
        %vm1289 = vweird.f32 %v1284
        %v1290 = vsel %vm1289, %v1284, %v1288
        %v1291 = vmul.f32 %v1283, %v1290
        %v1292 = vsub.f32 0.0, %v1291
        %v1293 = vmul.f32 %v1292, 1.442695
        %v1294 = vpow.pop %v1293
        %v1295 = vadd.f32 %v1294, 1.0
        %v1296 = vrcp.pop %v1295
        %v1297 = vmul.f32 %v1295, %v1296
        %v1298 = vsub.f32 1.0, %v1297
        %v1299 = vmul.f32 %v1296, %v1298
        %v1300 = vadd.f32 %v1296, %v1299
        %vm1301 = vweird.f32 %v1295
        %vm1302 = vweird.f32 %v1296
        %vm1303 = vmor %vm1301, %vm1302
        %v1304 = vsel %vm1303, %v1296, %v1300
        %v1305 = vand.u32 2147483647, %v1295
        %vm1306 = vcmp.eq.f32.partialorder %v1305, 8.507059e+37
        %v1307 = vand.u32 %v1295, 2147483648
        %v1308 = vor.u32 1.1754944e-38, %v1307
        %v1309 = vsel %vm1306, %v1308, %v1304
        %v1310 = vmul.f32 1.0, %v1309
        %v1311 = vmul.f32 %v1282, %v1310
        %v1312 = vperm.slane %v1311, 0
        %v1313 = vlaneseq
        %v1314 = vshrl.u32 %v1313, 7
        %1316 = vset.pattern.permute.xlu0 %v1314
        %1317 = vperm.xlu0 %1316, %v1312
        %v1318 = vpop.permute.xlu0 %1317
        %v1319 = vperm.slane %v1311, 1
        %v1320 = vlaneseq
        %v1321 = vshrl.u32 %v1320, 7
        %1323 = vset.pattern.permute.xlu0 %v1321
        %1324 = vperm.xlu0 %1323, %v1319
        %v1325 = vpop.permute.xlu0 %1324
        %v1326 = vperm.slane %v1311, 2
        %v1327 = vlaneseq
        %v1328 = vshrl.u32 %v1327, 7
        %1330 = vset.pattern.permute.xlu0 %v1328
        %1331 = vperm.xlu0 %1330, %v1326
        %v1332 = vpop.permute.xlu0 %1331
        %v1333 = vperm.slane %v1311, 3
        %v1334 = vlaneseq
        %v1335 = vshrl.u32 %v1334, 7
        %1337 = vset.pattern.permute.xlu0 %v1335
        %1338 = vperm.xlu0 %1337, %v1333
        %v1339 = vpop.permute.xlu0 %1338
        %v1340 = vperm.slane %v1311, 4
        %v1341 = vlaneseq
        %v1342 = vshrl.u32 %v1341, 7
        %1344 = vset.pattern.permute.xlu0 %v1342
        %1345 = vperm.xlu0 %1344, %v1340
        %v1346 = vpop.permute.xlu0 %1345
        %v1347 = vperm.slane %v1311, 5
        %v1348 = vlaneseq
        %v1349 = vshrl.u32 %v1348, 7
        %1351 = vset.pattern.permute.xlu0 %v1349
        %1352 = vperm.xlu0 %1351, %v1347
        %v1353 = vpop.permute.xlu0 %1352
        %v1354 = vperm.slane %v1311, 6
        %v1355 = vlaneseq
        %v1356 = vshrl.u32 %v1355, 7
        %1358 = vset.pattern.permute.xlu0 %v1356
        %1359 = vperm.xlu0 %1358, %v1354
        %v1360 = vpop.permute.xlu0 %1359
        %v1361 = vperm.slane %v1311, 7
        %v1362 = vlaneseq
        %v1363 = vshrl.u32 %v1362, 7
        %1365 = vset.pattern.permute.xlu0 %v1363
        %1366 = vperm.xlu0 %1365, %v1361
        %v1367 = vpop.permute.xlu0 %1366
        %v1368 = vld [vmem:[%s1170] sm:$0x1]
        %v1369 = vld [vmem:[%s1170 + $0x1] sm:$0x1]
        %v1370 = vld [vmem:[%s1170 + $0x2] sm:$0x1]
        %v1371 = vld [vmem:[%s1170 + $0x3] sm:$0x1]
        %v1372 = vld [vmem:[%s1170 + $0x4] sm:$0x1]
        %v1373 = vld [vmem:[%s1170 + $0x5] sm:$0x1]
        %v1374 = vld [vmem:[%s1170 + $0x6] sm:$0x1]
        %v1375 = vld [vmem:[%s1170 + $0x7] sm:$0x1]
        %v1376 = vld [vmem:[%s1179] sm:$0x1]
        %v1377 = vld [vmem:[%s1179 + $0x1] sm:$0x1]
        %v1378 = vld [vmem:[%s1179 + $0x2] sm:$0x1]
        %v1379 = vld [vmem:[%s1179 + $0x3] sm:$0x1]
        %v1380 = vld [vmem:[%s1179 + $0x4] sm:$0x1]
        %v1381 = vld [vmem:[%s1179 + $0x5] sm:$0x1]
        %v1382 = vld [vmem:[%s1179 + $0x6] sm:$0x1]
        %v1383 = vld [vmem:[%s1179 + $0x7] sm:$0x1]
        %v1384 = vld [vmem:[%s1188] sm:$0x1]
        %v1385 = vld [vmem:[%s1188 + $0x1] sm:$0x1]
        %v1386 = vld [vmem:[%s1188 + $0x2] sm:$0x1]
        %v1387 = vld [vmem:[%s1188 + $0x3] sm:$0x1]
        %v1388 = vld [vmem:[%s1188 + $0x4] sm:$0x1]
        %v1389 = vld [vmem:[%s1188 + $0x5] sm:$0x1]
        %v1390 = vld [vmem:[%s1188 + $0x6] sm:$0x1]
        %v1391 = vld [vmem:[%s1188 + $0x7] sm:$0x1]
        %v1392 = vld [vmem:[%s1197] sm:$0x1]
        %v1393 = vld [vmem:[%s1197 + $0x1] sm:$0x1]
        %v1394 = vld [vmem:[%s1197 + $0x2] sm:$0x1]
        %v1395 = vld [vmem:[%s1197 + $0x3] sm:$0x1]
        %v1396 = vld [vmem:[%s1197 + $0x4] sm:$0x1]
        %v1397 = vld [vmem:[%s1197 + $0x5] sm:$0x1]
        %v1398 = vld [vmem:[%s1197 + $0x6] sm:$0x1]
        %v1399 = vld [vmem:[%s1197 + $0x7] sm:$0x1]
        %v1408 = vperm.slane %v1368, 0
        %v1409 = vperm.slane %v1369, 0
        %v1410 = vperm.slane %v1370, 0
        %v1411 = vperm.slane %v1371, 0
        %v1412 = vperm.slane %v1372, 0
        %v1413 = vperm.slane %v1373, 0
        %v1414 = vperm.slane %v1374, 0
        %v1415 = vperm.slane %v1375, 0
        %1432 = vst [vmem:[#allocation1] ss:$9 sm:$0xff] %v1384
        %s1433 = scalar_lea.vmem [#allocation1], 1
        %1434 = vst [vmem:[%s1433] ss:$9 sm:$0xff] %v1385
        %s1435 = scalar_lea.vmem [#allocation1], 2
        %1436 = vst [vmem:[%s1435] ss:$9 sm:$0xff] %v1386
        %s1437 = scalar_lea.vmem [#allocation1], 3
        %1438 = vst [vmem:[%s1437] ss:$9 sm:$0xff] %v1387
        %s1439 = scalar_lea.vmem [#allocation1], 4
        %1440 = vst [vmem:[%s1439] ss:$9 sm:$0xff] %v1388
        %s1441 = scalar_lea.vmem [#allocation1], 5
        %1442 = vst [vmem:[%s1441] ss:$9 sm:$0xff] %v1389
        %s1443 = scalar_lea.vmem [#allocation1], 6
        %1444 = vst [vmem:[%s1443] ss:$9 sm:$0xff] %v1390
        %s1445 = scalar_lea.vmem [#allocation1], 7
        %1446 = vst [vmem:[%s1445] ss:$9 sm:$0xff] %v1391
        %v1447 = vld [vmem:[#allocation1] sm:$0xff]
        %1448 = vst [vmem:[#allocation1] ss:$9 sm:$0xff] %v1384
        %1449 = vst [vmem:[%s1433] ss:$9 sm:$0xff] %v1385
        %1450 = vst [vmem:[%s1435] ss:$9 sm:$0xff] %v1386
        %1451 = vst [vmem:[%s1437] ss:$9 sm:$0xff] %v1387
        %1452 = vst [vmem:[%s1439] ss:$9 sm:$0xff] %v1388
        %1453 = vst [vmem:[%s1441] ss:$9 sm:$0xff] %v1389
        %1454 = vst [vmem:[%s1443] ss:$9 sm:$0xff] %v1390
        %1455 = vst [vmem:[%s1445] ss:$9 sm:$0xff] %v1391
        %v1456 = vld [vmem:[#allocation1] sm:$0xff]
        %1457 = vst [vmem:[#allocation1] ss:$9 sm:$0xff] %v1384
        %1458 = vst [vmem:[%s1433] ss:$9 sm:$0xff] %v1385
        %1459 = vst [vmem:[%s1435] ss:$9 sm:$0xff] %v1386
        %1460 = vst [vmem:[%s1437] ss:$9 sm:$0xff] %v1387
        %1461 = vst [vmem:[%s1439] ss:$9 sm:$0xff] %v1388
        %1462 = vst [vmem:[%s1441] ss:$9 sm:$0xff] %v1389
        %1463 = vst [vmem:[%s1443] ss:$9 sm:$0xff] %v1390
        %1464 = vst [vmem:[%s1445] ss:$9 sm:$0xff] %v1391
        %v1465 = vld [vmem:[#allocation1] sm:$0xff]
        %1466 = vst [vmem:[#allocation1] ss:$9 sm:$0xff] %v1384
        %1467 = vst [vmem:[%s1433] ss:$9 sm:$0xff] %v1385
        %1468 = vst [vmem:[%s1435] ss:$9 sm:$0xff] %v1386
        %1469 = vst [vmem:[%s1437] ss:$9 sm:$0xff] %v1387
        %1470 = vst [vmem:[%s1439] ss:$9 sm:$0xff] %v1388
        %1471 = vst [vmem:[%s1441] ss:$9 sm:$0xff] %v1389
        %1472 = vst [vmem:[%s1443] ss:$9 sm:$0xff] %v1390
        %1473 = vst [vmem:[%s1445] ss:$9 sm:$0xff] %v1391
        %v1474 = vld [vmem:[#allocation1] sm:$0xff]
        %1475 = vst [vmem:[#allocation1] ss:$9 sm:$0xff] %v1384
        %1476 = vst [vmem:[%s1433] ss:$9 sm:$0xff] %v1385
        %1477 = vst [vmem:[%s1435] ss:$9 sm:$0xff] %v1386
        %1478 = vst [vmem:[%s1437] ss:$9 sm:$0xff] %v1387
        %1479 = vst [vmem:[%s1439] ss:$9 sm:$0xff] %v1388
        %1480 = vst [vmem:[%s1441] ss:$9 sm:$0xff] %v1389
        %1481 = vst [vmem:[%s1443] ss:$9 sm:$0xff] %v1390
        %1482 = vst [vmem:[%s1445] ss:$9 sm:$0xff] %v1391
        %v1483 = vld [vmem:[#allocation1] sm:$0xff]
        %1484 = vst [vmem:[#allocation1] ss:$9 sm:$0xff] %v1384
        %1485 = vst [vmem:[%s1433] ss:$9 sm:$0xff] %v1385
        %1486 = vst [vmem:[%s1435] ss:$9 sm:$0xff] %v1386
        %1487 = vst [vmem:[%s1437] ss:$9 sm:$0xff] %v1387
        %1488 = vst [vmem:[%s1439] ss:$9 sm:$0xff] %v1388
        %1489 = vst [vmem:[%s1441] ss:$9 sm:$0xff] %v1389
        %1490 = vst [vmem:[%s1443] ss:$9 sm:$0xff] %v1390
        %1491 = vst [vmem:[%s1445] ss:$9 sm:$0xff] %v1391
        %v1492 = vld [vmem:[#allocation1] sm:$0xff]
        %1493 = vst [vmem:[#allocation1] ss:$9 sm:$0xff] %v1384
        %1494 = vst [vmem:[%s1433] ss:$9 sm:$0xff] %v1385
        %1495 = vst [vmem:[%s1435] ss:$9 sm:$0xff] %v1386
        %1496 = vst [vmem:[%s1437] ss:$9 sm:$0xff] %v1387
        %1497 = vst [vmem:[%s1439] ss:$9 sm:$0xff] %v1388
        %1498 = vst [vmem:[%s1441] ss:$9 sm:$0xff] %v1389
        %1499 = vst [vmem:[%s1443] ss:$9 sm:$0xff] %v1390
        %1500 = vst [vmem:[%s1445] ss:$9 sm:$0xff] %v1391
        %v1501 = vld [vmem:[#allocation1] sm:$0xff]
        %1502 = vst [vmem:[#allocation1] ss:$9 sm:$0xff] %v1384
        %1503 = vst [vmem:[%s1433] ss:$9 sm:$0xff] %v1385
        %1504 = vst [vmem:[%s1435] ss:$9 sm:$0xff] %v1386
        %1505 = vst [vmem:[%s1437] ss:$9 sm:$0xff] %v1387
        %1506 = vst [vmem:[%s1439] ss:$9 sm:$0xff] %v1388
        %1507 = vst [vmem:[%s1441] ss:$9 sm:$0xff] %v1389
        %1508 = vst [vmem:[%s1443] ss:$9 sm:$0xff] %v1390
        %1509 = vst [vmem:[%s1445] ss:$9 sm:$0xff] %v1391
        %v1510 = vld [vmem:[#allocation1] sm:$0xff]
        %v1519 = vmul.f32 %v1408, %v1447
        %v1520 = vmul.f32 %v1409, %v1456
        %v1521 = vmul.f32 %v1410, %v1465
        %v1522 = vmul.f32 %v1411, %v1474
        %v1523 = vmul.f32 %v1412, %v1483
        %v1524 = vmul.f32 %v1413, %v1492
        %v1525 = vmul.f32 %v1414, %v1501
        %v1526 = vmul.f32 %v1415, %v1510
        %v1535 = vperm.slane %v1376, 0
        %v1536 = vperm.slane %v1377, 0
        %v1537 = vperm.slane %v1378, 0
        %v1538 = vperm.slane %v1379, 0
        %v1539 = vperm.slane %v1380, 0
        %v1540 = vperm.slane %v1381, 0
        %v1541 = vperm.slane %v1382, 0
        %v1542 = vperm.slane %v1383, 0
        %1559 = vst [vmem:[#allocation1] ss:$9 sm:$0xff] %v1392
        %s1560 = scalar_lea.vmem [#allocation1], 1
        %1561 = vst [vmem:[%s1560] ss:$9 sm:$0xff] %v1393
        %s1562 = scalar_lea.vmem [#allocation1], 2
        %1563 = vst [vmem:[%s1562] ss:$9 sm:$0xff] %v1394
        %s1564 = scalar_lea.vmem [#allocation1], 3
        %1565 = vst [vmem:[%s1564] ss:$9 sm:$0xff] %v1395
        %s1566 = scalar_lea.vmem [#allocation1], 4
        %1567 = vst [vmem:[%s1566] ss:$9 sm:$0xff] %v1396
        %s1568 = scalar_lea.vmem [#allocation1], 5
        %1569 = vst [vmem:[%s1568] ss:$9 sm:$0xff] %v1397
        %s1570 = scalar_lea.vmem [#allocation1], 6
        %1571 = vst [vmem:[%s1570] ss:$9 sm:$0xff] %v1398
        %s1572 = scalar_lea.vmem [#allocation1], 7
        %1573 = vst [vmem:[%s1572] ss:$9 sm:$0xff] %v1399
        %v1574 = vld [vmem:[#allocation1] sm:$0xff]
        %1575 = vst [vmem:[#allocation1] ss:$9 sm:$0xff] %v1392
        %1576 = vst [vmem:[%s1560] ss:$9 sm:$0xff] %v1393
        %1577 = vst [vmem:[%s1562] ss:$9 sm:$0xff] %v1394
        %1578 = vst [vmem:[%s1564] ss:$9 sm:$0xff] %v1395
        %1579 = vst [vmem:[%s1566] ss:$9 sm:$0xff] %v1396
        %1580 = vst [vmem:[%s1568] ss:$9 sm:$0xff] %v1397
        %1581 = vst [vmem:[%s1570] ss:$9 sm:$0xff] %v1398
        %1582 = vst [vmem:[%s1572] ss:$9 sm:$0xff] %v1399
        %v1583 = vld [vmem:[#allocation1] sm:$0xff]
        %1584 = vst [vmem:[#allocation1] ss:$9 sm:$0xff] %v1392
        %1585 = vst [vmem:[%s1560] ss:$9 sm:$0xff] %v1393
        %1586 = vst [vmem:[%s1562] ss:$9 sm:$0xff] %v1394
        %1587 = vst [vmem:[%s1564] ss:$9 sm:$0xff] %v1395
        %1588 = vst [vmem:[%s1566] ss:$9 sm:$0xff] %v1396
        %1589 = vst [vmem:[%s1568] ss:$9 sm:$0xff] %v1397
        %1590 = vst [vmem:[%s1570] ss:$9 sm:$0xff] %v1398
        %1591 = vst [vmem:[%s1572] ss:$9 sm:$0xff] %v1399
        %v1592 = vld [vmem:[#allocation1] sm:$0xff]
        %1593 = vst [vmem:[#allocation1] ss:$9 sm:$0xff] %v1392
        %1594 = vst [vmem:[%s1560] ss:$9 sm:$0xff] %v1393
        %1595 = vst [vmem:[%s1562] ss:$9 sm:$0xff] %v1394
        %1596 = vst [vmem:[%s1564] ss:$9 sm:$0xff] %v1395
        %1597 = vst [vmem:[%s1566] ss:$9 sm:$0xff] %v1396
        %1598 = vst [vmem:[%s1568] ss:$9 sm:$0xff] %v1397
        %1599 = vst [vmem:[%s1570] ss:$9 sm:$0xff] %v1398
        %1600 = vst [vmem:[%s1572] ss:$9 sm:$0xff] %v1399
        %v1601 = vld [vmem:[#allocation1] sm:$0xff]
        %1602 = vst [vmem:[#allocation1] ss:$9 sm:$0xff] %v1392
        %1603 = vst [vmem:[%s1560] ss:$9 sm:$0xff] %v1393
        %1604 = vst [vmem:[%s1562] ss:$9 sm:$0xff] %v1394
        %1605 = vst [vmem:[%s1564] ss:$9 sm:$0xff] %v1395
        %1606 = vst [vmem:[%s1566] ss:$9 sm:$0xff] %v1396
        %1607 = vst [vmem:[%s1568] ss:$9 sm:$0xff] %v1397
        %1608 = vst [vmem:[%s1570] ss:$9 sm:$0xff] %v1398
        %1609 = vst [vmem:[%s1572] ss:$9 sm:$0xff] %v1399
        %v1610 = vld [vmem:[#allocation1] sm:$0xff]
        %1611 = vst [vmem:[#allocation1] ss:$9 sm:$0xff] %v1392
        %1612 = vst [vmem:[%s1560] ss:$9 sm:$0xff] %v1393
        %1613 = vst [vmem:[%s1562] ss:$9 sm:$0xff] %v1394
        %1614 = vst [vmem:[%s1564] ss:$9 sm:$0xff] %v1395
        %1615 = vst [vmem:[%s1566] ss:$9 sm:$0xff] %v1396
        %1616 = vst [vmem:[%s1568] ss:$9 sm:$0xff] %v1397
        %1617 = vst [vmem:[%s1570] ss:$9 sm:$0xff] %v1398
        %1618 = vst [vmem:[%s1572] ss:$9 sm:$0xff] %v1399
        %v1619 = vld [vmem:[#allocation1] sm:$0xff]
        %1620 = vst [vmem:[#allocation1] ss:$9 sm:$0xff] %v1392
        %1621 = vst [vmem:[%s1560] ss:$9 sm:$0xff] %v1393
        %1622 = vst [vmem:[%s1562] ss:$9 sm:$0xff] %v1394
        %1623 = vst [vmem:[%s1564] ss:$9 sm:$0xff] %v1395
        %1624 = vst [vmem:[%s1566] ss:$9 sm:$0xff] %v1396
        %1625 = vst [vmem:[%s1568] ss:$9 sm:$0xff] %v1397
        %1626 = vst [vmem:[%s1570] ss:$9 sm:$0xff] %v1398
        %1627 = vst [vmem:[%s1572] ss:$9 sm:$0xff] %v1399
        %v1628 = vld [vmem:[#allocation1] sm:$0xff]
        %1629 = vst [vmem:[#allocation1] ss:$9 sm:$0xff] %v1392
        %1630 = vst [vmem:[%s1560] ss:$9 sm:$0xff] %v1393
        %1631 = vst [vmem:[%s1562] ss:$9 sm:$0xff] %v1394
        %1632 = vst [vmem:[%s1564] ss:$9 sm:$0xff] %v1395
        %1633 = vst [vmem:[%s1566] ss:$9 sm:$0xff] %v1396
        %1634 = vst [vmem:[%s1568] ss:$9 sm:$0xff] %v1397
        %1635 = vst [vmem:[%s1570] ss:$9 sm:$0xff] %v1398
        %1636 = vst [vmem:[%s1572] ss:$9 sm:$0xff] %v1399
        %v1637 = vld [vmem:[#allocation1] sm:$0xff]
        %v1646 = vmul.f32 %v1535, %v1574
        %v1647 = vmul.f32 %v1536, %v1583
        %v1648 = vmul.f32 %v1537, %v1592
        %v1649 = vmul.f32 %v1538, %v1601
        %v1650 = vmul.f32 %v1539, %v1610
        %v1651 = vmul.f32 %v1540, %v1619
        %v1652 = vmul.f32 %v1541, %v1628
        %v1653 = vmul.f32 %v1542, %v1637
        %v1654 = vsub.f32 %v1519, %v1646
        %v1655 = vsub.f32 %v1520, %v1647
        %v1656 = vsub.f32 %v1521, %v1648
        %v1657 = vsub.f32 %v1522, %v1649
        %v1658 = vsub.f32 %v1523, %v1650
        %v1659 = vsub.f32 %v1524, %v1651
        %v1660 = vsub.f32 %v1525, %v1652
        %v1661 = vsub.f32 %v1526, %v1653
        %v1662 = vadd.f32 %v1654, 0.0
        %v1663 = vadd.f32 %v1655, 0.0
        %v1664 = vadd.f32 %v1656, 0.0
        %v1665 = vadd.f32 %v1657, 0.0
        %v1666 = vadd.f32 %v1658, 0.0
        %v1667 = vadd.f32 %v1659, 0.0
        %v1668 = vadd.f32 %v1660, 0.0
        %v1669 = vadd.f32 %v1661, 0.0
        %1670 = vst [vmem:[#allocation1] ss:$9 sm:$0xff] %v1392
        %s1671 = scalar_lea.vmem [#allocation1], 1
        %1672 = vst [vmem:[%s1671] ss:$9 sm:$0xff] %v1393
        %s1673 = scalar_lea.vmem [#allocation1], 2
        %1674 = vst [vmem:[%s1673] ss:$9 sm:$0xff] %v1394
        %s1675 = scalar_lea.vmem [#allocation1], 3
        %1676 = vst [vmem:[%s1675] ss:$9 sm:$0xff] %v1395
        %s1677 = scalar_lea.vmem [#allocation1], 4
        %1678 = vst [vmem:[%s1677] ss:$9 sm:$0xff] %v1396
        %s1679 = scalar_lea.vmem [#allocation1], 5
        %1680 = vst [vmem:[%s1679] ss:$9 sm:$0xff] %v1397
        %s1681 = scalar_lea.vmem [#allocation1], 6
        %1682 = vst [vmem:[%s1681] ss:$9 sm:$0xff] %v1398
        %s1683 = scalar_lea.vmem [#allocation1], 7
        %1684 = vst [vmem:[%s1683] ss:$9 sm:$0xff] %v1399
        %v1685 = vld [vmem:[#allocation1] sm:$0xff]
        %1686 = vst [vmem:[#allocation1] ss:$9 sm:$0xff] %v1392
        %1687 = vst [vmem:[%s1671] ss:$9 sm:$0xff] %v1393
        %1688 = vst [vmem:[%s1673] ss:$9 sm:$0xff] %v1394
        %1689 = vst [vmem:[%s1675] ss:$9 sm:$0xff] %v1395
        %1690 = vst [vmem:[%s1677] ss:$9 sm:$0xff] %v1396
        %1691 = vst [vmem:[%s1679] ss:$9 sm:$0xff] %v1397
        %1692 = vst [vmem:[%s1681] ss:$9 sm:$0xff] %v1398
        %1693 = vst [vmem:[%s1683] ss:$9 sm:$0xff] %v1399
        %v1694 = vld [vmem:[#allocation1] sm:$0xff]
        %1695 = vst [vmem:[#allocation1] ss:$9 sm:$0xff] %v1392
        %1696 = vst [vmem:[%s1671] ss:$9 sm:$0xff] %v1393
        %1697 = vst [vmem:[%s1673] ss:$9 sm:$0xff] %v1394
        %1698 = vst [vmem:[%s1675] ss:$9 sm:$0xff] %v1395
        %1699 = vst [vmem:[%s1677] ss:$9 sm:$0xff] %v1396
        %1700 = vst [vmem:[%s1679] ss:$9 sm:$0xff] %v1397
        %1701 = vst [vmem:[%s1681] ss:$9 sm:$0xff] %v1398
        %1702 = vst [vmem:[%s1683] ss:$9 sm:$0xff] %v1399
        %v1703 = vld [vmem:[#allocation1] sm:$0xff]
        %1704 = vst [vmem:[#allocation1] ss:$9 sm:$0xff] %v1392
        %1705 = vst [vmem:[%s1671] ss:$9 sm:$0xff] %v1393
        %1706 = vst [vmem:[%s1673] ss:$9 sm:$0xff] %v1394
        %1707 = vst [vmem:[%s1675] ss:$9 sm:$0xff] %v1395
        %1708 = vst [vmem:[%s1677] ss:$9 sm:$0xff] %v1396
        %1709 = vst [vmem:[%s1679] ss:$9 sm:$0xff] %v1397
        %1710 = vst [vmem:[%s1681] ss:$9 sm:$0xff] %v1398
        %1711 = vst [vmem:[%s1683] ss:$9 sm:$0xff] %v1399
        %v1712 = vld [vmem:[#allocation1] sm:$0xff]
        %1713 = vst [vmem:[#allocation1] ss:$9 sm:$0xff] %v1392
        %1714 = vst [vmem:[%s1671] ss:$9 sm:$0xff] %v1393
        %1715 = vst [vmem:[%s1673] ss:$9 sm:$0xff] %v1394
        %1716 = vst [vmem:[%s1675] ss:$9 sm:$0xff] %v1395
        %1717 = vst [vmem:[%s1677] ss:$9 sm:$0xff] %v1396
        %1718 = vst [vmem:[%s1679] ss:$9 sm:$0xff] %v1397
        %1719 = vst [vmem:[%s1681] ss:$9 sm:$0xff] %v1398
        %1720 = vst [vmem:[%s1683] ss:$9 sm:$0xff] %v1399
        %v1721 = vld [vmem:[#allocation1] sm:$0xff]
        %1722 = vst [vmem:[#allocation1] ss:$9 sm:$0xff] %v1392
        %1723 = vst [vmem:[%s1671] ss:$9 sm:$0xff] %v1393
        %1724 = vst [vmem:[%s1673] ss:$9 sm:$0xff] %v1394
        %1725 = vst [vmem:[%s1675] ss:$9 sm:$0xff] %v1395
        %1726 = vst [vmem:[%s1677] ss:$9 sm:$0xff] %v1396
        %1727 = vst [vmem:[%s1679] ss:$9 sm:$0xff] %v1397
        %1728 = vst [vmem:[%s1681] ss:$9 sm:$0xff] %v1398
        %1729 = vst [vmem:[%s1683] ss:$9 sm:$0xff] %v1399
        %v1730 = vld [vmem:[#allocation1] sm:$0xff]
        %1731 = vst [vmem:[#allocation1] ss:$9 sm:$0xff] %v1392
        %1732 = vst [vmem:[%s1671] ss:$9 sm:$0xff] %v1393
        %1733 = vst [vmem:[%s1673] ss:$9 sm:$0xff] %v1394
        %1734 = vst [vmem:[%s1675] ss:$9 sm:$0xff] %v1395
        %1735 = vst [vmem:[%s1677] ss:$9 sm:$0xff] %v1396
        %1736 = vst [vmem:[%s1679] ss:$9 sm:$0xff] %v1397
        %1737 = vst [vmem:[%s1681] ss:$9 sm:$0xff] %v1398
        %1738 = vst [vmem:[%s1683] ss:$9 sm:$0xff] %v1399
        %v1739 = vld [vmem:[#allocation1] sm:$0xff]
        %1740 = vst [vmem:[#allocation1] ss:$9 sm:$0xff] %v1392
        %1741 = vst [vmem:[%s1671] ss:$9 sm:$0xff] %v1393
        %1742 = vst [vmem:[%s1673] ss:$9 sm:$0xff] %v1394
        %1743 = vst [vmem:[%s1675] ss:$9 sm:$0xff] %v1395
        %1744 = vst [vmem:[%s1677] ss:$9 sm:$0xff] %v1396
        %1745 = vst [vmem:[%s1679] ss:$9 sm:$0xff] %v1397
        %1746 = vst [vmem:[%s1681] ss:$9 sm:$0xff] %v1398
        %1747 = vst [vmem:[%s1683] ss:$9 sm:$0xff] %v1399
        %v1748 = vld [vmem:[#allocation1] sm:$0xff]
        %v1757 = vmul.f32 %v1408, %v1685
        %v1758 = vmul.f32 %v1409, %v1694
        %v1759 = vmul.f32 %v1410, %v1703
        %v1760 = vmul.f32 %v1411, %v1712
        %v1761 = vmul.f32 %v1412, %v1721
        %v1762 = vmul.f32 %v1413, %v1730
        %v1763 = vmul.f32 %v1414, %v1739
        %v1764 = vmul.f32 %v1415, %v1748
        %1765 = vst [vmem:[#allocation1] ss:$9 sm:$0xff] %v1384
        %s1766 = scalar_lea.vmem [#allocation1], 1
        %1767 = vst [vmem:[%s1766] ss:$9 sm:$0xff] %v1385
        %s1768 = scalar_lea.vmem [#allocation1], 2
        %1769 = vst [vmem:[%s1768] ss:$9 sm:$0xff] %v1386
        %s1770 = scalar_lea.vmem [#allocation1], 3
        %1771 = vst [vmem:[%s1770] ss:$9 sm:$0xff] %v1387
        %s1772 = scalar_lea.vmem [#allocation1], 4
        %1773 = vst [vmem:[%s1772] ss:$9 sm:$0xff] %v1388
        %s1774 = scalar_lea.vmem [#allocation1], 5
        %1775 = vst [vmem:[%s1774] ss:$9 sm:$0xff] %v1389
        %s1776 = scalar_lea.vmem [#allocation1], 6
        %1777 = vst [vmem:[%s1776] ss:$9 sm:$0xff] %v1390
        %s1778 = scalar_lea.vmem [#allocation1], 7
        %1779 = vst [vmem:[%s1778] ss:$9 sm:$0xff] %v1391
        %v1780 = vld [vmem:[#allocation1] sm:$0xff]
        %1781 = vst [vmem:[#allocation1] ss:$9 sm:$0xff] %v1384
        %1782 = vst [vmem:[%s1766] ss:$9 sm:$0xff] %v1385
        %1783 = vst [vmem:[%s1768] ss:$9 sm:$0xff] %v1386
        %1784 = vst [vmem:[%s1770] ss:$9 sm:$0xff] %v1387
        %1785 = vst [vmem:[%s1772] ss:$9 sm:$0xff] %v1388
        %1786 = vst [vmem:[%s1774] ss:$9 sm:$0xff] %v1389
        %1787 = vst [vmem:[%s1776] ss:$9 sm:$0xff] %v1390
        %1788 = vst [vmem:[%s1778] ss:$9 sm:$0xff] %v1391
        %v1789 = vld [vmem:[#allocation1] sm:$0xff]
        %1790 = vst [vmem:[#allocation1] ss:$9 sm:$0xff] %v1384
        %1791 = vst [vmem:[%s1766] ss:$9 sm:$0xff] %v1385
        %1792 = vst [vmem:[%s1768] ss:$9 sm:$0xff] %v1386
        %1793 = vst [vmem:[%s1770] ss:$9 sm:$0xff] %v1387
        %1794 = vst [vmem:[%s1772] ss:$9 sm:$0xff] %v1388
        %1795 = vst [vmem:[%s1774] ss:$9 sm:$0xff] %v1389
        %1796 = vst [vmem:[%s1776] ss:$9 sm:$0xff] %v1390
        %1797 = vst [vmem:[%s1778] ss:$9 sm:$0xff] %v1391
        %v1798 = vld [vmem:[#allocation1] sm:$0xff]
        %1799 = vst [vmem:[#allocation1] ss:$9 sm:$0xff] %v1384
        %1800 = vst [vmem:[%s1766] ss:$9 sm:$0xff] %v1385
        %1801 = vst [vmem:[%s1768] ss:$9 sm:$0xff] %v1386
        %1802 = vst [vmem:[%s1770] ss:$9 sm:$0xff] %v1387
        %1803 = vst [vmem:[%s1772] ss:$9 sm:$0xff] %v1388
        %1804 = vst [vmem:[%s1774] ss:$9 sm:$0xff] %v1389
        %1805 = vst [vmem:[%s1776] ss:$9 sm:$0xff] %v1390
        %1806 = vst [vmem:[%s1778] ss:$9 sm:$0xff] %v1391
        %v1807 = vld [vmem:[#allocation1] sm:$0xff]
        %1808 = vst [vmem:[#allocation1] ss:$9 sm:$0xff] %v1384
        %1809 = vst [vmem:[%s1766] ss:$9 sm:$0xff] %v1385
        %1810 = vst [vmem:[%s1768] ss:$9 sm:$0xff] %v1386
        %1811 = vst [vmem:[%s1770] ss:$9 sm:$0xff] %v1387
        %1812 = vst [vmem:[%s1772] ss:$9 sm:$0xff] %v1388
        %1813 = vst [vmem:[%s1774] ss:$9 sm:$0xff] %v1389
        %1814 = vst [vmem:[%s1776] ss:$9 sm:$0xff] %v1390
        %1815 = vst [vmem:[%s1778] ss:$9 sm:$0xff] %v1391
        %v1816 = vld [vmem:[#allocation1] sm:$0xff]
        %1817 = vst [vmem:[#allocation1] ss:$9 sm:$0xff] %v1384
        %1818 = vst [vmem:[%s1766] ss:$9 sm:$0xff] %v1385
        %1819 = vst [vmem:[%s1768] ss:$9 sm:$0xff] %v1386
        %1820 = vst [vmem:[%s1770] ss:$9 sm:$0xff] %v1387
        %1821 = vst [vmem:[%s1772] ss:$9 sm:$0xff] %v1388
        %1822 = vst [vmem:[%s1774] ss:$9 sm:$0xff] %v1389
        %1823 = vst [vmem:[%s1776] ss:$9 sm:$0xff] %v1390
        %1824 = vst [vmem:[%s1778] ss:$9 sm:$0xff] %v1391
        %v1825 = vld [vmem:[#allocation1] sm:$0xff]
        %1826 = vst [vmem:[#allocation1] ss:$9 sm:$0xff] %v1384
        %1827 = vst [vmem:[%s1766] ss:$9 sm:$0xff] %v1385
        %1828 = vst [vmem:[%s1768] ss:$9 sm:$0xff] %v1386
        %1829 = vst [vmem:[%s1770] ss:$9 sm:$0xff] %v1387
        %1830 = vst [vmem:[%s1772] ss:$9 sm:$0xff] %v1388
        %1831 = vst [vmem:[%s1774] ss:$9 sm:$0xff] %v1389
        %1832 = vst [vmem:[%s1776] ss:$9 sm:$0xff] %v1390
        %1833 = vst [vmem:[%s1778] ss:$9 sm:$0xff] %v1391
        %v1834 = vld [vmem:[#allocation1] sm:$0xff]
        %1835 = vst [vmem:[#allocation1] ss:$9 sm:$0xff] %v1384
        %1836 = vst [vmem:[%s1766] ss:$9 sm:$0xff] %v1385
        %1837 = vst [vmem:[%s1768] ss:$9 sm:$0xff] %v1386
        %1838 = vst [vmem:[%s1770] ss:$9 sm:$0xff] %v1387
        %1839 = vst [vmem:[%s1772] ss:$9 sm:$0xff] %v1388
        %1840 = vst [vmem:[%s1774] ss:$9 sm:$0xff] %v1389
        %1841 = vst [vmem:[%s1776] ss:$9 sm:$0xff] %v1390
        %1842 = vst [vmem:[%s1778] ss:$9 sm:$0xff] %v1391
        %v1843 = vld [vmem:[#allocation1] sm:$0xff]
        %v1852 = vmul.f32 %v1535, %v1780
        %v1853 = vmul.f32 %v1536, %v1789
        %v1854 = vmul.f32 %v1537, %v1798
        %v1855 = vmul.f32 %v1538, %v1807
        %v1856 = vmul.f32 %v1539, %v1816
        %v1857 = vmul.f32 %v1540, %v1825
        %v1858 = vmul.f32 %v1541, %v1834
        %v1859 = vmul.f32 %v1542, %v1843
        %v1860 = vadd.f32 %v1757, %v1852
        %v1861 = vadd.f32 %v1758, %v1853
        %v1862 = vadd.f32 %v1759, %v1854
        %v1863 = vadd.f32 %v1760, %v1855
        %v1864 = vadd.f32 %v1761, %v1856
        %v1865 = vadd.f32 %v1762, %v1857
        %v1866 = vadd.f32 %v1763, %v1858
        %v1867 = vadd.f32 %v1764, %v1859
        %v1868 = vadd.f32 %v1860, 0.0
        %v1869 = vadd.f32 %v1861, 0.0
        %v1870 = vadd.f32 %v1862, 0.0
        %v1871 = vadd.f32 %v1863, 0.0
        %v1872 = vadd.f32 %v1864, 0.0
        %v1873 = vadd.f32 %v1865, 0.0
        %v1874 = vadd.f32 %v1866, 0.0
        %v1875 = vadd.f32 %v1867, 0.0
        %v1876 = vld [vmem:[%s14] sm:$0xf]
        %v1877 = vld [vmem:[%s15] sm:$0xf]
        %vm1878 = vcmask 31744
        %v1880 = vsel %vm1878, %v1868, 0
        %v1883 = vsel %vm1878, %v1869, 0
        %v1886 = vsel %vm1878, %v1870, 0
        %v1889 = vsel %vm1878, %v1871, 0
        %v1892 = vsel %vm1878, %v1872, 0
        %v1895 = vsel %vm1878, %v1873, 0
        %v1898 = vsel %vm1878, %v1874, 0
        %v1901 = vsel %vm1878, %v1875, 0
        %vm1903 = vcmask 1043456
        %v1905 = vsel %vm1903, %v1877, 0
        %1907 = vmatpush.msra.mxu0 0.0
        %1908 = vmatpush.msra.mxu0 0.0
        %1909 = vmatpush.msra.mxu0 0.0
        %1910 = vmatpush.msra.mxu0 0.0
        %1911 = vmatpush.msra.mxu0 0.0
        %1912 = vmatpush.msra.mxu0 0.0
        %1913 = vmatpush.msra.mxu0 0.0
        %1914 = vmatpush.msra.mxu0 0.0
        %1915 = vmatpush.msra.mxu0 0.0
        %1916 = vmatpush.msra.mxu0 0.0
        %1917 = vmatpush.msra.mxu0 0.0
        %1918 = vmatpush.msra.mxu0 0.0
        %1919 = vmatpush.msra.mxu0 0.0
        %1920 = vmatpush.msra.mxu0 0.0
        %1921 = vmatpush.msra.mxu0 0.0
        %1922 = vmatpush.msra.mxu0 %v1905
        %1923 = vmatmul.f32.gmra.mxu0 %v1880
        %v1924 = vpop.f32.mrf.mxu0
        %v1925 = vadd.f32 0.0, %v1924
        %1926 = vmatmul.f32.gmra.mxu0 %v1883
        %v1927 = vpop.f32.mrf.mxu0
        %v1928 = vadd.f32 0.0, %v1927
        %1929 = vmatmul.f32.gmra.mxu0 %v1886
        %v1930 = vpop.f32.mrf.mxu0
        %v1931 = vadd.f32 0.0, %v1930
        %1932 = vmatmul.f32.gmra.mxu0 %v1889
        %v1933 = vpop.f32.mrf.mxu0
        %v1934 = vadd.f32 0.0, %v1933
        %1935 = vmatmul.f32.gmra.mxu0 %v1892
        %v1936 = vpop.f32.mrf.mxu0
        %v1937 = vadd.f32 0.0, %v1936
        %1938 = vmatmul.f32.gmra.mxu0 %v1895
        %v1939 = vpop.f32.mrf.mxu0
        %v1940 = vadd.f32 0.0, %v1939
        %1941 = vmatmul.f32.gmra.mxu0 %v1898
        %v1942 = vpop.f32.mrf.mxu0
        %v1943 = vadd.f32 0.0, %v1942
        %1944 = vmatmul.f32.gmra.mxu0 %v1901
        %v1945 = vpop.f32.mrf.mxu0
        %v1946 = vadd.f32 0.0, %v1945
        %1947 = vdwg.mxu0
        %v1949 = vsel %vm1878, %v1662, 0
        %v1952 = vsel %vm1878, %v1663, 0
        %v1955 = vsel %vm1878, %v1664, 0
        %v1958 = vsel %vm1878, %v1665, 0
        %v1961 = vsel %vm1878, %v1666, 0
        %v1964 = vsel %vm1878, %v1667, 0
        %v1967 = vsel %vm1878, %v1668, 0
        %v1970 = vsel %vm1878, %v1669, 0
        %v1973 = vsel %vm1903, %v1876, 0
        %1975 = vmatpush.msra.mxu0 0.0
        %1976 = vmatpush.msra.mxu0 0.0
        %1977 = vmatpush.msra.mxu0 0.0
        %1978 = vmatpush.msra.mxu0 0.0
        %1979 = vmatpush.msra.mxu0 0.0
        %1980 = vmatpush.msra.mxu0 0.0
        %1981 = vmatpush.msra.mxu0 0.0
        %1982 = vmatpush.msra.mxu0 0.0
        %1983 = vmatpush.msra.mxu0 0.0
        %1984 = vmatpush.msra.mxu0 0.0
        %1985 = vmatpush.msra.mxu0 0.0
        %1986 = vmatpush.msra.mxu0 0.0
        %1987 = vmatpush.msra.mxu0 0.0
        %1988 = vmatpush.msra.mxu0 0.0
        %1989 = vmatpush.msra.mxu0 0.0
        %1990 = vmatpush.msra.mxu0 %v1973
        %1991 = vmatmul.f32.gmra.mxu0 %v1949
        %v1992 = vpop.f32.mrf.mxu0
        %v1993 = vadd.f32 %v1925, %v1992
        %1994 = vmatmul.f32.gmra.mxu0 %v1952
        %v1995 = vpop.f32.mrf.mxu0
        %v1996 = vadd.f32 %v1928, %v1995
        %1997 = vmatmul.f32.gmra.mxu0 %v1955
        %v1998 = vpop.f32.mrf.mxu0
        %v1999 = vadd.f32 %v1931, %v1998
        %2000 = vmatmul.f32.gmra.mxu0 %v1958
        %v2001 = vpop.f32.mrf.mxu0
        %v2002 = vadd.f32 %v1934, %v2001
        %2003 = vmatmul.f32.gmra.mxu0 %v1961
        %v2004 = vpop.f32.mrf.mxu0
        %v2005 = vadd.f32 %v1937, %v2004
        %2006 = vmatmul.f32.gmra.mxu0 %v1964
        %v2007 = vpop.f32.mrf.mxu0
        %v2008 = vadd.f32 %v1940, %v2007
        %2009 = vmatmul.f32.gmra.mxu0 %v1967
        %v2010 = vpop.f32.mrf.mxu0
        %v2011 = vadd.f32 %v1943, %v2010
        %2012 = vmatmul.f32.gmra.mxu0 %v1970
        %v2013 = vpop.f32.mrf.mxu0
        %v2014 = vadd.f32 %v1946, %v2013
        %2015 = vdwg.mxu0
        %v2016 = vld [vmem:[%s1207] sm:$0x7]
        %v2017 = vld [vmem:[%s1207 + $0x4] sm:$0x7]
        %v2018 = vld [vmem:[%s1207 + $0x8] sm:$0x7]
        %v2019 = vld [vmem:[%s1207 + $0xc] sm:$0x7]
        %v2020 = vld [vmem:[%s1207 + $0x10] sm:$0x7]
        %v2021 = vld [vmem:[%s1207 + $0x14] sm:$0x7]
        %v2022 = vld [vmem:[%s1207 + $0x18] sm:$0x7]
        %v2023 = vld [vmem:[%s1207 + $0x1c] sm:$0x7]
        %v2024 = vld [vmem:[%s1217] sm:$0x7]
        %v2025 = vld [vmem:[%s1217 + $0x4] sm:$0x7]
        %v2026 = vld [vmem:[%s1217 + $0x8] sm:$0x7]
        %v2027 = vld [vmem:[%s1217 + $0xc] sm:$0x7]
        %v2028 = vld [vmem:[%s1217 + $0x10] sm:$0x7]
        %v2029 = vld [vmem:[%s1217 + $0x14] sm:$0x7]
        %v2030 = vld [vmem:[%s1217 + $0x18] sm:$0x7]
        %v2031 = vld [vmem:[%s1217 + $0x1c] sm:$0x7]
        %v2032 = vld [vmem:[%s1227] sm:$0x7]
        %v2033 = vld [vmem:[%s1227 + $0x4] sm:$0x7]
        %v2034 = vld [vmem:[%s1227 + $0x8] sm:$0x7]
        %v2035 = vld [vmem:[%s1227 + $0xc] sm:$0x7]
        %v2036 = vld [vmem:[%s1227 + $0x10] sm:$0x7]
        %v2037 = vld [vmem:[%s1227 + $0x14] sm:$0x7]
        %v2038 = vld [vmem:[%s1227 + $0x18] sm:$0x7]
        %v2039 = vld [vmem:[%s1227 + $0x1c] sm:$0x7]
        %v2040 = vld [vmem:[%s1237] sm:$0x7]
        %v2041 = vld [vmem:[%s1237 + $0x4] sm:$0x7]
        %v2042 = vld [vmem:[%s1237 + $0x8] sm:$0x7]
        %v2043 = vld [vmem:[%s1237 + $0xc] sm:$0x7]
        %v2044 = vld [vmem:[%s1237 + $0x10] sm:$0x7]
        %v2045 = vld [vmem:[%s1237 + $0x14] sm:$0x7]
        %v2046 = vld [vmem:[%s1237 + $0x18] sm:$0x7]
        %v2047 = vld [vmem:[%s1237 + $0x1c] sm:$0x7]
        %v2048 = vmul.f32 %v2032, -1.0
        %v2049 = vmul.f32 %v2033, -1.0
        %v2050 = vmul.f32 %v2034, -1.0
        %v2051 = vmul.f32 %v2035, -1.0
        %v2052 = vmul.f32 %v2036, -1.0
        %v2053 = vmul.f32 %v2037, -1.0
        %v2054 = vmul.f32 %v2038, -1.0
        %v2055 = vmul.f32 %v2039, -1.0
        %v2056 = vmul.f32 %v2040, -1.0
        %v2057 = vmul.f32 %v2041, -1.0
        %v2058 = vmul.f32 %v2042, -1.0
        %v2059 = vmul.f32 %v2043, -1.0
        %v2060 = vmul.f32 %v2044, -1.0
        %v2061 = vmul.f32 %v2045, -1.0
        %v2062 = vmul.f32 %v2046, -1.0
        %v2063 = vmul.f32 %v2047, -1.0
        %v2064 = vperm.slane %v2016, 0
        %v2065 = vperm.slane %v2017, 0
        %v2066 = vperm.slane %v2018, 0
        %v2067 = vperm.slane %v2019, 0
        %v2068 = vperm.slane %v2020, 0
        %v2069 = vperm.slane %v2021, 0
        %v2070 = vperm.slane %v2022, 0
        %v2071 = vperm.slane %v2023, 0
        %v2080 = vrot.slane %v2048, 2
        %v2081 = vrot.slane %v2049, 1
        %vm2082 = vcmask 1041409
        %v2083 = vsel %vm2082, %v2081, %v2080
        %vm2084 = vcmask 1042434
        %v2085 = vsel %vm2084, %v2050, %v2083
        %v2086 = vrot.slane %v2051, 7
        %vm2087 = vcmask 1043459
        %v2088 = vsel %vm2087, %v2086, %v2085
        %v2089 = vrot.slane %v2052, 6
        %vm2090 = vcmask 1044484
        %v2091 = vsel %vm2090, %v2089, %v2088
        %v2092 = vrot.slane %v2053, 5
        %vm2093 = vcmask 1045509
        %v2094 = vsel %vm2093, %v2092, %v2091
        %v2095 = vrot.slane %v2054, 4
        %vm2096 = vcmask 1046534
        %v2097 = vsel %vm2096, %v2095, %v2094
        %v2098 = vrot.slane %v2055, 3
        %vm2099 = vcmask 1047559
        %v2100 = vsel %vm2099, %v2098, %v2097
        %v2102 = vmul.f32 %v2064, %v2100
        %v2103 = vmul.f32 %v2065, %v2100
        %v2104 = vmul.f32 %v2066, %v2100
        %v2105 = vmul.f32 %v2067, %v2100
        %v2106 = vmul.f32 %v2068, %v2100
        %v2107 = vmul.f32 %v2069, %v2100
        %v2108 = vmul.f32 %v2070, %v2100
        %v2109 = vmul.f32 %v2071, %v2100
        %v2110 = vperm.slane %v2024, 0
        %v2111 = vperm.slane %v2025, 0
        %v2112 = vperm.slane %v2026, 0
        %v2113 = vperm.slane %v2027, 0
        %v2114 = vperm.slane %v2028, 0
        %v2115 = vperm.slane %v2029, 0
        %v2116 = vperm.slane %v2030, 0
        %v2117 = vperm.slane %v2031, 0
        %v2126 = vrot.slane %v2056, 2
        %v2127 = vrot.slane %v2057, 1
        %v2128 = vsel %vm2082, %v2127, %v2126
        %v2129 = vsel %vm2084, %v2058, %v2128
        %v2130 = vrot.slane %v2059, 7
        %v2131 = vsel %vm2087, %v2130, %v2129
        %v2132 = vrot.slane %v2060, 6
        %v2133 = vsel %vm2090, %v2132, %v2131
        %v2134 = vrot.slane %v2061, 5
        %v2135 = vsel %vm2093, %v2134, %v2133
        %v2136 = vrot.slane %v2062, 4
        %v2137 = vsel %vm2096, %v2136, %v2135
        %v2138 = vrot.slane %v2063, 3
        %v2139 = vsel %vm2099, %v2138, %v2137
        %v2141 = vmul.f32 %v2110, %v2139
        %v2142 = vmul.f32 %v2111, %v2139
        %v2143 = vmul.f32 %v2112, %v2139
        %v2144 = vmul.f32 %v2113, %v2139
        %v2145 = vmul.f32 %v2114, %v2139
        %v2146 = vmul.f32 %v2115, %v2139
        %v2147 = vmul.f32 %v2116, %v2139
        %v2148 = vmul.f32 %v2117, %v2139
        %v2149 = vsub.f32 %v2102, %v2141
        %v2150 = vsub.f32 %v2103, %v2142
        %v2151 = vsub.f32 %v2104, %v2143
        %v2152 = vsub.f32 %v2105, %v2144
        %v2153 = vsub.f32 %v2106, %v2145
        %v2154 = vsub.f32 %v2107, %v2146
        %v2155 = vsub.f32 %v2108, %v2147
        %v2156 = vsub.f32 %v2109, %v2148
        %v2157 = vadd.f32 %v2149, 0.0
        %v2158 = vadd.f32 %v2150, 0.0
        %v2159 = vadd.f32 %v2151, 0.0
        %v2160 = vadd.f32 %v2152, 0.0
        %v2161 = vadd.f32 %v2153, 0.0
        %v2162 = vadd.f32 %v2154, 0.0
        %v2163 = vadd.f32 %v2155, 0.0
        %v2164 = vadd.f32 %v2156, 0.0
        %v2165 = vmul.f32 %v2064, %v2139
        %v2166 = vmul.f32 %v2065, %v2139
        %v2167 = vmul.f32 %v2066, %v2139
        %v2168 = vmul.f32 %v2067, %v2139
        %v2169 = vmul.f32 %v2068, %v2139
        %v2170 = vmul.f32 %v2069, %v2139
        %v2171 = vmul.f32 %v2070, %v2139
        %v2172 = vmul.f32 %v2071, %v2139
        %v2173 = vmul.f32 %v2110, %v2100
        %v2174 = vmul.f32 %v2111, %v2100
        %v2175 = vmul.f32 %v2112, %v2100
        %v2176 = vmul.f32 %v2113, %v2100
        %v2177 = vmul.f32 %v2114, %v2100
        %v2178 = vmul.f32 %v2115, %v2100
        %v2179 = vmul.f32 %v2116, %v2100
        %v2180 = vmul.f32 %v2117, %v2100
        %v2181 = vadd.f32 %v2165, %v2173
        %v2182 = vadd.f32 %v2166, %v2174
        %v2183 = vadd.f32 %v2167, %v2175
        %v2184 = vadd.f32 %v2168, %v2176
        %v2185 = vadd.f32 %v2169, %v2177
        %v2186 = vadd.f32 %v2170, %v2178
        %v2187 = vadd.f32 %v2171, %v2179
        %v2188 = vadd.f32 %v2172, %v2180
        %v2189 = vadd.f32 %v2181, 0.0
        %v2190 = vadd.f32 %v2182, 0.0
        %v2191 = vadd.f32 %v2183, 0.0
        %v2192 = vadd.f32 %v2184, 0.0
        %v2193 = vadd.f32 %v2185, 0.0
        %v2194 = vadd.f32 %v2186, 0.0
        %v2195 = vadd.f32 %v2187, 0.0
        %v2196 = vadd.f32 %v2188, 0.0
        %v2197 = vperm.slane %v2016, 1
        %v2198 = vperm.slane %v2017, 1
        %v2199 = vperm.slane %v2018, 1
        %v2200 = vperm.slane %v2019, 1
        %v2201 = vperm.slane %v2020, 1
        %v2202 = vperm.slane %v2021, 1
        %v2203 = vperm.slane %v2022, 1
        %v2204 = vperm.slane %v2023, 1
        %v2213 = vrot.slane %v2032, 1
        %v2214 = vsel %vm2082, %v2033, %v2213
        %v2215 = vrot.slane %v2034, 7
        %v2216 = vsel %vm2084, %v2215, %v2214
        %v2217 = vrot.slane %v2035, 6
        %v2218 = vsel %vm2087, %v2217, %v2216
        %v2219 = vrot.slane %v2036, 5
        %v2220 = vsel %vm2090, %v2219, %v2218
        %v2221 = vrot.slane %v2037, 4
        %v2222 = vsel %vm2093, %v2221, %v2220
        %v2223 = vrot.slane %v2038, 3
        %v2224 = vsel %vm2096, %v2223, %v2222
        %v2225 = vrot.slane %v2039, 2
        %v2226 = vsel %vm2099, %v2225, %v2224
        %v2228 = vmul.f32 %v2197, %v2226
        %v2229 = vmul.f32 %v2198, %v2226
        %v2230 = vmul.f32 %v2199, %v2226
        %v2231 = vmul.f32 %v2200, %v2226
        %v2232 = vmul.f32 %v2201, %v2226
        %v2233 = vmul.f32 %v2202, %v2226
        %v2234 = vmul.f32 %v2203, %v2226
        %v2235 = vmul.f32 %v2204, %v2226
        %v2236 = vperm.slane %v2024, 1
        %v2237 = vperm.slane %v2025, 1
        %v2238 = vperm.slane %v2026, 1
        %v2239 = vperm.slane %v2027, 1
        %v2240 = vperm.slane %v2028, 1
        %v2241 = vperm.slane %v2029, 1
        %v2242 = vperm.slane %v2030, 1
        %v2243 = vperm.slane %v2031, 1
        %v2252 = vrot.slane %v2040, 1
        %v2253 = vsel %vm2082, %v2041, %v2252
        %v2254 = vrot.slane %v2042, 7
        %v2255 = vsel %vm2084, %v2254, %v2253
        %v2256 = vrot.slane %v2043, 6
        %v2257 = vsel %vm2087, %v2256, %v2255
        %v2258 = vrot.slane %v2044, 5
        %v2259 = vsel %vm2090, %v2258, %v2257
        %v2260 = vrot.slane %v2045, 4
        %v2261 = vsel %vm2093, %v2260, %v2259
        %v2262 = vrot.slane %v2046, 3
        %v2263 = vsel %vm2096, %v2262, %v2261
        %v2264 = vrot.slane %v2047, 2
        %v2265 = vsel %vm2099, %v2264, %v2263
        %v2267 = vmul.f32 %v2236, %v2265
        %v2268 = vmul.f32 %v2237, %v2265
        %v2269 = vmul.f32 %v2238, %v2265
        %v2270 = vmul.f32 %v2239, %v2265
        %v2271 = vmul.f32 %v2240, %v2265
        %v2272 = vmul.f32 %v2241, %v2265
        %v2273 = vmul.f32 %v2242, %v2265
        %v2274 = vmul.f32 %v2243, %v2265
        %v2275 = vsub.f32 %v2228, %v2267
        %v2276 = vsub.f32 %v2229, %v2268
        %v2277 = vsub.f32 %v2230, %v2269
        %v2278 = vsub.f32 %v2231, %v2270
        %v2279 = vsub.f32 %v2232, %v2271
        %v2280 = vsub.f32 %v2233, %v2272
        %v2281 = vsub.f32 %v2234, %v2273
        %v2282 = vsub.f32 %v2235, %v2274
        %v2283 = vadd.f32 %v2157, %v2275
        %v2284 = vadd.f32 %v2158, %v2276
        %v2285 = vadd.f32 %v2159, %v2277
        %v2286 = vadd.f32 %v2160, %v2278
        %v2287 = vadd.f32 %v2161, %v2279
        %v2288 = vadd.f32 %v2162, %v2280
        %v2289 = vadd.f32 %v2163, %v2281
        %v2290 = vadd.f32 %v2164, %v2282
        %v2291 = vmul.f32 %v2197, %v2265
        %v2292 = vmul.f32 %v2198, %v2265
        %v2293 = vmul.f32 %v2199, %v2265
        %v2294 = vmul.f32 %v2200, %v2265
        %v2295 = vmul.f32 %v2201, %v2265
        %v2296 = vmul.f32 %v2202, %v2265
        %v2297 = vmul.f32 %v2203, %v2265
        %v2298 = vmul.f32 %v2204, %v2265
        %v2299 = vmul.f32 %v2236, %v2226
        %v2300 = vmul.f32 %v2237, %v2226
        %v2301 = vmul.f32 %v2238, %v2226
        %v2302 = vmul.f32 %v2239, %v2226
        %v2303 = vmul.f32 %v2240, %v2226
        %v2304 = vmul.f32 %v2241, %v2226
        %v2305 = vmul.f32 %v2242, %v2226
        %v2306 = vmul.f32 %v2243, %v2226
        %v2307 = vadd.f32 %v2291, %v2299
        %v2308 = vadd.f32 %v2292, %v2300
        %v2309 = vadd.f32 %v2293, %v2301
        %v2310 = vadd.f32 %v2294, %v2302
        %v2311 = vadd.f32 %v2295, %v2303
        %v2312 = vadd.f32 %v2296, %v2304
        %v2313 = vadd.f32 %v2297, %v2305
        %v2314 = vadd.f32 %v2298, %v2306
        %v2315 = vadd.f32 %v2189, %v2307
        %v2316 = vadd.f32 %v2190, %v2308
        %v2317 = vadd.f32 %v2191, %v2309
        %v2318 = vadd.f32 %v2192, %v2310
        %v2319 = vadd.f32 %v2193, %v2311
        %v2320 = vadd.f32 %v2194, %v2312
        %v2321 = vadd.f32 %v2195, %v2313
        %v2322 = vadd.f32 %v2196, %v2314
        %v2323 = vperm.slane %v2016, 2
        %v2324 = vperm.slane %v2017, 2
        %v2325 = vperm.slane %v2018, 2
        %v2326 = vperm.slane %v2019, 2
        %v2327 = vperm.slane %v2020, 2
        %v2328 = vperm.slane %v2021, 2
        %v2329 = vperm.slane %v2022, 2
        %v2330 = vperm.slane %v2023, 2
        %v2331 = vrot.slane %v2049, 7
        %v2332 = vsel %vm2082, %v2331, %v2048
        %v2333 = vrot.slane %v2050, 6
        %v2334 = vsel %vm2084, %v2333, %v2332
        %v2335 = vrot.slane %v2051, 5
        %v2336 = vsel %vm2087, %v2335, %v2334
        %v2337 = vrot.slane %v2052, 4
        %v2338 = vsel %vm2090, %v2337, %v2336
        %v2339 = vrot.slane %v2053, 3
        %v2340 = vsel %vm2093, %v2339, %v2338
        %v2341 = vrot.slane %v2054, 2
        %v2342 = vsel %vm2096, %v2341, %v2340
        %v2343 = vrot.slane %v2055, 1
        %v2344 = vsel %vm2099, %v2343, %v2342
        %v2346 = vmul.f32 %v2323, %v2344
        %v2347 = vmul.f32 %v2324, %v2344
        %v2348 = vmul.f32 %v2325, %v2344
        %v2349 = vmul.f32 %v2326, %v2344
        %v2350 = vmul.f32 %v2327, %v2344
        %v2351 = vmul.f32 %v2328, %v2344
        %v2352 = vmul.f32 %v2329, %v2344
        %v2353 = vmul.f32 %v2330, %v2344
        %v2354 = vperm.slane %v2024, 2
        %v2355 = vperm.slane %v2025, 2
        %v2356 = vperm.slane %v2026, 2
        %v2357 = vperm.slane %v2027, 2
        %v2358 = vperm.slane %v2028, 2
        %v2359 = vperm.slane %v2029, 2
        %v2360 = vperm.slane %v2030, 2
        %v2361 = vperm.slane %v2031, 2
        %v2362 = vrot.slane %v2057, 7
        %v2363 = vsel %vm2082, %v2362, %v2056
        %v2364 = vrot.slane %v2058, 6
        %v2365 = vsel %vm2084, %v2364, %v2363
        %v2366 = vrot.slane %v2059, 5
        %v2367 = vsel %vm2087, %v2366, %v2365
        %v2368 = vrot.slane %v2060, 4
        %v2369 = vsel %vm2090, %v2368, %v2367
        %v2370 = vrot.slane %v2061, 3
        %v2371 = vsel %vm2093, %v2370, %v2369
        %v2372 = vrot.slane %v2062, 2
        %v2373 = vsel %vm2096, %v2372, %v2371
        %v2374 = vrot.slane %v2063, 1
        %v2375 = vsel %vm2099, %v2374, %v2373
        %v2377 = vmul.f32 %v2354, %v2375
        %v2378 = vmul.f32 %v2355, %v2375
        %v2379 = vmul.f32 %v2356, %v2375
        %v2380 = vmul.f32 %v2357, %v2375
        %v2381 = vmul.f32 %v2358, %v2375
        %v2382 = vmul.f32 %v2359, %v2375
        %v2383 = vmul.f32 %v2360, %v2375
        %v2384 = vmul.f32 %v2361, %v2375
        %v2385 = vsub.f32 %v2346, %v2377
        %v2386 = vsub.f32 %v2347, %v2378
        %v2387 = vsub.f32 %v2348, %v2379
        %v2388 = vsub.f32 %v2349, %v2380
        %v2389 = vsub.f32 %v2350, %v2381
        %v2390 = vsub.f32 %v2351, %v2382
        %v2391 = vsub.f32 %v2352, %v2383
        %v2392 = vsub.f32 %v2353, %v2384
        %v2393 = vadd.f32 %v2283, %v2385
        %v2394 = vadd.f32 %v2284, %v2386
        %v2395 = vadd.f32 %v2285, %v2387
        %v2396 = vadd.f32 %v2286, %v2388
        %v2397 = vadd.f32 %v2287, %v2389
        %v2398 = vadd.f32 %v2288, %v2390
        %v2399 = vadd.f32 %v2289, %v2391
        %v2400 = vadd.f32 %v2290, %v2392
        %v2401 = vmul.f32 %v2323, %v2375
        %v2402 = vmul.f32 %v2324, %v2375
        %v2403 = vmul.f32 %v2325, %v2375
        %v2404 = vmul.f32 %v2326, %v2375
        %v2405 = vmul.f32 %v2327, %v2375
        %v2406 = vmul.f32 %v2328, %v2375
        %v2407 = vmul.f32 %v2329, %v2375
        %v2408 = vmul.f32 %v2330, %v2375
        %v2409 = vmul.f32 %v2354, %v2344
        %v2410 = vmul.f32 %v2355, %v2344
        %v2411 = vmul.f32 %v2356, %v2344
        %v2412 = vmul.f32 %v2357, %v2344
        %v2413 = vmul.f32 %v2358, %v2344
        %v2414 = vmul.f32 %v2359, %v2344
        %v2415 = vmul.f32 %v2360, %v2344
        %v2416 = vmul.f32 %v2361, %v2344
        %v2417 = vadd.f32 %v2401, %v2409
        %v2418 = vadd.f32 %v2402, %v2410
        %v2419 = vadd.f32 %v2403, %v2411
        %v2420 = vadd.f32 %v2404, %v2412
        %v2421 = vadd.f32 %v2405, %v2413
        %v2422 = vadd.f32 %v2406, %v2414
        %v2423 = vadd.f32 %v2407, %v2415
        %v2424 = vadd.f32 %v2408, %v2416
        %v2425 = vadd.f32 %v2315, %v2417
        %v2426 = vadd.f32 %v2316, %v2418
        %v2427 = vadd.f32 %v2317, %v2419
        %v2428 = vadd.f32 %v2318, %v2420
        %v2429 = vadd.f32 %v2319, %v2421
        %v2430 = vadd.f32 %v2320, %v2422
        %v2431 = vadd.f32 %v2321, %v2423
        %v2432 = vadd.f32 %v2322, %v2424
        %v2433 = vld [vmem:[%s16] sm:$0xf]
        %v2435 = vsel %vm1878, %v2393, 0
        %v2438 = vsel %vm1878, %v2394, 0
        %v2441 = vsel %vm1878, %v2395, 0
        %v2444 = vsel %vm1878, %v2396, 0
        %v2447 = vsel %vm1878, %v2397, 0
        %v2450 = vsel %vm1878, %v2398, 0
        %v2453 = vsel %vm1878, %v2399, 0
        %v2456 = vsel %vm1878, %v2400, 0
        %v2459 = vsel %vm1903, %v2433, 0
        %2461 = vmatpush.msra.mxu0 0.0
        %2462 = vmatpush.msra.mxu0 0.0
        %2463 = vmatpush.msra.mxu0 0.0
        %2464 = vmatpush.msra.mxu0 0.0
        %2465 = vmatpush.msra.mxu0 0.0
        %2466 = vmatpush.msra.mxu0 0.0
        %2467 = vmatpush.msra.mxu0 0.0
        %2468 = vmatpush.msra.mxu0 0.0
        %2469 = vmatpush.msra.mxu0 0.0
        %2470 = vmatpush.msra.mxu0 0.0
        %2471 = vmatpush.msra.mxu0 0.0
        %2472 = vmatpush.msra.mxu0 0.0
        %2473 = vmatpush.msra.mxu0 0.0
        %2474 = vmatpush.msra.mxu0 0.0
        %2475 = vmatpush.msra.mxu0 0.0
        %2476 = vmatpush.msra.mxu0 %v2459
        %2477 = vmatmul.f32.gmra.mxu0 %v2435
        %v2478 = vpop.f32.mrf.mxu0
        %v2479 = vadd.f32 0.0, %v2478
        %2480 = vmatmul.f32.gmra.mxu0 %v2438
        %v2481 = vpop.f32.mrf.mxu0
        %v2482 = vadd.f32 0.0, %v2481
        %2483 = vmatmul.f32.gmra.mxu0 %v2441
        %v2484 = vpop.f32.mrf.mxu0
        %v2485 = vadd.f32 0.0, %v2484
        %2486 = vmatmul.f32.gmra.mxu0 %v2444
        %v2487 = vpop.f32.mrf.mxu0
        %v2488 = vadd.f32 0.0, %v2487
        %2489 = vmatmul.f32.gmra.mxu0 %v2447
        %v2490 = vpop.f32.mrf.mxu0
        %v2491 = vadd.f32 0.0, %v2490
        %2492 = vmatmul.f32.gmra.mxu0 %v2450
        %v2493 = vpop.f32.mrf.mxu0
        %v2494 = vadd.f32 0.0, %v2493
        %2495 = vmatmul.f32.gmra.mxu0 %v2453
        %v2496 = vpop.f32.mrf.mxu0
        %v2497 = vadd.f32 0.0, %v2496
        %2498 = vmatmul.f32.gmra.mxu0 %v2456
        %v2499 = vpop.f32.mrf.mxu0
        %v2500 = vadd.f32 0.0, %v2499
        %2501 = vdwg.mxu0
        %v2502 = vadd.f32 %v1993, %v2479
        %v2503 = vadd.f32 %v1996, %v2482
        %v2504 = vadd.f32 %v1999, %v2485
        %v2505 = vadd.f32 %v2002, %v2488
        %v2506 = vadd.f32 %v2005, %v2491
        %v2507 = vadd.f32 %v2008, %v2494
        %v2508 = vadd.f32 %v2011, %v2497
        %v2509 = vadd.f32 %v2014, %v2500
        %v2510 = vld [vmem:[%s17] sm:$0xf]
        %v2512 = vsel %vm1878, %v2425, 0
        %v2515 = vsel %vm1878, %v2426, 0
        %v2518 = vsel %vm1878, %v2427, 0
        %v2521 = vsel %vm1878, %v2428, 0
        %v2524 = vsel %vm1878, %v2429, 0
        %v2527 = vsel %vm1878, %v2430, 0
        %v2530 = vsel %vm1878, %v2431, 0
        %v2533 = vsel %vm1878, %v2432, 0
        %v2536 = vsel %vm1903, %v2510, 0
        %2538 = vmatpush.msra.mxu0 0.0
        %2539 = vmatpush.msra.mxu0 0.0
        %2540 = vmatpush.msra.mxu0 0.0
        %2541 = vmatpush.msra.mxu0 0.0
        %2542 = vmatpush.msra.mxu0 0.0
        %2543 = vmatpush.msra.mxu0 0.0
        %2544 = vmatpush.msra.mxu0 0.0
        %2545 = vmatpush.msra.mxu0 0.0
        %2546 = vmatpush.msra.mxu0 0.0
        %2547 = vmatpush.msra.mxu0 0.0
        %2548 = vmatpush.msra.mxu0 0.0
        %2549 = vmatpush.msra.mxu0 0.0
        %2550 = vmatpush.msra.mxu0 0.0
        %2551 = vmatpush.msra.mxu0 0.0
        %2552 = vmatpush.msra.mxu0 0.0
        %2553 = vmatpush.msra.mxu0 %v2536
        %2554 = vmatmul.f32.gmra.mxu0 %v2512
        %v2555 = vpop.f32.mrf.mxu0
        %v2556 = vadd.f32 0.0, %v2555
        %2557 = vmatmul.f32.gmra.mxu0 %v2515
        %v2558 = vpop.f32.mrf.mxu0
        %v2559 = vadd.f32 0.0, %v2558
        %2560 = vmatmul.f32.gmra.mxu0 %v2518
        %v2561 = vpop.f32.mrf.mxu0
        %v2562 = vadd.f32 0.0, %v2561
        %2563 = vmatmul.f32.gmra.mxu0 %v2521
        %v2564 = vpop.f32.mrf.mxu0
        %v2565 = vadd.f32 0.0, %v2564
        %2566 = vmatmul.f32.gmra.mxu0 %v2524
        %v2567 = vpop.f32.mrf.mxu0
        %v2568 = vadd.f32 0.0, %v2567
        %2569 = vmatmul.f32.gmra.mxu0 %v2527
        %v2570 = vpop.f32.mrf.mxu0
        %v2571 = vadd.f32 0.0, %v2570
        %2572 = vmatmul.f32.gmra.mxu0 %v2530
        %v2573 = vpop.f32.mrf.mxu0
        %v2574 = vadd.f32 0.0, %v2573
        %2575 = vmatmul.f32.gmra.mxu0 %v2533
        %v2576 = vpop.f32.mrf.mxu0
        %v2577 = vadd.f32 0.0, %v2576
        %2578 = vdwg.mxu0
        %v2579 = vadd.f32 %v2502, %v2556
        %v2580 = vadd.f32 %v2503, %v2559
        %v2581 = vadd.f32 %v2504, %v2562
        %v2582 = vadd.f32 %v2505, %v2565
        %v2583 = vadd.f32 %v2506, %v2568
        %v2584 = vadd.f32 %v2507, %v2571
        %v2585 = vadd.f32 %v2508, %v2574
        %v2586 = vadd.f32 %v2509, %v2577
        %v2587 = vld [vmem:[%s1250] sm:$0xff]
        %v2588 = vld [vmem:[%s1250 + $0x8] sm:$0xff]
        %v2589 = vld [vmem:[%s1250 + $0x10] sm:$0xff]
        %v2590 = vld [vmem:[%s1250 + $0x18] sm:$0xff]
        %v2591 = vld [vmem:[%s1250 + $0x20] sm:$0xff]
        %v2592 = vld [vmem:[%s1250 + $0x28] sm:$0xff]
        %v2593 = vld [vmem:[%s1250 + $0x30] sm:$0xff]
        %v2594 = vld [vmem:[%s1250 + $0x38] sm:$0xff]
        %v2595 = vld [vmem:[%s964] sm:$0xff]
        %v2596 = vld [vmem:[%s964 + $0x8] sm:$0xff]
        %v2597 = vld [vmem:[%s964 + $0x10] sm:$0xff]
        %v2598 = vld [vmem:[%s964 + $0x18] sm:$0xff]
        %v2599 = vld [vmem:[%s964 + $0x20] sm:$0xff]
        %v2600 = vld [vmem:[%s964 + $0x28] sm:$0xff]
        %v2601 = vld [vmem:[%s964 + $0x30] sm:$0xff]
        %v2602 = vld [vmem:[%s964 + $0x38] sm:$0xff]
        %v2603 = vld [vmem:[%s18] sm:$0xff]
        %v2604 = vld [vmem:[%s19] sm:$0xff]
        %vm2605 = vcmask 64512
        %v2607 = vsel %vm2605, %v2595, 0
        %v2610 = vsel %vm2605, %v2596, 0
        %v2613 = vsel %vm2605, %v2597, 0
        %v2616 = vsel %vm2605, %v2598, 0
        %v2619 = vsel %vm2605, %v2599, 0
        %v2622 = vsel %vm2605, %v2600, 0
        %v2625 = vsel %vm2605, %v2601, 0
        %v2628 = vsel %vm2605, %v2602, 0
        %2630 = vmatpush.msra.mxu0 0.0
        %2631 = vmatpush.msra.mxu0 0.0
        %2632 = vmatpush.msra.mxu0 0.0
        %2633 = vmatpush.msra.mxu0 0.0
        %2634 = vmatpush.msra.mxu0 0.0
        %2635 = vmatpush.msra.mxu0 0.0
        %2636 = vmatpush.msra.mxu0 0.0
        %2637 = vmatpush.msra.mxu0 0.0
        %2638 = vmatpush.msra.mxu0 0.0
        %2639 = vmatpush.msra.mxu0 0.0
        %2640 = vmatpush.msra.mxu0 0.0
        %2641 = vmatpush.msra.mxu0 0.0
        %2642 = vmatpush.msra.mxu0 0.0
        %2643 = vmatpush.msra.mxu0 0.0
        %2644 = vmatpush.msra.mxu0 0.0
        %2645 = vmatpush.msra.mxu0 %v2604
        %2646 = vmatmul.f32.gmra.mxu0 %v2607
        %v2647 = vpop.f32.mrf.mxu0
        %v2648 = vadd.f32 0.0, %v2647
        %2649 = vmatmul.f32.gmra.mxu0 %v2610
        %v2650 = vpop.f32.mrf.mxu0
        %v2651 = vadd.f32 0.0, %v2650
        %2652 = vmatmul.f32.gmra.mxu0 %v2613
        %v2653 = vpop.f32.mrf.mxu0
        %v2654 = vadd.f32 0.0, %v2653
        %2655 = vmatmul.f32.gmra.mxu0 %v2616
        %v2656 = vpop.f32.mrf.mxu0
        %v2657 = vadd.f32 0.0, %v2656
        %2658 = vmatmul.f32.gmra.mxu0 %v2619
        %v2659 = vpop.f32.mrf.mxu0
        %v2660 = vadd.f32 0.0, %v2659
        %2661 = vmatmul.f32.gmra.mxu0 %v2622
        %v2662 = vpop.f32.mrf.mxu0
        %v2663 = vadd.f32 0.0, %v2662
        %2664 = vmatmul.f32.gmra.mxu0 %v2625
        %v2665 = vpop.f32.mrf.mxu0
        %v2666 = vadd.f32 0.0, %v2665
        %2667 = vmatmul.f32.gmra.mxu0 %v2628
        %v2668 = vpop.f32.mrf.mxu0
        %v2669 = vadd.f32 0.0, %v2668
        %2670 = vdwg.mxu0
        %v2672 = vsel %vm2605, %v2587, 0
        %v2675 = vsel %vm2605, %v2588, 0
        %v2678 = vsel %vm2605, %v2589, 0
        %v2681 = vsel %vm2605, %v2590, 0
        %v2684 = vsel %vm2605, %v2591, 0
        %v2687 = vsel %vm2605, %v2592, 0
        %v2690 = vsel %vm2605, %v2593, 0
        %v2693 = vsel %vm2605, %v2594, 0
        %2695 = vmatpush.msra.mxu0 0.0
        %2696 = vmatpush.msra.mxu0 0.0
        %2697 = vmatpush.msra.mxu0 0.0
        %2698 = vmatpush.msra.mxu0 0.0
        %2699 = vmatpush.msra.mxu0 0.0
        %2700 = vmatpush.msra.mxu0 0.0
        %2701 = vmatpush.msra.mxu0 0.0
        %2702 = vmatpush.msra.mxu0 0.0
        %2703 = vmatpush.msra.mxu0 0.0
        %2704 = vmatpush.msra.mxu0 0.0
        %2705 = vmatpush.msra.mxu0 0.0
        %2706 = vmatpush.msra.mxu0 0.0
        %2707 = vmatpush.msra.mxu0 0.0
        %2708 = vmatpush.msra.mxu0 0.0
        %2709 = vmatpush.msra.mxu0 0.0
        %2710 = vmatpush.msra.mxu0 %v2603
        %2711 = vmatmul.f32.gmra.mxu0 %v2672
        %v2712 = vpop.f32.mrf.mxu0
        %v2713 = vadd.f32 %v2648, %v2712
        %2714 = vmatmul.f32.gmra.mxu0 %v2675
        %v2715 = vpop.f32.mrf.mxu0
        %v2716 = vadd.f32 %v2651, %v2715
        %2717 = vmatmul.f32.gmra.mxu0 %v2678
        %v2718 = vpop.f32.mrf.mxu0
        %v2719 = vadd.f32 %v2654, %v2718
        %2720 = vmatmul.f32.gmra.mxu0 %v2681
        %v2721 = vpop.f32.mrf.mxu0
        %v2722 = vadd.f32 %v2657, %v2721
        %2723 = vmatmul.f32.gmra.mxu0 %v2684
        %v2724 = vpop.f32.mrf.mxu0
        %v2725 = vadd.f32 %v2660, %v2724
        %2726 = vmatmul.f32.gmra.mxu0 %v2687
        %v2727 = vpop.f32.mrf.mxu0
        %v2728 = vadd.f32 %v2663, %v2727
        %2729 = vmatmul.f32.gmra.mxu0 %v2690
        %v2730 = vpop.f32.mrf.mxu0
        %v2731 = vadd.f32 %v2666, %v2730
        %2732 = vmatmul.f32.gmra.mxu0 %v2693
        %v2733 = vpop.f32.mrf.mxu0
        %v2734 = vadd.f32 %v2669, %v2733
        %2735 = vdwg.mxu0
        %v2736 = vadd.f32 %v2713, %v2579
        %v2737 = vadd.f32 %v2716, %v2580
        %v2738 = vadd.f32 %v2719, %v2581
        %v2739 = vadd.f32 %v2722, %v2582
        %v2740 = vadd.f32 %v2725, %v2583
        %v2741 = vadd.f32 %v2728, %v2584
        %v2742 = vadd.f32 %v2731, %v2585
        %v2743 = vadd.f32 %v2734, %v2586
        %v2744 = vmul.f32 %v2736, %v1318
        %v2745 = vmul.f32 %v2737, %v1325
        %v2746 = vmul.f32 %v2738, %v1332
        %v2747 = vmul.f32 %v2739, %v1339
        %v2748 = vmul.f32 %v2740, %v1346
        %v2749 = vmul.f32 %v2741, %v1353
        %v2750 = vmul.f32 %v2742, %v1360
        %v2751 = vmul.f32 %v2743, %v1367
        %vm2752 = vcmask 130048
        %2753 = vst.msk [vmem:[%s1155] sm:$0xff] %vm2752, %v2744
        %2754 = vst.msk [vmem:[%s1155 + $0x8] sm:$0xff] %vm2752, %v2745
        %2755 = vst.msk [vmem:[%s1155 + $0x10] sm:$0xff] %vm2752, %v2746
        %2756 = vst.msk [vmem:[%s1155 + $0x18] sm:$0xff] %vm2752, %v2747
        %2757 = vst.msk [vmem:[%s1155 + $0x20] sm:$0xff] %vm2752, %v2748
        %2758 = vst.msk [vmem:[%s1155 + $0x28] sm:$0xff] %vm2752, %v2749
        %2759 = vst.msk [vmem:[%s1155 + $0x30] sm:$0xff] %vm2752, %v2750
        %2760 = vst.msk [vmem:[%s1155 + $0x38] sm:$0xff] %vm2752, %v2751
        %v2761 = vld [vmem:[%s974] sm:$0xff]
        %v2762 = vld [vmem:[%s974 + $0x8] sm:$0xff]
        %v2763 = vld [vmem:[%s974 + $0x10] sm:$0xff]
        %v2764 = vld [vmem:[%s974 + $0x18] sm:$0xff]
        %v2765 = vld [vmem:[%s974 + $0x20] sm:$0xff]
        %v2766 = vld [vmem:[%s974 + $0x28] sm:$0xff]
        %v2767 = vld [vmem:[%s974 + $0x30] sm:$0xff]
        %v2768 = vld [vmem:[%s974 + $0x38] sm:$0xff]
        %v2769 = vld [vmem:[%s984] sm:$0xff]
        %v2770 = vld [vmem:[%s984 + $0x8] sm:$0xff]
        %v2771 = vld [vmem:[%s984 + $0x10] sm:$0xff]
        %v2772 = vld [vmem:[%s984 + $0x18] sm:$0xff]
        %v2773 = vld [vmem:[%s984 + $0x20] sm:$0xff]
        %v2774 = vld [vmem:[%s984 + $0x28] sm:$0xff]
        %v2775 = vld [vmem:[%s984 + $0x30] sm:$0xff]
        %v2776 = vld [vmem:[%s984 + $0x38] sm:$0xff]
        %v2777 = vld [vmem:[%s20] sm:$0xff]
        %v2778 = vld [vmem:[%s21] sm:$0xff]
        %v2780 = vsel %vm2605, %v2769, 0
        %v2783 = vsel %vm2605, %v2770, 0
        %v2786 = vsel %vm2605, %v2771, 0
        %v2789 = vsel %vm2605, %v2772, 0
        %v2792 = vsel %vm2605, %v2773, 0
        %v2795 = vsel %vm2605, %v2774, 0
        %v2798 = vsel %vm2605, %v2775, 0
        %v2801 = vsel %vm2605, %v2776, 0
        %2803 = vmatpush.msra.mxu0 0.0
        %2804 = vmatpush.msra.mxu0 0.0
        %2805 = vmatpush.msra.mxu0 0.0
        %2806 = vmatpush.msra.mxu0 0.0
        %2807 = vmatpush.msra.mxu0 0.0
        %2808 = vmatpush.msra.mxu0 0.0
        %2809 = vmatpush.msra.mxu0 0.0
        %2810 = vmatpush.msra.mxu0 0.0
        %2811 = vmatpush.msra.mxu0 0.0
        %2812 = vmatpush.msra.mxu0 0.0
        %2813 = vmatpush.msra.mxu0 0.0
        %2814 = vmatpush.msra.mxu0 0.0
        %2815 = vmatpush.msra.mxu0 0.0
        %2816 = vmatpush.msra.mxu0 0.0
        %2817 = vmatpush.msra.mxu0 0.0
        %2818 = vmatpush.msra.mxu0 %v2778
        %2819 = vmatmul.f32.gmra.mxu0 %v2780
        %v2820 = vpop.f32.mrf.mxu0
        %v2821 = vadd.f32 0.0, %v2820
        %2822 = vmatmul.f32.gmra.mxu0 %v2783
        %v2823 = vpop.f32.mrf.mxu0
        %v2824 = vadd.f32 0.0, %v2823
        %2825 = vmatmul.f32.gmra.mxu0 %v2786
        %v2826 = vpop.f32.mrf.mxu0
        %v2827 = vadd.f32 0.0, %v2826
        %2828 = vmatmul.f32.gmra.mxu0 %v2789
        %v2829 = vpop.f32.mrf.mxu0
        %v2830 = vadd.f32 0.0, %v2829
        %2831 = vmatmul.f32.gmra.mxu0 %v2792
        %v2832 = vpop.f32.mrf.mxu0
        %v2833 = vadd.f32 0.0, %v2832
        %2834 = vmatmul.f32.gmra.mxu0 %v2795
        %v2835 = vpop.f32.mrf.mxu0
        %v2836 = vadd.f32 0.0, %v2835
        %2837 = vmatmul.f32.gmra.mxu0 %v2798
        %v2838 = vpop.f32.mrf.mxu0
        %v2839 = vadd.f32 0.0, %v2838
        %2840 = vmatmul.f32.gmra.mxu0 %v2801
        %v2841 = vpop.f32.mrf.mxu0
        %v2842 = vadd.f32 0.0, %v2841
        %2843 = vdwg.mxu0
        %v2845 = vsel %vm2605, %v2761, 0
        %v2848 = vsel %vm2605, %v2762, 0
        %v2851 = vsel %vm2605, %v2763, 0
        %v2854 = vsel %vm2605, %v2764, 0
        %v2857 = vsel %vm2605, %v2765, 0
        %v2860 = vsel %vm2605, %v2766, 0
        %v2863 = vsel %vm2605, %v2767, 0
        %v2866 = vsel %vm2605, %v2768, 0
        %2868 = vmatpush.msra.mxu0 0.0
        %2869 = vmatpush.msra.mxu0 0.0
        %2870 = vmatpush.msra.mxu0 0.0
        %2871 = vmatpush.msra.mxu0 0.0
        %2872 = vmatpush.msra.mxu0 0.0
        %2873 = vmatpush.msra.mxu0 0.0
        %2874 = vmatpush.msra.mxu0 0.0
        %2875 = vmatpush.msra.mxu0 0.0
        %2876 = vmatpush.msra.mxu0 0.0
        %2877 = vmatpush.msra.mxu0 0.0
        %2878 = vmatpush.msra.mxu0 0.0
        %2879 = vmatpush.msra.mxu0 0.0
        %2880 = vmatpush.msra.mxu0 0.0
        %2881 = vmatpush.msra.mxu0 0.0
        %2882 = vmatpush.msra.mxu0 0.0
        %2883 = vmatpush.msra.mxu0 %v2777
        %2884 = vmatmul.f32.gmra.mxu0 %v2845
        %v2885 = vpop.f32.mrf.mxu0
        %v2886 = vadd.f32 %v2821, %v2885
        %2887 = vmatmul.f32.gmra.mxu0 %v2848
        %v2888 = vpop.f32.mrf.mxu0
        %v2889 = vadd.f32 %v2824, %v2888
        %2890 = vmatmul.f32.gmra.mxu0 %v2851
        %v2891 = vpop.f32.mrf.mxu0
        %v2892 = vadd.f32 %v2827, %v2891
        %2893 = vmatmul.f32.gmra.mxu0 %v2854
        %v2894 = vpop.f32.mrf.mxu0
        %v2895 = vadd.f32 %v2830, %v2894
        %2896 = vmatmul.f32.gmra.mxu0 %v2857
        %v2897 = vpop.f32.mrf.mxu0
        %v2898 = vadd.f32 %v2833, %v2897
        %2899 = vmatmul.f32.gmra.mxu0 %v2860
        %v2900 = vpop.f32.mrf.mxu0
        %v2901 = vadd.f32 %v2836, %v2900
        %2902 = vmatmul.f32.gmra.mxu0 %v2863
        %v2903 = vpop.f32.mrf.mxu0
        %v2904 = vadd.f32 %v2839, %v2903
        %2905 = vmatmul.f32.gmra.mxu0 %v2866
        %v2906 = vpop.f32.mrf.mxu0
        %v2907 = vadd.f32 %v2842, %v2906
        %2908 = vdwg.mxu0
        %2917 = vrot.lane.b32.xlu0 %v2579, 112
        %v2918 = vpop.permute.xlu0 %2917
        %2919 = vrot.lane.b32.xlu0 %v2580, 112
        %v2920 = vpop.permute.xlu0 %2919
        %2921 = vrot.lane.b32.xlu0 %v2581, 112
        %v2922 = vpop.permute.xlu0 %2921
        %2923 = vrot.lane.b32.xlu0 %v2582, 112
        %v2924 = vpop.permute.xlu0 %2923
        %2925 = vrot.lane.b32.xlu0 %v2583, 112
        %v2926 = vpop.permute.xlu0 %2925
        %2927 = vrot.lane.b32.xlu0 %v2584, 112
        %v2928 = vpop.permute.xlu0 %2927
        %2929 = vrot.lane.b32.xlu0 %v2585, 112
        %v2930 = vpop.permute.xlu0 %2929
        %2931 = vrot.lane.b32.xlu0 %v2586, 112
        %v2932 = vpop.permute.xlu0 %2931
        %v2941 = vadd.f32 %v2886, %v2918
        %v2942 = vadd.f32 %v2889, %v2920
        %v2943 = vadd.f32 %v2892, %v2922
        %v2944 = vadd.f32 %v2895, %v2924
        %v2945 = vadd.f32 %v2898, %v2926
        %v2946 = vadd.f32 %v2901, %v2928
        %v2947 = vadd.f32 %v2904, %v2930
        %v2948 = vadd.f32 %v2907, %v2932
        %v2949 = vmul.f32 %v2941, %v1318
        %v2950 = vmul.f32 %v2942, %v1325
        %v2951 = vmul.f32 %v2943, %v1332
        %v2952 = vmul.f32 %v2944, %v1339
        %v2953 = vmul.f32 %v2945, %v1346
        %v2954 = vmul.f32 %v2946, %v1353
        %v2955 = vmul.f32 %v2947, %v1360
        %v2956 = vmul.f32 %v2948, %v1367
        %2957 = vst.msk [vmem:[%s1162] sm:$0xff] %vm2752, %v2949
        %2958 = vst.msk [vmem:[%s1162 + $0x8] sm:$0xff] %vm2752, %v2950
        %2959 = vst.msk [vmem:[%s1162 + $0x10] sm:$0xff] %vm2752, %v2951
        %2960 = vst.msk [vmem:[%s1162 + $0x18] sm:$0xff] %vm2752, %v2952
        %2961 = vst.msk [vmem:[%s1162 + $0x20] sm:$0xff] %vm2752, %v2953
        %2962 = vst.msk [vmem:[%s1162 + $0x28] sm:$0xff] %vm2752, %v2954
        %2963 = vst.msk [vmem:[%s1162 + $0x30] sm:$0xff] %vm2752, %v2955
        %2964 = vst.msk [vmem:[%s1162 + $0x38] sm:$0xff] %vm2752, %v2956
        %s2965 = sand.u32 %s650, 1
        %s2966 = scalar_lea.sflag [#allocation4], %s2965
        %s2967 = sand.u32 %s650, 1
        %s2968 = smul.addr %s2967, 64
        %s2969 = scalar_lea.vmem [#allocation8], %s2968
        %s2970 = sand.u32 %s680, 1
        %s2971 = scalar_lea.sflag [#allocation10], %s2970
        %s2972 = sand.u32 %s680, 1
        %s2973 = smul.addr %s2972, 64
        %s2974 = scalar_lea.vmem [#allocation9], %s2973
        // Predicated region
        $region121: #{tpu_custom_call.1} parent=107 // pred_check
          %p2975 = pneg %p660
        $region122: #{tpu_custom_call.1} parent=107 // pred_check_branch
          %2977 = sbr.rel (%p2975) target = $region124
        $region123: #{tpu_custom_call.1} parent=107 // pred_region
          %s2978 = smul.u32 8, %s53
          %2980 = vsyncadd %s2966, 0
          %s2981 = sadd.s32 %s54, %s2978
          %s2982 = smul.addr %s52, 8
          %s2983 = sadd.s32 %s2981, %s2982
          %s2984 = smul.addr %s2983, 8
          %s2985 = scalar_lea.hbm %s22, %s2984
          %s2986 = sshll.u32 %s2969, 4
          %s2987 = int_to_ptr.vmem [resolvable:$true] %s2986
          %s2988 = sshll.u32 %s2985, 4
          %s2989 = int_to_ptr.hbm [resolvable:$true] %s2988
          %2994 = dma.vmem_to_hbm [thread:$0]  %s2987, 1024, %s2989, %s2966, 128, 128, 8
        $region124: #{tpu_custom_call.1} parent=107 // pred_fallthru
          _
        // Predicated region
        $region125: #{tpu_custom_call.1} parent=107 // pred_check
          %p2995 = pneg %p690
        $region126: #{tpu_custom_call.1} parent=107 // pred_check_branch
          %2997 = sbr.rel (%p2995) target = $region128
        $region127: #{tpu_custom_call.1} parent=107 // pred_region
          %s2998 = smul.u32 8, %s53
          %3000 = vsyncadd %s2971, 0
          %s3001 = sadd.s32 %s54, %s2998
          %s3002 = smul.addr %s52, 8
          %s3003 = sadd.s32 %s3001, %s3002
          %s3004 = smul.addr %s3003, 8
          %s3005 = scalar_lea.hbm %s23, %s3004
          %s3006 = sshll.u32 %s2974, 4
          %s3007 = int_to_ptr.vmem [resolvable:$true] %s3006
          %s3008 = sshll.u32 %s3005, 4
          %s3009 = int_to_ptr.hbm [resolvable:$true] %s3008
          %3014 = dma.vmem_to_hbm [thread:$0]  %s3007, 1024, %s3009, %s2971, 128, 128, 8
        $region128: #{tpu_custom_call.1} parent=107 // pred_fallthru
          _
      $region108: #{tpu_custom_call.1} parent=5 // pred_fallthru
        _
      %p3015 = scmp.le.s32.totalorder 2, %s42
      // Predicated region
      $region129: #{tpu_custom_call.1} parent=5 // pred_check
        %p3016 = pneg %p3015
      $region130: #{tpu_custom_call.1} parent=5 // pred_check_branch
        %3018 = sbr.rel (%p3016) target = $region132
      $region131: #{tpu_custom_call.1} parent=5 // pred_region
        %s3019 = ssub.s32 %s42, 2
        // Predicated region
        $region133: #{tpu_custom_call.1} parent=131 // pred_check
          %p3020 = pneg %p666
        $region134: #{tpu_custom_call.1} parent=131 // pred_check_branch
          %3022 = sbr.rel (%p3020) target = $region136
        $region135: #{tpu_custom_call.1} parent=131 // pred_region
          %s3023 = sand.u32 %s651, 1
          %s3024 = scalar_lea.sflag [#allocation4], %s3023
          %s3025 = sand.u32 %s651, 1
          %s3026 = smul.addr %s3025, 64
          %s3027 = scalar_lea.vmem [#allocation8], %s3026
          %3029 = dma.done %s3024, 1024
        $region136: #{tpu_custom_call.1} parent=131 // pred_fallthru
          _
        // Predicated region
        $region137: #{tpu_custom_call.1} parent=131 // pred_check
          %p3030 = pneg %p696
        $region138: #{tpu_custom_call.1} parent=131 // pred_check_branch
          %3032 = sbr.rel (%p3030) target = $region140
        $region139: #{tpu_custom_call.1} parent=131 // pred_region
          %s3033 = sand.u32 %s681, 1
          %s3034 = scalar_lea.sflag [#allocation10], %s3033
          %s3035 = sand.u32 %s681, 1
          %s3036 = smul.addr %s3035, 64
          %s3037 = scalar_lea.vmem [#allocation9], %s3036
          %3039 = dma.done %s3034, 1024
        $region140: #{tpu_custom_call.1} parent=131 // pred_fallthru
          _
      $region132: #{tpu_custom_call.1} parent=5 // pred_fallthru
        _
    $region6: #{tpu_custom_call.1} parent=1 // loop_footer
      %s46 = sadd.s32 1, %s42
    $region7: #{tpu_custom_call.1} parent=1 // loop_footer_branch
      %41 = sbr.rel target = $region3
    $region8: #{tpu_custom_call.1} parent=1 // loop_exit
      _
    %3040 = vsyncpa [#allocation3], 1
    %s3041 = scalar_lea.sflag [#allocation3], 1
    %3042 = vsyncpa %s3041, 1
    %3043 = vsyncpa [#allocation6], 1
    %s3044 = scalar_lea.sflag [#allocation6], 1
    %3045 = vsyncpa %s3044, 1
    %3046 = vsyncpa [#allocation4], 1
    %s3047 = scalar_lea.sflag [#allocation4], 1
    %3048 = vsyncpa %s3047, 1
    %3049 = vsyncpa [#allocation10], 1
    %s3050 = scalar_lea.sflag [#allocation10], 1
    %3051 = vsyncpa %s3050, 1

</llo_original>
